<compile_context>
chip_gen: v6e
topology: v6e:2x2x1
jax: 0.10.0
libtpu: 0.0.40
codegen_flags: <defaults>
</compile_context>

<pallas_src>
import jax
import jax.numpy as jnp
from jax.experimental import pallas as pl
from jax.experimental.pallas import tpu as pltpu


# ----------------------------------------------------------------------------
# Fused kernel: L-layer GRU (batch_first input) + 3-layer MLP head.
# ----------------------------------------------------------------------------
def _make_kernel(B, T, I, H, L):
    G = 3 * H  # fused gate width, order [r | z | n] (matches torch.nn.GRU)

    def kernel(*refs):
        x_ref = refs[0]
        out_ref = refs[-1]
        w_refs = refs[1:-1]
        gru_refs = [w_refs[4 * l: 4 * l + 4] for l in range(L)]
        w1_ref, b1_ref, w2_ref, b2_ref, w3_ref, b3_ref = w_refs[4 * L:]

        x = x_ref[...]  # (B, T, I), whole sequence resident in VMEM/vregs

        def layer0_gi_time_major(wi, bi):
            # Hoisted input projection for layer 0.  Done per batch row so the
            # only data-movement ops are trivial major-dim slices and
            # contiguous sublane slices / concats (no transposes).
            per_b = []
            for b in range(B):
                x_b = x[b]  # (T, I) major-dim slice
                per_b.append(
                    jnp.dot(x_b, wi, preferred_element_type=jnp.float32) + bi)  # (T, G)
            rows = []
            for t in range(T):
                for b in range(B):
                    rows.append(per_b[b][t:t + 1, :])
            return jnp.concatenate(rows, axis=0)  # (T*B, G), time-major

        def run_layer(gi_tm, wh, bh, collect_seq):
            # gi_tm: (T*B, G) time-major precomputed input projections.
            h = jnp.zeros((B, H), jnp.float32)
            hs = []
            for t in range(T):  # fully unrolled recurrence
                gi = gi_tm[t * B:(t + 1) * B, :]                                # (B, G)
                gh = jnp.dot(h, wh, preferred_element_type=jnp.float32) + bh   # (B, G)
                rz = jax.nn.sigmoid(gi[:, :2 * H] + gh[:, :2 * H])  # fused r|z sigmoid
                r = rz[:, :H]
                z = rz[:, H:]
                n = jnp.tanh(gi[:, 2 * H:] + r * gh[:, 2 * H:])
                h = (1.0 - z) * n + z * h
                if collect_seq:
                    hs.append(h)
            seq_tm = jnp.concatenate(hs, axis=0) if collect_seq else None  # (T*B, H)
            return h, seq_tm

        h = None
        seq_tm = None
        for l in range(L):
            wi_ref, wh_ref, bi_ref, bh_ref = gru_refs[l]
            wi = wi_ref[...]
            wh = wh_ref[...]
            bi = bi_ref[...]
            bh = bh_ref[...]
            if l == 0:
                gi_tm = layer0_gi_time_major(wi, bi)
            else:
                # seq_tm is already time-major: one hoisted (T*B, H) @ (H, 3H).
                gi_tm = jnp.dot(seq_tm, wi, preferred_element_type=jnp.float32) + bi
            h, seq_tm = run_layer(gi_tm, wh, bh, collect_seq=(l + 1 < L))

        # Fused MLP head on the final hidden state (== out[:, -1, :]).
        y = jnp.maximum(
            jnp.dot(h, w1_ref[...], preferred_element_type=jnp.float32) + b1_ref[...],
            0.0)
        y = jnp.maximum(
            jnp.dot(y, w2_ref[...], preferred_element_type=jnp.float32) + b2_ref[...],
            0.0)
        out_ref[...] = (
            jnp.dot(y, w3_ref[...], preferred_element_type=jnp.float32) + b3_ref[...])

    return kernel


def gru_anomaly_detector(x_bti, params):
    """x_bti: (B, T, input_size) f32, batch_first like PyTorch."""
    B, T, I = x_bti.shape
    gru = params["gru"]
    L = len(gru)
    H = gru[0]["wh"].shape[0]
    fc = params["fc"]
    O = fc["w3"].shape[1]

    args = [x_bti]
    for p in gru:
        args += [p["wi"], p["wh"], p["bi"], p["bh"]]
    args += [fc["w1"], fc["b1"], fc["w2"], fc["b2"], fc["w3"], fc["b3"]]

    def full_spec(shape):
        nd = len(shape)
        return pl.BlockSpec(shape, lambda i, _nd=nd: (0,) * _nd)

    kernel = _make_kernel(B, T, I, H, L)
    return pl.pallas_call(
        kernel,
        out_shape=jax.ShapeDtypeStruct((B, O), jnp.float32),
        grid=(1,),
        in_specs=[full_spec(a.shape) for a in args],
        out_specs=pl.BlockSpec((B, O), lambda i: (0, 0)),
        compiler_params=pltpu.CompilerParams(dimension_semantics=("arbitrary",)),
    )(*args)


# ----------------------------------------------------------------------------
# Deterministic parameter init (PyTorch-style uniform bounds, fused gates)
# ----------------------------------------------------------------------------
def init_params(key, input_size, hidden_size, num_layers, output_size):
    def uni(k, shape, bound):
        return jax.random.uniform(k, shape, jnp.float32, -bound, bound)

    H = hidden_size
    kg = 1.0 / float(H) ** 0.5
    params = {"gru": [], "fc": {}}
    for layer in range(num_layers):
        in_sz = input_size if layer == 0 else H
        key, k1, k2, k3, k4 = jax.random.split(key, 5)
        params["gru"].append({
            # fused gate order [r | z | n], matching torch.nn.GRU
            "wi": uni(k1, (in_sz, 3 * H), kg),
            "wh": uni(k2, (H, 3 * H), kg),
            "bi": uni(k3, (1, 3 * H), kg),
            "bh": uni(k4, (1, 3 * H), kg),
        })

    key, k1, k2, k3, k4, k5, k6 = jax.random.split(key, 7)
    b1 = 1.0 / float(H) ** 0.5
    b2 = 1.0 / float(128) ** 0.5
    b3 = 1.0 / float(64) ** 0.5
    params["fc"] = {
        "w1": uni(k1, (H, 128), b1), "b1": uni(k2, (1, 128), b1),
        "w2": uni(k3, (128, 64), b2), "b2": uni(k4, (1, 64), b2),
        "w3": uni(k5, (64, output_size), b3), "b3": uni(k6, (1, output_size), b3),
    }
    return params


# ----------------------------------------------------------------------------
# Pure-JAX reference (mirrors torch.nn.GRU + fc_layers semantics)
# ----------------------------------------------------------------------------
def reference_forward(x_bti, params):
    B, T, _ = x_bti.shape
    seq = x_bti
    for p in params["gru"]:
        H = p["wh"].shape[0]
        h = jnp.zeros((B, H), jnp.float32)
        ys = []
        for t in range(T):
            xt = seq[:, t, :]
            gi = xt @ p["wi"] + p["bi"]
            gh = h @ p["wh"] + p["bh"]
            r = jax.nn.sigmoid(gi[:, :H] + gh[:, :H])
            z = jax.nn.sigmoid(gi[:, H:2 * H] + gh[:, H:2 * H])
            n = jnp.tanh(gi[:, 2 * H:] + r * gh[:, 2 * H:])
            h = (1.0 - z) * n + z * h
            ys.append(h)
        seq = jnp.stack(ys, axis=1)
    out = seq[:, -1, :]
    fc = params["fc"]
    out = jnp.maximum(out @ fc["w1"] + fc["b1"], 0.0)
    out = jnp.maximum(out @ fc["w2"] + fc["b2"], 0.0)
    return out @ fc["w3"] + fc["b3"]


if __name__ == "__main__":
    INPUT_SIZE, HIDDEN_SIZE, NUM_LAYERS, OUTPUT_SIZE = 16, 32, 2, 4
    BATCH, SEQ = 2, 8

    root = jax.random.PRNGKey(0)
    k_params, k_x = jax.random.split(root)
    params = init_params(k_params, INPUT_SIZE, HIDDEN_SIZE, NUM_LAYERS, OUTPUT_SIZE)
    x = jax.random.normal(k_x, (BATCH, SEQ, INPUT_SIZE), jnp.float32)

    y = gru_anomaly_detector(x, params)
    y = jax.block_until_ready(y)

    y_ref = jax.block_until_ready(reference_forward(x, params))
    assert y.shape == (BATCH, OUTPUT_SIZE)
    assert jnp.allclose(y, y_ref, atol=5e-3, rtol=5e-3), "mismatch vs reference"

    print("KERNEL_OK")
</pallas_src>

<mosaic_0001>
module attributes {stable_mosaic.version = 11 : i64} {
  func.func @kernel(%arg0: i32, %arg1: memref<2x8x16xf32, #tpu.memory_space<vmem>>, %arg2: memref<16x96xf32, #tpu.memory_space<vmem>>, %arg3: memref<32x96xf32, #tpu.memory_space<vmem>>, %arg4: memref<1x96xf32, #tpu.memory_space<vmem>>, %arg5: memref<1x96xf32, #tpu.memory_space<vmem>>, %arg6: memref<32x96xf32, #tpu.memory_space<vmem>>, %arg7: memref<32x96xf32, #tpu.memory_space<vmem>>, %arg8: memref<1x96xf32, #tpu.memory_space<vmem>>, %arg9: memref<1x96xf32, #tpu.memory_space<vmem>>, %arg10: memref<32x128xf32, #tpu.memory_space<vmem>>, %arg11: memref<1x128xf32, #tpu.memory_space<vmem>>, %arg12: memref<128x64xf32, #tpu.memory_space<vmem>>, %arg13: memref<1x64xf32, #tpu.memory_space<vmem>>, %arg14: memref<64x4xf32, #tpu.memory_space<vmem>>, %arg15: memref<1x4xf32, #tpu.memory_space<vmem>>, %arg16: memref<2x4xf32, #tpu.memory_space<vmem>>) attributes {dimension_semantics = [#tpu.dimension_semantics<arbitrary>], iteration_bounds = array<i64: 1>, scalar_prefetch = 0 : i64, scratch_operands = 0 : i64, tpu.core_type = #tpu.core_type<tc>, window_params = [{pipeline_mode = #tpu.pipeline_mode<synchronous>, transform_indices = @transform_0, window_bounds = array<i64: 2, 8, 16>}, {pipeline_mode = #tpu.pipeline_mode<synchronous>, transform_indices = @transform_1, window_bounds = array<i64: 16, 96>}, {pipeline_mode = #tpu.pipeline_mode<synchronous>, transform_indices = @transform_2, window_bounds = array<i64: 32, 96>}, {pipeline_mode = #tpu.pipeline_mode<synchronous>, transform_indices = @transform_3, window_bounds = array<i64: 1, 96>}, {pipeline_mode = #tpu.pipeline_mode<synchronous>, transform_indices = @transform_4, window_bounds = array<i64: 1, 96>}, {pipeline_mode = #tpu.pipeline_mode<synchronous>, transform_indices = @transform_5, window_bounds = array<i64: 32, 96>}, {pipeline_mode = #tpu.pipeline_mode<synchronous>, transform_indices = @transform_6, window_bounds = array<i64: 32, 96>}, {pipeline_mode = #tpu.pipeline_mode<synchronous>, transform_indices = @transform_7, window_bounds = array<i64: 1, 96>}, {pipeline_mode = #tpu.pipeline_mode<synchronous>, transform_indices = @transform_8, window_bounds = array<i64: 1, 96>}, {pipeline_mode = #tpu.pipeline_mode<synchronous>, transform_indices = @transform_9, window_bounds = array<i64: 32, 128>}, {pipeline_mode = #tpu.pipeline_mode<synchronous>, transform_indices = @transform_10, window_bounds = array<i64: 1, 128>}, {pipeline_mode = #tpu.pipeline_mode<synchronous>, transform_indices = @transform_11, window_bounds = array<i64: 128, 64>}, {pipeline_mode = #tpu.pipeline_mode<synchronous>, transform_indices = @transform_12, window_bounds = array<i64: 1, 64>}, {pipeline_mode = #tpu.pipeline_mode<synchronous>, transform_indices = @transform_13, window_bounds = array<i64: 64, 4>}, {pipeline_mode = #tpu.pipeline_mode<synchronous>, transform_indices = @transform_14, window_bounds = array<i64: 1, 4>}, {pipeline_mode = #tpu.pipeline_mode<synchronous>, transform_indices = @transform_15, window_bounds = array<i64: 2, 4>}]} {
    %c0 = arith.constant 0 : index
    %c0_0 = arith.constant 0 : index
    %c0_1 = arith.constant 0 : index
    %0 = vector.load %arg1[%c0, %c0_0, %c0_1] : memref<2x8x16xf32, #tpu.memory_space<vmem>>, vector<2x8x16xf32>
    %c0_2 = arith.constant 0 : index
    %c0_3 = arith.constant 0 : index
    %1 = vector.load %arg2[%c0_2, %c0_3] : memref<16x96xf32, #tpu.memory_space<vmem>>, vector<16x96xf32>
    %c0_4 = arith.constant 0 : index
    %c0_5 = arith.constant 0 : index
    %2 = vector.load %arg3[%c0_4, %c0_5] : memref<32x96xf32, #tpu.memory_space<vmem>>, vector<32x96xf32>
    %c0_6 = arith.constant 0 : index
    %c0_7 = arith.constant 0 : index
    %3 = vector.load %arg4[%c0_6, %c0_7] : memref<1x96xf32, #tpu.memory_space<vmem>>, vector<1x96xf32>
    %c0_8 = arith.constant 0 : index
    %c0_9 = arith.constant 0 : index
    %4 = vector.load %arg5[%c0_8, %c0_9] : memref<1x96xf32, #tpu.memory_space<vmem>>, vector<1x96xf32>
    %5 = vector.extract_strided_slice %0 {offsets = [0, 0, 0], sizes = [1, 8, 16], strides = [1, 1, 1]} : vector<2x8x16xf32> to vector<1x8x16xf32>
    %6 = vector.shape_cast %5 : vector<1x8x16xf32> to vector<8x16xf32>
    %cst = arith.constant dense<0.000000e+00> : vector<8x96xf32>
    %7 = tpu.matmul %6, %1, %cst {dimension_numbers = #tpu.dot_dimension_numbers<[1], [0], [0], [1], [0, 0, 1, 1], [], []>} : vector<8x16xf32>, vector<16x96xf32>, vector<8x96xf32> -> vector<8x96xf32>
    %8 = vector.broadcast %3 : vector<1x96xf32> to vector<8x96xf32>
    %9 = arith.addf %7, %8 : vector<8x96xf32>
    %10 = vector.extract_strided_slice %0 {offsets = [1, 0, 0], sizes = [1, 8, 16], strides = [1, 1, 1]} : vector<2x8x16xf32> to vector<1x8x16xf32>
    %11 = vector.shape_cast %10 : vector<1x8x16xf32> to vector<8x16xf32>
    %cst_10 = arith.constant dense<0.000000e+00> : vector<8x96xf32>
    %12 = tpu.matmul %11, %1, %cst_10 {dimension_numbers = #tpu.dot_dimension_numbers<[1], [0], [0], [1], [0, 0, 1, 1], [], []>} : vector<8x16xf32>, vector<16x96xf32>, vector<8x96xf32> -> vector<8x96xf32>
    %13 = vector.broadcast %3 : vector<1x96xf32> to vector<8x96xf32>
    %14 = arith.addf %12, %13 : vector<8x96xf32>
    %15 = vector.extract_strided_slice %9 {offsets = [0, 0], sizes = [1, 96], strides = [1, 1]} : vector<8x96xf32> to vector<1x96xf32>
    %16 = vector.extract_strided_slice %14 {offsets = [0, 0], sizes = [1, 96], strides = [1, 1]} : vector<8x96xf32> to vector<1x96xf32>
    %17 = vector.extract_strided_slice %9 {offsets = [1, 0], sizes = [1, 96], strides = [1, 1]} : vector<8x96xf32> to vector<1x96xf32>
    %18 = vector.extract_strided_slice %14 {offsets = [1, 0], sizes = [1, 96], strides = [1, 1]} : vector<8x96xf32> to vector<1x96xf32>
    %19 = vector.extract_strided_slice %9 {offsets = [2, 0], sizes = [1, 96], strides = [1, 1]} : vector<8x96xf32> to vector<1x96xf32>
    %20 = vector.extract_strided_slice %14 {offsets = [2, 0], sizes = [1, 96], strides = [1, 1]} : vector<8x96xf32> to vector<1x96xf32>
    %21 = vector.extract_strided_slice %9 {offsets = [3, 0], sizes = [1, 96], strides = [1, 1]} : vector<8x96xf32> to vector<1x96xf32>
    %22 = vector.extract_strided_slice %14 {offsets = [3, 0], sizes = [1, 96], strides = [1, 1]} : vector<8x96xf32> to vector<1x96xf32>
    %23 = vector.extract_strided_slice %9 {offsets = [4, 0], sizes = [1, 96], strides = [1, 1]} : vector<8x96xf32> to vector<1x96xf32>
    %24 = vector.extract_strided_slice %14 {offsets = [4, 0], sizes = [1, 96], strides = [1, 1]} : vector<8x96xf32> to vector<1x96xf32>
    %25 = vector.extract_strided_slice %9 {offsets = [5, 0], sizes = [1, 96], strides = [1, 1]} : vector<8x96xf32> to vector<1x96xf32>
    %26 = vector.extract_strided_slice %14 {offsets = [5, 0], sizes = [1, 96], strides = [1, 1]} : vector<8x96xf32> to vector<1x96xf32>
    %27 = vector.extract_strided_slice %9 {offsets = [6, 0], sizes = [1, 96], strides = [1, 1]} : vector<8x96xf32> to vector<1x96xf32>
    %28 = vector.extract_strided_slice %14 {offsets = [6, 0], sizes = [1, 96], strides = [1, 1]} : vector<8x96xf32> to vector<1x96xf32>
    %29 = vector.extract_strided_slice %9 {offsets = [7, 0], sizes = [1, 96], strides = [1, 1]} : vector<8x96xf32> to vector<1x96xf32>
    %30 = vector.extract_strided_slice %14 {offsets = [7, 0], sizes = [1, 96], strides = [1, 1]} : vector<8x96xf32> to vector<1x96xf32>
    %31 = tpu.concatenate %15, %16, %17, %18, %19, %20, %21, %22, %23, %24, %25, %26, %27, %28, %29, %30 in 0 : vector<1x96xf32>, vector<1x96xf32>, vector<1x96xf32>, vector<1x96xf32>, vector<1x96xf32>, vector<1x96xf32>, vector<1x96xf32>, vector<1x96xf32>, vector<1x96xf32>, vector<1x96xf32>, vector<1x96xf32>, vector<1x96xf32>, vector<1x96xf32>, vector<1x96xf32>, vector<1x96xf32>, vector<1x96xf32> -> vector<16x96xf32>
    %cst_11 = arith.constant 0.000000e+00 : f32
    %32 = vector.broadcast %cst_11 : f32 to vector<2x32xf32>
    %33 = vector.extract_strided_slice %31 {offsets = [0, 0], sizes = [2, 96], strides = [1, 1]} : vector<16x96xf32> to vector<2x96xf32>
    %cst_12 = arith.constant dense<0.000000e+00> : vector<2x96xf32>
    %34 = tpu.matmul %32, %2, %cst_12 {dimension_numbers = #tpu.dot_dimension_numbers<[1], [0], [0], [1], [0, 0, 1, 1], [], []>} : vector<2x32xf32>, vector<32x96xf32>, vector<2x96xf32> -> vector<2x96xf32>
    %35 = vector.broadcast %4 : vector<1x96xf32> to vector<2x96xf32>
    %36 = arith.addf %34, %35 : vector<2x96xf32>
    %37 = vector.extract_strided_slice %33 {offsets = [0, 0], sizes = [2, 64], strides = [1, 1]} : vector<2x96xf32> to vector<2x64xf32>
    %38 = vector.extract_strided_slice %36 {offsets = [0, 0], sizes = [2, 64], strides = [1, 1]} : vector<2x96xf32> to vector<2x64xf32>
    %39 = arith.addf %37, %38 : vector<2x64xf32>
    %40 = arith.negf %39 : vector<2x64xf32>
    %41 = math.exp %40 : vector<2x64xf32>
    %cst_13 = arith.constant 1.000000e+00 : f32
    %42 = vector.broadcast %cst_13 : f32 to vector<2x64xf32>
    %43 = arith.addf %42, %41 : vector<2x64xf32>
    %44 = arith.divf %42, %43 : vector<2x64xf32>
    %45 = vector.extract_strided_slice %44 {offsets = [0, 0], sizes = [2, 32], strides = [1, 1]} : vector<2x64xf32> to vector<2x32xf32>
    %46 = vector.extract_strided_slice %44 {offsets = [0, 32], sizes = [2, 32], strides = [1, 1]} : vector<2x64xf32> to vector<2x32xf32>
    %47 = vector.extract_strided_slice %33 {offsets = [0, 64], sizes = [2, 32], strides = [1, 1]} : vector<2x96xf32> to vector<2x32xf32>
    %48 = vector.extract_strided_slice %36 {offsets = [0, 64], sizes = [2, 32], strides = [1, 1]} : vector<2x96xf32> to vector<2x32xf32>
    %49 = arith.mulf %45, %48 : vector<2x32xf32>
    %50 = arith.addf %47, %49 : vector<2x32xf32>
    %51 = math.tanh %50 : vector<2x32xf32>
    %cst_14 = arith.constant 1.000000e+00 : f32
    %52 = vector.broadcast %cst_14 : f32 to vector<2x32xf32>
    %53 = arith.subf %52, %46 : vector<2x32xf32>
    %54 = arith.mulf %53, %51 : vector<2x32xf32>
    %55 = arith.mulf %46, %32 : vector<2x32xf32>
    %56 = arith.addf %54, %55 : vector<2x32xf32>
    %57 = vector.extract_strided_slice %31 {offsets = [2, 0], sizes = [2, 96], strides = [1, 1]} : vector<16x96xf32> to vector<2x96xf32>
    %cst_15 = arith.constant dense<0.000000e+00> : vector<2x96xf32>
    %58 = tpu.matmul %56, %2, %cst_15 {dimension_numbers = #tpu.dot_dimension_numbers<[1], [0], [0], [1], [0, 0, 1, 1], [], []>} : vector<2x32xf32>, vector<32x96xf32>, vector<2x96xf32> -> vector<2x96xf32>
    %59 = vector.broadcast %4 : vector<1x96xf32> to vector<2x96xf32>
    %60 = arith.addf %58, %59 : vector<2x96xf32>
    %61 = vector.extract_strided_slice %57 {offsets = [0, 0], sizes = [2, 64], strides = [1, 1]} : vector<2x96xf32> to vector<2x64xf32>
    %62 = vector.extract_strided_slice %60 {offsets = [0, 0], sizes = [2, 64], strides = [1, 1]} : vector<2x96xf32> to vector<2x64xf32>
    %63 = arith.addf %61, %62 : vector<2x64xf32>
    %64 = arith.negf %63 : vector<2x64xf32>
    %65 = math.exp %64 : vector<2x64xf32>
    %cst_16 = arith.constant 1.000000e+00 : f32
    %66 = vector.broadcast %cst_16 : f32 to vector<2x64xf32>
    %67 = arith.addf %66, %65 : vector<2x64xf32>
    %68 = arith.divf %66, %67 : vector<2x64xf32>
    %69 = vector.extract_strided_slice %68 {offsets = [0, 0], sizes = [2, 32], strides = [1, 1]} : vector<2x64xf32> to vector<2x32xf32>
    %70 = vector.extract_strided_slice %68 {offsets = [0, 32], sizes = [2, 32], strides = [1, 1]} : vector<2x64xf32> to vector<2x32xf32>
    %71 = vector.extract_strided_slice %57 {offsets = [0, 64], sizes = [2, 32], strides = [1, 1]} : vector<2x96xf32> to vector<2x32xf32>
    %72 = vector.extract_strided_slice %60 {offsets = [0, 64], sizes = [2, 32], strides = [1, 1]} : vector<2x96xf32> to vector<2x32xf32>
    %73 = arith.mulf %69, %72 : vector<2x32xf32>
    %74 = arith.addf %71, %73 : vector<2x32xf32>
    %75 = math.tanh %74 : vector<2x32xf32>
    %cst_17 = arith.constant 1.000000e+00 : f32
    %76 = vector.broadcast %cst_17 : f32 to vector<2x32xf32>
    %77 = arith.subf %76, %70 : vector<2x32xf32>
    %78 = arith.mulf %77, %75 : vector<2x32xf32>
    %79 = arith.mulf %70, %56 : vector<2x32xf32>
    %80 = arith.addf %78, %79 : vector<2x32xf32>
    %81 = vector.extract_strided_slice %31 {offsets = [4, 0], sizes = [2, 96], strides = [1, 1]} : vector<16x96xf32> to vector<2x96xf32>
    %cst_18 = arith.constant dense<0.000000e+00> : vector<2x96xf32>
    %82 = tpu.matmul %80, %2, %cst_18 {dimension_numbers = #tpu.dot_dimension_numbers<[1], [0], [0], [1], [0, 0, 1, 1], [], []>} : vector<2x32xf32>, vector<32x96xf32>, vector<2x96xf32> -> vector<2x96xf32>
    %83 = vector.broadcast %4 : vector<1x96xf32> to vector<2x96xf32>
    %84 = arith.addf %82, %83 : vector<2x96xf32>
    %85 = vector.extract_strided_slice %81 {offsets = [0, 0], sizes = [2, 64], strides = [1, 1]} : vector<2x96xf32> to vector<2x64xf32>
    %86 = vector.extract_strided_slice %84 {offsets = [0, 0], sizes = [2, 64], strides = [1, 1]} : vector<2x96xf32> to vector<2x64xf32>
    %87 = arith.addf %85, %86 : vector<2x64xf32>
    %88 = arith.negf %87 : vector<2x64xf32>
    %89 = math.exp %88 : vector<2x64xf32>
    %cst_19 = arith.constant 1.000000e+00 : f32
    %90 = vector.broadcast %cst_19 : f32 to vector<2x64xf32>
    %91 = arith.addf %90, %89 : vector<2x64xf32>
    %92 = arith.divf %90, %91 : vector<2x64xf32>
    %93 = vector.extract_strided_slice %92 {offsets = [0, 0], sizes = [2, 32], strides = [1, 1]} : vector<2x64xf32> to vector<2x32xf32>
    %94 = vector.extract_strided_slice %92 {offsets = [0, 32], sizes = [2, 32], strides = [1, 1]} : vector<2x64xf32> to vector<2x32xf32>
    %95 = vector.extract_strided_slice %81 {offsets = [0, 64], sizes = [2, 32], strides = [1, 1]} : vector<2x96xf32> to vector<2x32xf32>
    %96 = vector.extract_strided_slice %84 {offsets = [0, 64], sizes = [2, 32], strides = [1, 1]} : vector<2x96xf32> to vector<2x32xf32>
    %97 = arith.mulf %93, %96 : vector<2x32xf32>
    %98 = arith.addf %95, %97 : vector<2x32xf32>
    %99 = math.tanh %98 : vector<2x32xf32>
    %cst_20 = arith.constant 1.000000e+00 : f32
    %100 = vector.broadcast %cst_20 : f32 to vector<2x32xf32>
    %101 = arith.subf %100, %94 : vector<2x32xf32>
    %102 = arith.mulf %101, %99 : vector<2x32xf32>
    %103 = arith.mulf %94, %80 : vector<2x32xf32>
    %104 = arith.addf %102, %103 : vector<2x32xf32>
    %105 = vector.extract_strided_slice %31 {offsets = [6, 0], sizes = [2, 96], strides = [1, 1]} : vector<16x96xf32> to vector<2x96xf32>
    %cst_21 = arith.constant dense<0.000000e+00> : vector<2x96xf32>
    %106 = tpu.matmul %104, %2, %cst_21 {dimension_numbers = #tpu.dot_dimension_numbers<[1], [0], [0], [1], [0, 0, 1, 1], [], []>} : vector<2x32xf32>, vector<32x96xf32>, vector<2x96xf32> -> vector<2x96xf32>
    %107 = vector.broadcast %4 : vector<1x96xf32> to vector<2x96xf32>
    %108 = arith.addf %106, %107 : vector<2x96xf32>
    %109 = vector.extract_strided_slice %105 {offsets = [0, 0], sizes = [2, 64], strides = [1, 1]} : vector<2x96xf32> to vector<2x64xf32>
    %110 = vector.extract_strided_slice %108 {offsets = [0, 0], sizes = [2, 64], strides = [1, 1]} : vector<2x96xf32> to vector<2x64xf32>
    %111 = arith.addf %109, %110 : vector<2x64xf32>
    %112 = arith.negf %111 : vector<2x64xf32>
    %113 = math.exp %112 : vector<2x64xf32>
    %cst_22 = arith.constant 1.000000e+00 : f32
    %114 = vector.broadcast %cst_22 : f32 to vector<2x64xf32>
    %115 = arith.addf %114, %113 : vector<2x64xf32>
    %116 = arith.divf %114, %115 : vector<2x64xf32>
    %117 = vector.extract_strided_slice %116 {offsets = [0, 0], sizes = [2, 32], strides = [1, 1]} : vector<2x64xf32> to vector<2x32xf32>
    %118 = vector.extract_strided_slice %116 {offsets = [0, 32], sizes = [2, 32], strides = [1, 1]} : vector<2x64xf32> to vector<2x32xf32>
    %119 = vector.extract_strided_slice %105 {offsets = [0, 64], sizes = [2, 32], strides = [1, 1]} : vector<2x96xf32> to vector<2x32xf32>
    %120 = vector.extract_strided_slice %108 {offsets = [0, 64], sizes = [2, 32], strides = [1, 1]} : vector<2x96xf32> to vector<2x32xf32>
    %121 = arith.mulf %117, %120 : vector<2x32xf32>
    %122 = arith.addf %119, %121 : vector<2x32xf32>
    %123 = math.tanh %122 : vector<2x32xf32>
    %cst_23 = arith.constant 1.000000e+00 : f32
    %124 = vector.broadcast %cst_23 : f32 to vector<2x32xf32>
    %125 = arith.subf %124, %118 : vector<2x32xf32>
    %126 = arith.mulf %125, %123 : vector<2x32xf32>
    %127 = arith.mulf %118, %104 : vector<2x32xf32>
    %128 = arith.addf %126, %127 : vector<2x32xf32>
    %129 = vector.extract_strided_slice %31 {offsets = [8, 0], sizes = [2, 96], strides = [1, 1]} : vector<16x96xf32> to vector<2x96xf32>
    %cst_24 = arith.constant dense<0.000000e+00> : vector<2x96xf32>
    %130 = tpu.matmul %128, %2, %cst_24 {dimension_numbers = #tpu.dot_dimension_numbers<[1], [0], [0], [1], [0, 0, 1, 1], [], []>} : vector<2x32xf32>, vector<32x96xf32>, vector<2x96xf32> -> vector<2x96xf32>
    %131 = vector.broadcast %4 : vector<1x96xf32> to vector<2x96xf32>
    %132 = arith.addf %130, %131 : vector<2x96xf32>
    %133 = vector.extract_strided_slice %129 {offsets = [0, 0], sizes = [2, 64], strides = [1, 1]} : vector<2x96xf32> to vector<2x64xf32>
    %134 = vector.extract_strided_slice %132 {offsets = [0, 0], sizes = [2, 64], strides = [1, 1]} : vector<2x96xf32> to vector<2x64xf32>
    %135 = arith.addf %133, %134 : vector<2x64xf32>
    %136 = arith.negf %135 : vector<2x64xf32>
    %137 = math.exp %136 : vector<2x64xf32>
    %cst_25 = arith.constant 1.000000e+00 : f32
    %138 = vector.broadcast %cst_25 : f32 to vector<2x64xf32>
    %139 = arith.addf %138, %137 : vector<2x64xf32>
    %140 = arith.divf %138, %139 : vector<2x64xf32>
    %141 = vector.extract_strided_slice %140 {offsets = [0, 0], sizes = [2, 32], strides = [1, 1]} : vector<2x64xf32> to vector<2x32xf32>
    %142 = vector.extract_strided_slice %140 {offsets = [0, 32], sizes = [2, 32], strides = [1, 1]} : vector<2x64xf32> to vector<2x32xf32>
    %143 = vector.extract_strided_slice %129 {offsets = [0, 64], sizes = [2, 32], strides = [1, 1]} : vector<2x96xf32> to vector<2x32xf32>
    %144 = vector.extract_strided_slice %132 {offsets = [0, 64], sizes = [2, 32], strides = [1, 1]} : vector<2x96xf32> to vector<2x32xf32>
    %145 = arith.mulf %141, %144 : vector<2x32xf32>
    %146 = arith.addf %143, %145 : vector<2x32xf32>
    %147 = math.tanh %146 : vector<2x32xf32>
    %cst_26 = arith.constant 1.000000e+00 : f32
    %148 = vector.broadcast %cst_26 : f32 to vector<2x32xf32>
    %149 = arith.subf %148, %142 : vector<2x32xf32>
    %150 = arith.mulf %149, %147 : vector<2x32xf32>
    %151 = arith.mulf %142, %128 : vector<2x32xf32>
    %152 = arith.addf %150, %151 : vector<2x32xf32>
    %153 = vector.extract_strided_slice %31 {offsets = [10, 0], sizes = [2, 96], strides = [1, 1]} : vector<16x96xf32> to vector<2x96xf32>
    %cst_27 = arith.constant dense<0.000000e+00> : vector<2x96xf32>
    %154 = tpu.matmul %152, %2, %cst_27 {dimension_numbers = #tpu.dot_dimension_numbers<[1], [0], [0], [1], [0, 0, 1, 1], [], []>} : vector<2x32xf32>, vector<32x96xf32>, vector<2x96xf32> -> vector<2x96xf32>
    %155 = vector.broadcast %4 : vector<1x96xf32> to vector<2x96xf32>
    %156 = arith.addf %154, %155 : vector<2x96xf32>
    %157 = vector.extract_strided_slice %153 {offsets = [0, 0], sizes = [2, 64], strides = [1, 1]} : vector<2x96xf32> to vector<2x64xf32>
    %158 = vector.extract_strided_slice %156 {offsets = [0, 0], sizes = [2, 64], strides = [1, 1]} : vector<2x96xf32> to vector<2x64xf32>
    %159 = arith.addf %157, %158 : vector<2x64xf32>
    %160 = arith.negf %159 : vector<2x64xf32>
    %161 = math.exp %160 : vector<2x64xf32>
    %cst_28 = arith.constant 1.000000e+00 : f32
    %162 = vector.broadcast %cst_28 : f32 to vector<2x64xf32>
    %163 = arith.addf %162, %161 : vector<2x64xf32>
    %164 = arith.divf %162, %163 : vector<2x64xf32>
    %165 = vector.extract_strided_slice %164 {offsets = [0, 0], sizes = [2, 32], strides = [1, 1]} : vector<2x64xf32> to vector<2x32xf32>
    %166 = vector.extract_strided_slice %164 {offsets = [0, 32], sizes = [2, 32], strides = [1, 1]} : vector<2x64xf32> to vector<2x32xf32>
    %167 = vector.extract_strided_slice %153 {offsets = [0, 64], sizes = [2, 32], strides = [1, 1]} : vector<2x96xf32> to vector<2x32xf32>
    %168 = vector.extract_strided_slice %156 {offsets = [0, 64], sizes = [2, 32], strides = [1, 1]} : vector<2x96xf32> to vector<2x32xf32>
    %169 = arith.mulf %165, %168 : vector<2x32xf32>
    %170 = arith.addf %167, %169 : vector<2x32xf32>
    %171 = math.tanh %170 : vector<2x32xf32>
    %cst_29 = arith.constant 1.000000e+00 : f32
    %172 = vector.broadcast %cst_29 : f32 to vector<2x32xf32>
    %173 = arith.subf %172, %166 : vector<2x32xf32>
    %174 = arith.mulf %173, %171 : vector<2x32xf32>
    %175 = arith.mulf %166, %152 : vector<2x32xf32>
    %176 = arith.addf %174, %175 : vector<2x32xf32>
    %177 = vector.extract_strided_slice %31 {offsets = [12, 0], sizes = [2, 96], strides = [1, 1]} : vector<16x96xf32> to vector<2x96xf32>
    %cst_30 = arith.constant dense<0.000000e+00> : vector<2x96xf32>
    %178 = tpu.matmul %176, %2, %cst_30 {dimension_numbers = #tpu.dot_dimension_numbers<[1], [0], [0], [1], [0, 0, 1, 1], [], []>} : vector<2x32xf32>, vector<32x96xf32>, vector<2x96xf32> -> vector<2x96xf32>
    %179 = vector.broadcast %4 : vector<1x96xf32> to vector<2x96xf32>
    %180 = arith.addf %178, %179 : vector<2x96xf32>
    %181 = vector.extract_strided_slice %177 {offsets = [0, 0], sizes = [2, 64], strides = [1, 1]} : vector<2x96xf32> to vector<2x64xf32>
    %182 = vector.extract_strided_slice %180 {offsets = [0, 0], sizes = [2, 64], strides = [1, 1]} : vector<2x96xf32> to vector<2x64xf32>
    %183 = arith.addf %181, %182 : vector<2x64xf32>
    %184 = arith.negf %183 : vector<2x64xf32>
    %185 = math.exp %184 : vector<2x64xf32>
    %cst_31 = arith.constant 1.000000e+00 : f32
    %186 = vector.broadcast %cst_31 : f32 to vector<2x64xf32>
    %187 = arith.addf %186, %185 : vector<2x64xf32>
    %188 = arith.divf %186, %187 : vector<2x64xf32>
    %189 = vector.extract_strided_slice %188 {offsets = [0, 0], sizes = [2, 32], strides = [1, 1]} : vector<2x64xf32> to vector<2x32xf32>
    %190 = vector.extract_strided_slice %188 {offsets = [0, 32], sizes = [2, 32], strides = [1, 1]} : vector<2x64xf32> to vector<2x32xf32>
    %191 = vector.extract_strided_slice %177 {offsets = [0, 64], sizes = [2, 32], strides = [1, 1]} : vector<2x96xf32> to vector<2x32xf32>
    %192 = vector.extract_strided_slice %180 {offsets = [0, 64], sizes = [2, 32], strides = [1, 1]} : vector<2x96xf32> to vector<2x32xf32>
    %193 = arith.mulf %189, %192 : vector<2x32xf32>
    %194 = arith.addf %191, %193 : vector<2x32xf32>
    %195 = math.tanh %194 : vector<2x32xf32>
    %cst_32 = arith.constant 1.000000e+00 : f32
    %196 = vector.broadcast %cst_32 : f32 to vector<2x32xf32>
    %197 = arith.subf %196, %190 : vector<2x32xf32>
    %198 = arith.mulf %197, %195 : vector<2x32xf32>
    %199 = arith.mulf %190, %176 : vector<2x32xf32>
    %200 = arith.addf %198, %199 : vector<2x32xf32>
    %201 = vector.extract_strided_slice %31 {offsets = [14, 0], sizes = [2, 96], strides = [1, 1]} : vector<16x96xf32> to vector<2x96xf32>
    %cst_33 = arith.constant dense<0.000000e+00> : vector<2x96xf32>
    %202 = tpu.matmul %200, %2, %cst_33 {dimension_numbers = #tpu.dot_dimension_numbers<[1], [0], [0], [1], [0, 0, 1, 1], [], []>} : vector<2x32xf32>, vector<32x96xf32>, vector<2x96xf32> -> vector<2x96xf32>
    %203 = vector.broadcast %4 : vector<1x96xf32> to vector<2x96xf32>
    %204 = arith.addf %202, %203 : vector<2x96xf32>
    %205 = vector.extract_strided_slice %201 {offsets = [0, 0], sizes = [2, 64], strides = [1, 1]} : vector<2x96xf32> to vector<2x64xf32>
    %206 = vector.extract_strided_slice %204 {offsets = [0, 0], sizes = [2, 64], strides = [1, 1]} : vector<2x96xf32> to vector<2x64xf32>
    %207 = arith.addf %205, %206 : vector<2x64xf32>
    %208 = arith.negf %207 : vector<2x64xf32>
    %209 = math.exp %208 : vector<2x64xf32>
    %cst_34 = arith.constant 1.000000e+00 : f32
    %210 = vector.broadcast %cst_34 : f32 to vector<2x64xf32>
    %211 = arith.addf %210, %209 : vector<2x64xf32>
    %212 = arith.divf %210, %211 : vector<2x64xf32>
    %213 = vector.extract_strided_slice %212 {offsets = [0, 0], sizes = [2, 32], strides = [1, 1]} : vector<2x64xf32> to vector<2x32xf32>
    %214 = vector.extract_strided_slice %212 {offsets = [0, 32], sizes = [2, 32], strides = [1, 1]} : vector<2x64xf32> to vector<2x32xf32>
    %215 = vector.extract_strided_slice %201 {offsets = [0, 64], sizes = [2, 32], strides = [1, 1]} : vector<2x96xf32> to vector<2x32xf32>
    %216 = vector.extract_strided_slice %204 {offsets = [0, 64], sizes = [2, 32], strides = [1, 1]} : vector<2x96xf32> to vector<2x32xf32>
    %217 = arith.mulf %213, %216 : vector<2x32xf32>
    %218 = arith.addf %215, %217 : vector<2x32xf32>
    %219 = math.tanh %218 : vector<2x32xf32>
    %cst_35 = arith.constant 1.000000e+00 : f32
    %220 = vector.broadcast %cst_35 : f32 to vector<2x32xf32>
    %221 = arith.subf %220, %214 : vector<2x32xf32>
    %222 = arith.mulf %221, %219 : vector<2x32xf32>
    %223 = arith.mulf %214, %200 : vector<2x32xf32>
    %224 = arith.addf %222, %223 : vector<2x32xf32>
    %225 = tpu.concatenate %56, %80, %104, %128, %152, %176, %200, %224 in 0 : vector<2x32xf32>, vector<2x32xf32>, vector<2x32xf32>, vector<2x32xf32>, vector<2x32xf32>, vector<2x32xf32>, vector<2x32xf32>, vector<2x32xf32> -> vector<16x32xf32>
    %c0_36 = arith.constant 0 : index
    %c0_37 = arith.constant 0 : index
    %226 = vector.load %arg6[%c0_36, %c0_37] : memref<32x96xf32, #tpu.memory_space<vmem>>, vector<32x96xf32>
    %c0_38 = arith.constant 0 : index
    %c0_39 = arith.constant 0 : index
    %227 = vector.load %arg7[%c0_38, %c0_39] : memref<32x96xf32, #tpu.memory_space<vmem>>, vector<32x96xf32>
    %c0_40 = arith.constant 0 : index
    %c0_41 = arith.constant 0 : index
    %228 = vector.load %arg8[%c0_40, %c0_41] : memref<1x96xf32, #tpu.memory_space<vmem>>, vector<1x96xf32>
    %c0_42 = arith.constant 0 : index
    %c0_43 = arith.constant 0 : index
    %229 = vector.load %arg9[%c0_42, %c0_43] : memref<1x96xf32, #tpu.memory_space<vmem>>, vector<1x96xf32>
    %cst_44 = arith.constant dense<0.000000e+00> : vector<16x96xf32>
    %230 = tpu.matmul %225, %226, %cst_44 {dimension_numbers = #tpu.dot_dimension_numbers<[1], [0], [0], [1], [0, 0, 1, 1], [], []>} : vector<16x32xf32>, vector<32x96xf32>, vector<16x96xf32> -> vector<16x96xf32>
    %231 = vector.broadcast %228 : vector<1x96xf32> to vector<16x96xf32>
    %232 = arith.addf %230, %231 : vector<16x96xf32>
    %cst_45 = arith.constant 0.000000e+00 : f32
    %233 = vector.broadcast %cst_45 : f32 to vector<2x32xf32>
    %234 = vector.extract_strided_slice %232 {offsets = [0, 0], sizes = [2, 96], strides = [1, 1]} : vector<16x96xf32> to vector<2x96xf32>
    %cst_46 = arith.constant dense<0.000000e+00> : vector<2x96xf32>
    %235 = tpu.matmul %233, %227, %cst_46 {dimension_numbers = #tpu.dot_dimension_numbers<[1], [0], [0], [1], [0, 0, 1, 1], [], []>} : vector<2x32xf32>, vector<32x96xf32>, vector<2x96xf32> -> vector<2x96xf32>
    %236 = vector.broadcast %229 : vector<1x96xf32> to vector<2x96xf32>
    %237 = arith.addf %235, %236 : vector<2x96xf32>
    %238 = vector.extract_strided_slice %234 {offsets = [0, 0], sizes = [2, 64], strides = [1, 1]} : vector<2x96xf32> to vector<2x64xf32>
    %239 = vector.extract_strided_slice %237 {offsets = [0, 0], sizes = [2, 64], strides = [1, 1]} : vector<2x96xf32> to vector<2x64xf32>
    %240 = arith.addf %238, %239 : vector<2x64xf32>
    %241 = arith.negf %240 : vector<2x64xf32>
    %242 = math.exp %241 : vector<2x64xf32>
    %cst_47 = arith.constant 1.000000e+00 : f32
    %243 = vector.broadcast %cst_47 : f32 to vector<2x64xf32>
    %244 = arith.addf %243, %242 : vector<2x64xf32>
    %245 = arith.divf %243, %244 : vector<2x64xf32>
    %246 = vector.extract_strided_slice %245 {offsets = [0, 0], sizes = [2, 32], strides = [1, 1]} : vector<2x64xf32> to vector<2x32xf32>
    %247 = vector.extract_strided_slice %245 {offsets = [0, 32], sizes = [2, 32], strides = [1, 1]} : vector<2x64xf32> to vector<2x32xf32>
    %248 = vector.extract_strided_slice %234 {offsets = [0, 64], sizes = [2, 32], strides = [1, 1]} : vector<2x96xf32> to vector<2x32xf32>
    %249 = vector.extract_strided_slice %237 {offsets = [0, 64], sizes = [2, 32], strides = [1, 1]} : vector<2x96xf32> to vector<2x32xf32>
    %250 = arith.mulf %246, %249 : vector<2x32xf32>
    %251 = arith.addf %248, %250 : vector<2x32xf32>
    %252 = math.tanh %251 : vector<2x32xf32>
    %cst_48 = arith.constant 1.000000e+00 : f32
    %253 = vector.broadcast %cst_48 : f32 to vector<2x32xf32>
    %254 = arith.subf %253, %247 : vector<2x32xf32>
    %255 = arith.mulf %254, %252 : vector<2x32xf32>
    %256 = arith.mulf %247, %233 : vector<2x32xf32>
    %257 = arith.addf %255, %256 : vector<2x32xf32>
    %258 = vector.extract_strided_slice %232 {offsets = [2, 0], sizes = [2, 96], strides = [1, 1]} : vector<16x96xf32> to vector<2x96xf32>
    %cst_49 = arith.constant dense<0.000000e+00> : vector<2x96xf32>
    %259 = tpu.matmul %257, %227, %cst_49 {dimension_numbers = #tpu.dot_dimension_numbers<[1], [0], [0], [1], [0, 0, 1, 1], [], []>} : vector<2x32xf32>, vector<32x96xf32>, vector<2x96xf32> -> vector<2x96xf32>
    %260 = vector.broadcast %229 : vector<1x96xf32> to vector<2x96xf32>
    %261 = arith.addf %259, %260 : vector<2x96xf32>
    %262 = vector.extract_strided_slice %258 {offsets = [0, 0], sizes = [2, 64], strides = [1, 1]} : vector<2x96xf32> to vector<2x64xf32>
    %263 = vector.extract_strided_slice %261 {offsets = [0, 0], sizes = [2, 64], strides = [1, 1]} : vector<2x96xf32> to vector<2x64xf32>
    %264 = arith.addf %262, %263 : vector<2x64xf32>
    %265 = arith.negf %264 : vector<2x64xf32>
    %266 = math.exp %265 : vector<2x64xf32>
    %cst_50 = arith.constant 1.000000e+00 : f32
    %267 = vector.broadcast %cst_50 : f32 to vector<2x64xf32>
    %268 = arith.addf %267, %266 : vector<2x64xf32>
    %269 = arith.divf %267, %268 : vector<2x64xf32>
    %270 = vector.extract_strided_slice %269 {offsets = [0, 0], sizes = [2, 32], strides = [1, 1]} : vector<2x64xf32> to vector<2x32xf32>
    %271 = vector.extract_strided_slice %269 {offsets = [0, 32], sizes = [2, 32], strides = [1, 1]} : vector<2x64xf32> to vector<2x32xf32>
    %272 = vector.extract_strided_slice %258 {offsets = [0, 64], sizes = [2, 32], strides = [1, 1]} : vector<2x96xf32> to vector<2x32xf32>
    %273 = vector.extract_strided_slice %261 {offsets = [0, 64], sizes = [2, 32], strides = [1, 1]} : vector<2x96xf32> to vector<2x32xf32>
    %274 = arith.mulf %270, %273 : vector<2x32xf32>
    %275 = arith.addf %272, %274 : vector<2x32xf32>
    %276 = math.tanh %275 : vector<2x32xf32>
    %cst_51 = arith.constant 1.000000e+00 : f32
    %277 = vector.broadcast %cst_51 : f32 to vector<2x32xf32>
    %278 = arith.subf %277, %271 : vector<2x32xf32>
    %279 = arith.mulf %278, %276 : vector<2x32xf32>
    %280 = arith.mulf %271, %257 : vector<2x32xf32>
    %281 = arith.addf %279, %280 : vector<2x32xf32>
    %282 = vector.extract_strided_slice %232 {offsets = [4, 0], sizes = [2, 96], strides = [1, 1]} : vector<16x96xf32> to vector<2x96xf32>
    %cst_52 = arith.constant dense<0.000000e+00> : vector<2x96xf32>
    %283 = tpu.matmul %281, %227, %cst_52 {dimension_numbers = #tpu.dot_dimension_numbers<[1], [0], [0], [1], [0, 0, 1, 1], [], []>} : vector<2x32xf32>, vector<32x96xf32>, vector<2x96xf32> -> vector<2x96xf32>
    %284 = vector.broadcast %229 : vector<1x96xf32> to vector<2x96xf32>
    %285 = arith.addf %283, %284 : vector<2x96xf32>
    %286 = vector.extract_strided_slice %282 {offsets = [0, 0], sizes = [2, 64], strides = [1, 1]} : vector<2x96xf32> to vector<2x64xf32>
    %287 = vector.extract_strided_slice %285 {offsets = [0, 0], sizes = [2, 64], strides = [1, 1]} : vector<2x96xf32> to vector<2x64xf32>
    %288 = arith.addf %286, %287 : vector<2x64xf32>
    %289 = arith.negf %288 : vector<2x64xf32>
    %290 = math.exp %289 : vector<2x64xf32>
    %cst_53 = arith.constant 1.000000e+00 : f32
    %291 = vector.broadcast %cst_53 : f32 to vector<2x64xf32>
    %292 = arith.addf %291, %290 : vector<2x64xf32>
    %293 = arith.divf %291, %292 : vector<2x64xf32>
    %294 = vector.extract_strided_slice %293 {offsets = [0, 0], sizes = [2, 32], strides = [1, 1]} : vector<2x64xf32> to vector<2x32xf32>
    %295 = vector.extract_strided_slice %293 {offsets = [0, 32], sizes = [2, 32], strides = [1, 1]} : vector<2x64xf32> to vector<2x32xf32>
    %296 = vector.extract_strided_slice %282 {offsets = [0, 64], sizes = [2, 32], strides = [1, 1]} : vector<2x96xf32> to vector<2x32xf32>
    %297 = vector.extract_strided_slice %285 {offsets = [0, 64], sizes = [2, 32], strides = [1, 1]} : vector<2x96xf32> to vector<2x32xf32>
    %298 = arith.mulf %294, %297 : vector<2x32xf32>
    %299 = arith.addf %296, %298 : vector<2x32xf32>
    %300 = math.tanh %299 : vector<2x32xf32>
    %cst_54 = arith.constant 1.000000e+00 : f32
    %301 = vector.broadcast %cst_54 : f32 to vector<2x32xf32>
    %302 = arith.subf %301, %295 : vector<2x32xf32>
    %303 = arith.mulf %302, %300 : vector<2x32xf32>
    %304 = arith.mulf %295, %281 : vector<2x32xf32>
    %305 = arith.addf %303, %304 : vector<2x32xf32>
    %306 = vector.extract_strided_slice %232 {offsets = [6, 0], sizes = [2, 96], strides = [1, 1]} : vector<16x96xf32> to vector<2x96xf32>
    %cst_55 = arith.constant dense<0.000000e+00> : vector<2x96xf32>
    %307 = tpu.matmul %305, %227, %cst_55 {dimension_numbers = #tpu.dot_dimension_numbers<[1], [0], [0], [1], [0, 0, 1, 1], [], []>} : vector<2x32xf32>, vector<32x96xf32>, vector<2x96xf32> -> vector<2x96xf32>
    %308 = vector.broadcast %229 : vector<1x96xf32> to vector<2x96xf32>
    %309 = arith.addf %307, %308 : vector<2x96xf32>
    %310 = vector.extract_strided_slice %306 {offsets = [0, 0], sizes = [2, 64], strides = [1, 1]} : vector<2x96xf32> to vector<2x64xf32>
    %311 = vector.extract_strided_slice %309 {offsets = [0, 0], sizes = [2, 64], strides = [1, 1]} : vector<2x96xf32> to vector<2x64xf32>
    %312 = arith.addf %310, %311 : vector<2x64xf32>
    %313 = arith.negf %312 : vector<2x64xf32>
    %314 = math.exp %313 : vector<2x64xf32>
    %cst_56 = arith.constant 1.000000e+00 : f32
    %315 = vector.broadcast %cst_56 : f32 to vector<2x64xf32>
    %316 = arith.addf %315, %314 : vector<2x64xf32>
    %317 = arith.divf %315, %316 : vector<2x64xf32>
    %318 = vector.extract_strided_slice %317 {offsets = [0, 0], sizes = [2, 32], strides = [1, 1]} : vector<2x64xf32> to vector<2x32xf32>
    %319 = vector.extract_strided_slice %317 {offsets = [0, 32], sizes = [2, 32], strides = [1, 1]} : vector<2x64xf32> to vector<2x32xf32>
    %320 = vector.extract_strided_slice %306 {offsets = [0, 64], sizes = [2, 32], strides = [1, 1]} : vector<2x96xf32> to vector<2x32xf32>
    %321 = vector.extract_strided_slice %309 {offsets = [0, 64], sizes = [2, 32], strides = [1, 1]} : vector<2x96xf32> to vector<2x32xf32>
    %322 = arith.mulf %318, %321 : vector<2x32xf32>
    %323 = arith.addf %320, %322 : vector<2x32xf32>
    %324 = math.tanh %323 : vector<2x32xf32>
    %cst_57 = arith.constant 1.000000e+00 : f32
    %325 = vector.broadcast %cst_57 : f32 to vector<2x32xf32>
    %326 = arith.subf %325, %319 : vector<2x32xf32>
    %327 = arith.mulf %326, %324 : vector<2x32xf32>
    %328 = arith.mulf %319, %305 : vector<2x32xf32>
    %329 = arith.addf %327, %328 : vector<2x32xf32>
    %330 = vector.extract_strided_slice %232 {offsets = [8, 0], sizes = [2, 96], strides = [1, 1]} : vector<16x96xf32> to vector<2x96xf32>
    %cst_58 = arith.constant dense<0.000000e+00> : vector<2x96xf32>
    %331 = tpu.matmul %329, %227, %cst_58 {dimension_numbers = #tpu.dot_dimension_numbers<[1], [0], [0], [1], [0, 0, 1, 1], [], []>} : vector<2x32xf32>, vector<32x96xf32>, vector<2x96xf32> -> vector<2x96xf32>
    %332 = vector.broadcast %229 : vector<1x96xf32> to vector<2x96xf32>
    %333 = arith.addf %331, %332 : vector<2x96xf32>
    %334 = vector.extract_strided_slice %330 {offsets = [0, 0], sizes = [2, 64], strides = [1, 1]} : vector<2x96xf32> to vector<2x64xf32>
    %335 = vector.extract_strided_slice %333 {offsets = [0, 0], sizes = [2, 64], strides = [1, 1]} : vector<2x96xf32> to vector<2x64xf32>
    %336 = arith.addf %334, %335 : vector<2x64xf32>
    %337 = arith.negf %336 : vector<2x64xf32>
    %338 = math.exp %337 : vector<2x64xf32>
    %cst_59 = arith.constant 1.000000e+00 : f32
    %339 = vector.broadcast %cst_59 : f32 to vector<2x64xf32>
    %340 = arith.addf %339, %338 : vector<2x64xf32>
    %341 = arith.divf %339, %340 : vector<2x64xf32>
    %342 = vector.extract_strided_slice %341 {offsets = [0, 0], sizes = [2, 32], strides = [1, 1]} : vector<2x64xf32> to vector<2x32xf32>
    %343 = vector.extract_strided_slice %341 {offsets = [0, 32], sizes = [2, 32], strides = [1, 1]} : vector<2x64xf32> to vector<2x32xf32>
    %344 = vector.extract_strided_slice %330 {offsets = [0, 64], sizes = [2, 32], strides = [1, 1]} : vector<2x96xf32> to vector<2x32xf32>
    %345 = vector.extract_strided_slice %333 {offsets = [0, 64], sizes = [2, 32], strides = [1, 1]} : vector<2x96xf32> to vector<2x32xf32>
    %346 = arith.mulf %342, %345 : vector<2x32xf32>
    %347 = arith.addf %344, %346 : vector<2x32xf32>
    %348 = math.tanh %347 : vector<2x32xf32>
    %cst_60 = arith.constant 1.000000e+00 : f32
    %349 = vector.broadcast %cst_60 : f32 to vector<2x32xf32>
    %350 = arith.subf %349, %343 : vector<2x32xf32>
    %351 = arith.mulf %350, %348 : vector<2x32xf32>
    %352 = arith.mulf %343, %329 : vector<2x32xf32>
    %353 = arith.addf %351, %352 : vector<2x32xf32>
    %354 = vector.extract_strided_slice %232 {offsets = [10, 0], sizes = [2, 96], strides = [1, 1]} : vector<16x96xf32> to vector<2x96xf32>
    %cst_61 = arith.constant dense<0.000000e+00> : vector<2x96xf32>
    %355 = tpu.matmul %353, %227, %cst_61 {dimension_numbers = #tpu.dot_dimension_numbers<[1], [0], [0], [1], [0, 0, 1, 1], [], []>} : vector<2x32xf32>, vector<32x96xf32>, vector<2x96xf32> -> vector<2x96xf32>
    %356 = vector.broadcast %229 : vector<1x96xf32> to vector<2x96xf32>
    %357 = arith.addf %355, %356 : vector<2x96xf32>
    %358 = vector.extract_strided_slice %354 {offsets = [0, 0], sizes = [2, 64], strides = [1, 1]} : vector<2x96xf32> to vector<2x64xf32>
    %359 = vector.extract_strided_slice %357 {offsets = [0, 0], sizes = [2, 64], strides = [1, 1]} : vector<2x96xf32> to vector<2x64xf32>
    %360 = arith.addf %358, %359 : vector<2x64xf32>
    %361 = arith.negf %360 : vector<2x64xf32>
    %362 = math.exp %361 : vector<2x64xf32>
    %cst_62 = arith.constant 1.000000e+00 : f32
    %363 = vector.broadcast %cst_62 : f32 to vector<2x64xf32>
    %364 = arith.addf %363, %362 : vector<2x64xf32>
    %365 = arith.divf %363, %364 : vector<2x64xf32>
    %366 = vector.extract_strided_slice %365 {offsets = [0, 0], sizes = [2, 32], strides = [1, 1]} : vector<2x64xf32> to vector<2x32xf32>
    %367 = vector.extract_strided_slice %365 {offsets = [0, 32], sizes = [2, 32], strides = [1, 1]} : vector<2x64xf32> to vector<2x32xf32>
    %368 = vector.extract_strided_slice %354 {offsets = [0, 64], sizes = [2, 32], strides = [1, 1]} : vector<2x96xf32> to vector<2x32xf32>
    %369 = vector.extract_strided_slice %357 {offsets = [0, 64], sizes = [2, 32], strides = [1, 1]} : vector<2x96xf32> to vector<2x32xf32>
    %370 = arith.mulf %366, %369 : vector<2x32xf32>
    %371 = arith.addf %368, %370 : vector<2x32xf32>
    %372 = math.tanh %371 : vector<2x32xf32>
    %cst_63 = arith.constant 1.000000e+00 : f32
    %373 = vector.broadcast %cst_63 : f32 to vector<2x32xf32>
    %374 = arith.subf %373, %367 : vector<2x32xf32>
    %375 = arith.mulf %374, %372 : vector<2x32xf32>
    %376 = arith.mulf %367, %353 : vector<2x32xf32>
    %377 = arith.addf %375, %376 : vector<2x32xf32>
    %378 = vector.extract_strided_slice %232 {offsets = [12, 0], sizes = [2, 96], strides = [1, 1]} : vector<16x96xf32> to vector<2x96xf32>
    %cst_64 = arith.constant dense<0.000000e+00> : vector<2x96xf32>
    %379 = tpu.matmul %377, %227, %cst_64 {dimension_numbers = #tpu.dot_dimension_numbers<[1], [0], [0], [1], [0, 0, 1, 1], [], []>} : vector<2x32xf32>, vector<32x96xf32>, vector<2x96xf32> -> vector<2x96xf32>
    %380 = vector.broadcast %229 : vector<1x96xf32> to vector<2x96xf32>
    %381 = arith.addf %379, %380 : vector<2x96xf32>
    %382 = vector.extract_strided_slice %378 {offsets = [0, 0], sizes = [2, 64], strides = [1, 1]} : vector<2x96xf32> to vector<2x64xf32>
    %383 = vector.extract_strided_slice %381 {offsets = [0, 0], sizes = [2, 64], strides = [1, 1]} : vector<2x96xf32> to vector<2x64xf32>
    %384 = arith.addf %382, %383 : vector<2x64xf32>
    %385 = arith.negf %384 : vector<2x64xf32>
    %386 = math.exp %385 : vector<2x64xf32>
    %cst_65 = arith.constant 1.000000e+00 : f32
    %387 = vector.broadcast %cst_65 : f32 to vector<2x64xf32>
    %388 = arith.addf %387, %386 : vector<2x64xf32>
    %389 = arith.divf %387, %388 : vector<2x64xf32>
    %390 = vector.extract_strided_slice %389 {offsets = [0, 0], sizes = [2, 32], strides = [1, 1]} : vector<2x64xf32> to vector<2x32xf32>
    %391 = vector.extract_strided_slice %389 {offsets = [0, 32], sizes = [2, 32], strides = [1, 1]} : vector<2x64xf32> to vector<2x32xf32>
    %392 = vector.extract_strided_slice %378 {offsets = [0, 64], sizes = [2, 32], strides = [1, 1]} : vector<2x96xf32> to vector<2x32xf32>
    %393 = vector.extract_strided_slice %381 {offsets = [0, 64], sizes = [2, 32], strides = [1, 1]} : vector<2x96xf32> to vector<2x32xf32>
    %394 = arith.mulf %390, %393 : vector<2x32xf32>
    %395 = arith.addf %392, %394 : vector<2x32xf32>
    %396 = math.tanh %395 : vector<2x32xf32>
    %cst_66 = arith.constant 1.000000e+00 : f32
    %397 = vector.broadcast %cst_66 : f32 to vector<2x32xf32>
    %398 = arith.subf %397, %391 : vector<2x32xf32>
    %399 = arith.mulf %398, %396 : vector<2x32xf32>
    %400 = arith.mulf %391, %377 : vector<2x32xf32>
    %401 = arith.addf %399, %400 : vector<2x32xf32>
    %402 = vector.extract_strided_slice %232 {offsets = [14, 0], sizes = [2, 96], strides = [1, 1]} : vector<16x96xf32> to vector<2x96xf32>
    %cst_67 = arith.constant dense<0.000000e+00> : vector<2x96xf32>
    %403 = tpu.matmul %401, %227, %cst_67 {dimension_numbers = #tpu.dot_dimension_numbers<[1], [0], [0], [1], [0, 0, 1, 1], [], []>} : vector<2x32xf32>, vector<32x96xf32>, vector<2x96xf32> -> vector<2x96xf32>
    %404 = vector.broadcast %229 : vector<1x96xf32> to vector<2x96xf32>
    %405 = arith.addf %403, %404 : vector<2x96xf32>
    %406 = vector.extract_strided_slice %402 {offsets = [0, 0], sizes = [2, 64], strides = [1, 1]} : vector<2x96xf32> to vector<2x64xf32>
    %407 = vector.extract_strided_slice %405 {offsets = [0, 0], sizes = [2, 64], strides = [1, 1]} : vector<2x96xf32> to vector<2x64xf32>
    %408 = arith.addf %406, %407 : vector<2x64xf32>
    %409 = arith.negf %408 : vector<2x64xf32>
    %410 = math.exp %409 : vector<2x64xf32>
    %cst_68 = arith.constant 1.000000e+00 : f32
    %411 = vector.broadcast %cst_68 : f32 to vector<2x64xf32>
    %412 = arith.addf %411, %410 : vector<2x64xf32>
    %413 = arith.divf %411, %412 : vector<2x64xf32>
    %414 = vector.extract_strided_slice %413 {offsets = [0, 0], sizes = [2, 32], strides = [1, 1]} : vector<2x64xf32> to vector<2x32xf32>
    %415 = vector.extract_strided_slice %413 {offsets = [0, 32], sizes = [2, 32], strides = [1, 1]} : vector<2x64xf32> to vector<2x32xf32>
    %416 = vector.extract_strided_slice %402 {offsets = [0, 64], sizes = [2, 32], strides = [1, 1]} : vector<2x96xf32> to vector<2x32xf32>
    %417 = vector.extract_strided_slice %405 {offsets = [0, 64], sizes = [2, 32], strides = [1, 1]} : vector<2x96xf32> to vector<2x32xf32>
    %418 = arith.mulf %414, %417 : vector<2x32xf32>
    %419 = arith.addf %416, %418 : vector<2x32xf32>
    %420 = math.tanh %419 : vector<2x32xf32>
    %cst_69 = arith.constant 1.000000e+00 : f32
    %421 = vector.broadcast %cst_69 : f32 to vector<2x32xf32>
    %422 = arith.subf %421, %415 : vector<2x32xf32>
    %423 = arith.mulf %422, %420 : vector<2x32xf32>
    %424 = arith.mulf %415, %401 : vector<2x32xf32>
    %425 = arith.addf %423, %424 : vector<2x32xf32>
    %c0_70 = arith.constant 0 : index
    %c0_71 = arith.constant 0 : index
    %426 = vector.load %arg10[%c0_70, %c0_71] : memref<32x128xf32, #tpu.memory_space<vmem>>, vector<32x128xf32>
    %cst_72 = arith.constant dense<0.000000e+00> : vector<2x128xf32>
    %427 = tpu.matmul %425, %426, %cst_72 {dimension_numbers = #tpu.dot_dimension_numbers<[1], [0], [0], [1], [0, 0, 1, 1], [], []>} : vector<2x32xf32>, vector<32x128xf32>, vector<2x128xf32> -> vector<2x128xf32>
    %c0_73 = arith.constant 0 : index
    %c0_74 = arith.constant 0 : index
    %428 = vector.load %arg11[%c0_73, %c0_74] : memref<1x128xf32, #tpu.memory_space<vmem>>, vector<1x128xf32>
    %429 = vector.broadcast %428 : vector<1x128xf32> to vector<2x128xf32>
    %430 = arith.addf %427, %429 : vector<2x128xf32>
    %cst_75 = arith.constant 0.000000e+00 : f32
    %431 = vector.broadcast %cst_75 : f32 to vector<2x128xf32>
    %432 = arith.maximumf %430, %431 : vector<2x128xf32>
    %c0_76 = arith.constant 0 : index
    %c0_77 = arith.constant 0 : index
    %433 = vector.load %arg12[%c0_76, %c0_77] : memref<128x64xf32, #tpu.memory_space<vmem>>, vector<128x64xf32>
    %cst_78 = arith.constant dense<0.000000e+00> : vector<2x64xf32>
    %434 = tpu.matmul %432, %433, %cst_78 {dimension_numbers = #tpu.dot_dimension_numbers<[1], [0], [0], [1], [0, 0, 1, 1], [], []>} : vector<2x128xf32>, vector<128x64xf32>, vector<2x64xf32> -> vector<2x64xf32>
    %c0_79 = arith.constant 0 : index
    %c0_80 = arith.constant 0 : index
    %435 = vector.load %arg13[%c0_79, %c0_80] : memref<1x64xf32, #tpu.memory_space<vmem>>, vector<1x64xf32>
    %436 = vector.broadcast %435 : vector<1x64xf32> to vector<2x64xf32>
    %437 = arith.addf %434, %436 : vector<2x64xf32>
    %cst_81 = arith.constant 0.000000e+00 : f32
    %438 = vector.broadcast %cst_81 : f32 to vector<2x64xf32>
    %439 = arith.maximumf %437, %438 : vector<2x64xf32>
    %c0_82 = arith.constant 0 : index
    %c0_83 = arith.constant 0 : index
    %440 = vector.load %arg14[%c0_82, %c0_83] : memref<64x4xf32, #tpu.memory_space<vmem>>, vector<64x4xf32>
    %cst_84 = arith.constant dense<0.000000e+00> : vector<2x4xf32>
    %441 = tpu.matmul %439, %440, %cst_84 {dimension_numbers = #tpu.dot_dimension_numbers<[1], [0], [0], [1], [0, 0, 1, 1], [], []>} : vector<2x64xf32>, vector<64x4xf32>, vector<2x4xf32> -> vector<2x4xf32>
    %c0_85 = arith.constant 0 : index
    %c0_86 = arith.constant 0 : index
    %442 = vector.load %arg15[%c0_85, %c0_86] : memref<1x4xf32, #tpu.memory_space<vmem>>, vector<1x4xf32>
    %443 = vector.broadcast %442 : vector<1x4xf32> to vector<2x4xf32>
    %444 = arith.addf %441, %443 : vector<2x4xf32>
    %c0_87 = arith.constant 0 : index
    %c0_88 = arith.constant 0 : index
    %445 = vector.load %arg16[%c0_87, %c0_88] : memref<2x4xf32, #tpu.memory_space<vmem>>, vector<2x4xf32>
    tpu.vector_store %arg16[%c0_87, %c0_88], %444 {strides = array<i32>} : memref<2x4xf32, #tpu.memory_space<vmem>>, vector<2x4xf32>,
    return
  }
  func.func @transform_0(%arg0: i32) -> (i32, i32, i32) {
    %c0_i32 = arith.constant 0 : i32
    %c0_i32_0 = arith.constant 0 : i32
    %c0_i32_1 = arith.constant 0 : i32
    %c0_i32_2 = arith.constant 0 : i32
    return %c0_i32, %c0_i32_0, %c0_i32_1 : i32, i32, i32
  }
  func.func @transform_1(%arg0: i32) -> (i32, i32) {
    %c0_i32 = arith.constant 0 : i32
    %c0_i32_0 = arith.constant 0 : i32
    %c0_i32_1 = arith.constant 0 : i32
    return %c0_i32, %c0_i32_0 : i32, i32
  }
  func.func @transform_2(%arg0: i32) -> (i32, i32) {
    %c0_i32 = arith.constant 0 : i32
    %c0_i32_0 = arith.constant 0 : i32
    %c0_i32_1 = arith.constant 0 : i32
    return %c0_i32, %c0_i32_0 : i32, i32
  }
  func.func @transform_3(%arg0: i32) -> (i32, i32) {
    %c0_i32 = arith.constant 0 : i32
    %c0_i32_0 = arith.constant 0 : i32
    %c0_i32_1 = arith.constant 0 : i32
    return %c0_i32, %c0_i32_0 : i32, i32
  }
  func.func @transform_4(%arg0: i32) -> (i32, i32) {
    %c0_i32 = arith.constant 0 : i32
    %c0_i32_0 = arith.constant 0 : i32
    %c0_i32_1 = arith.constant 0 : i32
    return %c0_i32, %c0_i32_0 : i32, i32
  }
  func.func @transform_5(%arg0: i32) -> (i32, i32) {
    %c0_i32 = arith.constant 0 : i32
    %c0_i32_0 = arith.constant 0 : i32
    %c0_i32_1 = arith.constant 0 : i32
    return %c0_i32, %c0_i32_0 : i32, i32
  }
  func.func @transform_6(%arg0: i32) -> (i32, i32) {
    %c0_i32 = arith.constant 0 : i32
    %c0_i32_0 = arith.constant 0 : i32
    %c0_i32_1 = arith.constant 0 : i32
    return %c0_i32, %c0_i32_0 : i32, i32
  }
  func.func @transform_7(%arg0: i32) -> (i32, i32) {
    %c0_i32 = arith.constant 0 : i32
    %c0_i32_0 = arith.constant 0 : i32
    %c0_i32_1 = arith.constant 0 : i32
    return %c0_i32, %c0_i32_0 : i32, i32
  }
  func.func @transform_8(%arg0: i32) -> (i32, i32) {
    %c0_i32 = arith.constant 0 : i32
    %c0_i32_0 = arith.constant 0 : i32
    %c0_i32_1 = arith.constant 0 : i32
    return %c0_i32, %c0_i32_0 : i32, i32
  }
  func.func @transform_9(%arg0: i32) -> (i32, i32) {
    %c0_i32 = arith.constant 0 : i32
    %c0_i32_0 = arith.constant 0 : i32
    %c0_i32_1 = arith.constant 0 : i32
    return %c0_i32, %c0_i32_0 : i32, i32
  }
  func.func @transform_10(%arg0: i32) -> (i32, i32) {
    %c0_i32 = arith.constant 0 : i32
    %c0_i32_0 = arith.constant 0 : i32
    %c0_i32_1 = arith.constant 0 : i32
    return %c0_i32, %c0_i32_0 : i32, i32
  }
  func.func @transform_11(%arg0: i32) -> (i32, i32) {
    %c0_i32 = arith.constant 0 : i32
    %c0_i32_0 = arith.constant 0 : i32
    %c0_i32_1 = arith.constant 0 : i32
    return %c0_i32, %c0_i32_0 : i32, i32
  }
  func.func @transform_12(%arg0: i32) -> (i32, i32) {
    %c0_i32 = arith.constant 0 : i32
    %c0_i32_0 = arith.constant 0 : i32
    %c0_i32_1 = arith.constant 0 : i32
    return %c0_i32, %c0_i32_0 : i32, i32
  }
  func.func @transform_13(%arg0: i32) -> (i32, i32) {
    %c0_i32 = arith.constant 0 : i32
    %c0_i32_0 = arith.constant 0 : i32
    %c0_i32_1 = arith.constant 0 : i32
    return %c0_i32, %c0_i32_0 : i32, i32
  }
  func.func @transform_14(%arg0: i32) -> (i32, i32) {
    %c0_i32 = arith.constant 0 : i32
    %c0_i32_0 = arith.constant 0 : i32
    %c0_i32_1 = arith.constant 0 : i32
    return %c0_i32, %c0_i32_0 : i32, i32
  }
  func.func @transform_15(%arg0: i32) -> (i32, i32) {
    %c0_i32 = arith.constant 0 : i32
    %c0_i32_0 = arith.constant 0 : i32
    %c0_i32_1 = arith.constant 0 : i32
    return %c0_i32, %c0_i32_0 : i32, i32
  }
}

</mosaic_0001>

<llo_original>
// kernel: tpu_custom_call.1
$region0: #{tpu_custom_call.1}
  #allocation0 [shape = 'u32[]', space=smem, size = 0x4, offset = 0x4, fixed_abs, tag = 'smem constant byte address 0x4 - core index']
  #allocation1 [shape = 'u32[144,128]{1,0:T(1,128)}', space=vmem, size = 0x12000, scoped, tag = 'internal scratch']
  %s0 = inlined_call_operand.vmem [shape: f32[2,8,16], index: 0, kind: input, shape index: {}]
  %s1 = inlined_call_operand.vmem [shape: f32[16,96], index: 1, kind: input, shape index: {}]
  %s2 = inlined_call_operand.vmem [shape: f32[32,96], index: 2, kind: input, shape index: {}]
  %s3 = inlined_call_operand.vmem [shape: f32[1,96], index: 3, kind: input, shape index: {}]
  %s4 = inlined_call_operand.vmem [shape: f32[1,96], index: 4, kind: input, shape index: {}]
  %s5 = inlined_call_operand.vmem [shape: f32[32,96], index: 5, kind: input, shape index: {}]
  %s6 = inlined_call_operand.vmem [shape: f32[32,96], index: 6, kind: input, shape index: {}]
  %s7 = inlined_call_operand.vmem [shape: f32[1,96], index: 7, kind: input, shape index: {}]
  %s8 = inlined_call_operand.vmem [shape: f32[1,96], index: 8, kind: input, shape index: {}]
  %s9 = inlined_call_operand.vmem [shape: f32[32,128], index: 9, kind: input, shape index: {}]
  %s10 = inlined_call_operand.vmem [shape: f32[1,128], index: 10, kind: input, shape index: {}]
  %s11 = inlined_call_operand.vmem [shape: f32[128,64], index: 11, kind: input, shape index: {}]
  %s12 = inlined_call_operand.vmem [shape: f32[1,64], index: 12, kind: input, shape index: {}]
  %s13 = inlined_call_operand.vmem [shape: f32[64,4], index: 13, kind: input, shape index: {}]
  %s14 = inlined_call_operand.vmem [shape: f32[1,4], index: 14, kind: input, shape index: {}]
  %s15 = inlined_call_operand.hbm [shape: f32[2,4], index: 15, kind: output, shape index: {}]
  %s16 = sld [smem:[#allocation0]]
  $region70: #{tpu_custom_call.1} parent=0
    _
  %s18 = ssub.s32 1, %s16
  %s19 = scalar_select 0, %s18, %s16
  $region1: #{tpu_custom_call.1} parent=0
    #allocation2 [shape = 'u8[1024]{0}', space=vmem, size = 0x400, scoped, tag = 'output window, operand 0, single buffered']
    #allocation3 [shape = 's32[1]{0}', space=sflag, size = 0x4, scoped, tag = 'scoped memory for tpu_custom_call.1']
    %20 = vsyncpa [#allocation3], 0
    // Predicated region
    $region2: #{tpu_custom_call.1} parent=1 // pred_check
      _
    $region3: #{tpu_custom_call.1} parent=1 // pred_check_branch
      %22 = sbr.rel (0) target = $region5
    $region4: #{tpu_custom_call.1} parent=1 // pred_region
      _
    $region5: #{tpu_custom_call.1} parent=1 // pred_fallthru
      _
    // Predicated region
    $region6: #{tpu_custom_call.1} parent=1 // pred_check
      _
    $region7: #{tpu_custom_call.1} parent=1 // pred_check_branch
      %24 = sbr.rel (0) target = $region9
    $region8: #{tpu_custom_call.1} parent=1 // pred_region
      _
    $region9: #{tpu_custom_call.1} parent=1 // pred_fallthru
      _
    // Predicated region
    $region10: #{tpu_custom_call.1} parent=1 // pred_check
      _
    $region11: #{tpu_custom_call.1} parent=1 // pred_check_branch
      %26 = sbr.rel (0) target = $region13
    $region12: #{tpu_custom_call.1} parent=1 // pred_region
      _
    $region13: #{tpu_custom_call.1} parent=1 // pred_fallthru
      _
    // Predicated region
    $region14: #{tpu_custom_call.1} parent=1 // pred_check
      _
    $region15: #{tpu_custom_call.1} parent=1 // pred_check_branch
      %28 = sbr.rel (0) target = $region17
    $region16: #{tpu_custom_call.1} parent=1 // pred_region
      _
    $region17: #{tpu_custom_call.1} parent=1 // pred_fallthru
      _
    // Predicated region
    $region18: #{tpu_custom_call.1} parent=1 // pred_check
      _
    $region19: #{tpu_custom_call.1} parent=1 // pred_check_branch
      %30 = sbr.rel (0) target = $region21
    $region20: #{tpu_custom_call.1} parent=1 // pred_region
      _
    $region21: #{tpu_custom_call.1} parent=1 // pred_fallthru
      _
    // Predicated region
    $region22: #{tpu_custom_call.1} parent=1 // pred_check
      _
    $region23: #{tpu_custom_call.1} parent=1 // pred_check_branch
      %32 = sbr.rel (0) target = $region25
    $region24: #{tpu_custom_call.1} parent=1 // pred_region
      _
    $region25: #{tpu_custom_call.1} parent=1 // pred_fallthru
      _
    // Predicated region
    $region26: #{tpu_custom_call.1} parent=1 // pred_check
      _
    $region27: #{tpu_custom_call.1} parent=1 // pred_check_branch
      %34 = sbr.rel (0) target = $region29
    $region28: #{tpu_custom_call.1} parent=1 // pred_region
      _
    $region29: #{tpu_custom_call.1} parent=1 // pred_fallthru
      _
    // Predicated region
    $region30: #{tpu_custom_call.1} parent=1 // pred_check
      _
    $region31: #{tpu_custom_call.1} parent=1 // pred_check_branch
      %36 = sbr.rel (0) target = $region33
    $region32: #{tpu_custom_call.1} parent=1 // pred_region
      _
    $region33: #{tpu_custom_call.1} parent=1 // pred_fallthru
      _
    // Predicated region
    $region34: #{tpu_custom_call.1} parent=1 // pred_check
      _
    $region35: #{tpu_custom_call.1} parent=1 // pred_check_branch
      %38 = sbr.rel (0) target = $region37
    $region36: #{tpu_custom_call.1} parent=1 // pred_region
      _
    $region37: #{tpu_custom_call.1} parent=1 // pred_fallthru
      _
    // Predicated region
    $region38: #{tpu_custom_call.1} parent=1 // pred_check
      _
    $region39: #{tpu_custom_call.1} parent=1 // pred_check_branch
      %40 = sbr.rel (0) target = $region41
    $region40: #{tpu_custom_call.1} parent=1 // pred_region
      _
    $region41: #{tpu_custom_call.1} parent=1 // pred_fallthru
      _
    // Predicated region
    $region42: #{tpu_custom_call.1} parent=1 // pred_check
      _
    $region43: #{tpu_custom_call.1} parent=1 // pred_check_branch
      %42 = sbr.rel (0) target = $region45
    $region44: #{tpu_custom_call.1} parent=1 // pred_region
      _
    $region45: #{tpu_custom_call.1} parent=1 // pred_fallthru
      _
    // Predicated region
    $region46: #{tpu_custom_call.1} parent=1 // pred_check
      _
    $region47: #{tpu_custom_call.1} parent=1 // pred_check_branch
      %44 = sbr.rel (0) target = $region49
    $region48: #{tpu_custom_call.1} parent=1 // pred_region
      _
    $region49: #{tpu_custom_call.1} parent=1 // pred_fallthru
      _
    // Predicated region
    $region50: #{tpu_custom_call.1} parent=1 // pred_check
      _
    $region51: #{tpu_custom_call.1} parent=1 // pred_check_branch
      %46 = sbr.rel (0) target = $region53
    $region52: #{tpu_custom_call.1} parent=1 // pred_region
      _
    $region53: #{tpu_custom_call.1} parent=1 // pred_fallthru
      _
    // Predicated region
    $region54: #{tpu_custom_call.1} parent=1 // pred_check
      _
    $region55: #{tpu_custom_call.1} parent=1 // pred_check_branch
      %48 = sbr.rel (0) target = $region57
    $region56: #{tpu_custom_call.1} parent=1 // pred_region
      _
    $region57: #{tpu_custom_call.1} parent=1 // pred_fallthru
      _
    // Predicated region
    $region58: #{tpu_custom_call.1} parent=1 // pred_check
      _
    $region59: #{tpu_custom_call.1} parent=1 // pred_check_branch
      %50 = sbr.rel (0) target = $region61
    $region60: #{tpu_custom_call.1} parent=1 // pred_region
      _
    $region61: #{tpu_custom_call.1} parent=1 // pred_fallthru
      _
    %v51 = vld [vmem:[%s0] sm:$0xff]
    %v52 = vld [vmem:[%s0 + $0x8] sm:$0xff]
    %v53 = vld [vmem:[%s1] sm:$0xff]
    %v54 = vld [vmem:[%s1 + $0x8] sm:$0xff]
    %v55 = vld [vmem:[%s2] sm:$0xff]
    %v56 = vld [vmem:[%s2 + $0x8] sm:$0xff]
    %v57 = vld [vmem:[%s2 + $0x10] sm:$0xff]
    %v58 = vld [vmem:[%s2 + $0x18] sm:$0xff]
    %v59 = vld [vmem:[%s3] sm:$0x1]
    %v60 = vld [vmem:[%s4] sm:$0x1]
    %v62 = vlaneseq
    %v63 = vshrl.u32 %v62, 7
    %v64 = vsub.s32 0, %v63
    %v65 = vrot.slane %v59, %v64
    %vm67 = vcmask 130048
    %v69 = vsel %vm67, %v51, 0
    %71 = vmatprep.subr.mxu0 0.0
    %72 = vmatpush1.msra.mxu0 0.0
    %73 = vmatprep.subr.mxu0 0.0
    %74 = vmatpush1.msra.mxu0 0.0
    %75 = vmatprep.subr.mxu0 0.0
    %76 = vmatpush1.msra.mxu0 0.0
    %77 = vmatprep.subr.mxu0 0.0
    %78 = vmatpush1.msra.mxu0 0.0
    %79 = vmatprep.subr.mxu0 0.0
    %80 = vmatpush1.msra.mxu0 0.0
    %81 = vmatprep.subr.mxu0 0.0
    %82 = vmatpush1.msra.mxu0 0.0
    %83 = vmatprep.subr.mxu0 0.0
    %84 = vmatpush1.msra.mxu0 0.0
    %85 = vmatprep.subr.mxu0 0.0
    %86 = vmatpush1.msra.mxu0 0.0
    %87 = vmatprep.subr.mxu0 0.0
    %88 = vmatpush1.msra.mxu0 0.0
    %89 = vmatprep.subr.mxu0 0.0
    %90 = vmatpush1.msra.mxu0 0.0
    %91 = vmatprep.subr.mxu0 0.0
    %92 = vmatpush1.msra.mxu0 0.0
    %93 = vmatprep.subr.mxu0 0.0
    %94 = vmatpush1.msra.mxu0 0.0
    %95 = vmatprep.subr.mxu0 0.0
    %96 = vmatpush1.msra.mxu0 0.0
    %97 = vmatprep.subr.mxu0 0.0
    %98 = vmatpush1.msra.mxu0 0.0
    %99 = vmatprep.subr.mxu0 0.0
    %100 = vmatpush1.msra.mxu0 %v54
    %101 = vmatprep.subr.mxu0 0.0
    %102 = vmatpush1.msra.mxu0 %v53
    %103 = vmatprep.subr.mxu0 0.0
    %104 = vmatpush2.msra.mxu0 0.0
    %105 = vmatprep.subr.mxu0 0.0
    %106 = vmatpush2.msra.mxu0 0.0
    %107 = vmatprep.subr.mxu0 0.0
    %108 = vmatpush2.msra.mxu0 0.0
    %109 = vmatprep.subr.mxu0 0.0
    %110 = vmatpush2.msra.mxu0 0.0
    %111 = vmatprep.subr.mxu0 0.0
    %112 = vmatpush2.msra.mxu0 0.0
    %113 = vmatprep.subr.mxu0 0.0
    %114 = vmatpush2.msra.mxu0 0.0
    %115 = vmatprep.subr.mxu0 0.0
    %116 = vmatpush2.msra.mxu0 0.0
    %117 = vmatprep.subr.mxu0 0.0
    %118 = vmatpush2.msra.mxu0 0.0
    %119 = vmatprep.subr.mxu0 0.0
    %120 = vmatpush2.msra.mxu0 0.0
    %121 = vmatprep.subr.mxu0 0.0
    %122 = vmatpush2.msra.mxu0 0.0
    %123 = vmatprep.subr.mxu0 0.0
    %124 = vmatpush2.msra.mxu0 0.0
    %125 = vmatprep.subr.mxu0 0.0
    %126 = vmatpush2.msra.mxu0 0.0
    %127 = vmatprep.subr.mxu0 0.0
    %128 = vmatpush2.msra.mxu0 0.0
    %129 = vmatprep.subr.mxu0 0.0
    %130 = vmatpush2.msra.mxu0 0.0
    %131 = vmatprep.subr.mxu0 0.0
    %132 = vmatpush2.msra.mxu0 0.0
    %133 = vmatprep.subr.mxu0 0.0
    %134 = vmatpush2.msra.mxu0 0.0
    %135 = vmatprep.mubr.f32.mxu0 0.0
    %136 = vmatmul.mubr.f32.gmra.mxu0 %v69
    %v137 = vpop.f32.mrf.mxu0
    %v138 = vadd.f32 %v65, %v137
    %v139 = vpop.f32.mrf.mxu0
    %140 = vdwg.mxu0
    %v142 = vsel %vm67, %v52, 0
    %144 = vmatprep.subr.mxu0 0.0
    %145 = vmatpush1.msra.mxu0 0.0
    %146 = vmatprep.subr.mxu0 0.0
    %147 = vmatpush1.msra.mxu0 0.0
    %148 = vmatprep.subr.mxu0 0.0
    %149 = vmatpush1.msra.mxu0 0.0
    %150 = vmatprep.subr.mxu0 0.0
    %151 = vmatpush1.msra.mxu0 0.0
    %152 = vmatprep.subr.mxu0 0.0
    %153 = vmatpush1.msra.mxu0 0.0
    %154 = vmatprep.subr.mxu0 0.0
    %155 = vmatpush1.msra.mxu0 0.0
    %156 = vmatprep.subr.mxu0 0.0
    %157 = vmatpush1.msra.mxu0 0.0
    %158 = vmatprep.subr.mxu0 0.0
    %159 = vmatpush1.msra.mxu0 0.0
    %160 = vmatprep.subr.mxu0 0.0
    %161 = vmatpush1.msra.mxu0 0.0
    %162 = vmatprep.subr.mxu0 0.0
    %163 = vmatpush1.msra.mxu0 0.0
    %164 = vmatprep.subr.mxu0 0.0
    %165 = vmatpush1.msra.mxu0 0.0
    %166 = vmatprep.subr.mxu0 0.0
    %167 = vmatpush1.msra.mxu0 0.0
    %168 = vmatprep.subr.mxu0 0.0
    %169 = vmatpush1.msra.mxu0 0.0
    %170 = vmatprep.subr.mxu0 0.0
    %171 = vmatpush1.msra.mxu0 0.0
    %172 = vmatprep.subr.mxu0 0.0
    %173 = vmatpush1.msra.mxu0 %v54
    %174 = vmatprep.subr.mxu0 0.0
    %175 = vmatpush1.msra.mxu0 %v53
    %176 = vmatprep.subr.mxu0 0.0
    %177 = vmatpush2.msra.mxu0 0.0
    %178 = vmatprep.subr.mxu0 0.0
    %179 = vmatpush2.msra.mxu0 0.0
    %180 = vmatprep.subr.mxu0 0.0
    %181 = vmatpush2.msra.mxu0 0.0
    %182 = vmatprep.subr.mxu0 0.0
    %183 = vmatpush2.msra.mxu0 0.0
    %184 = vmatprep.subr.mxu0 0.0
    %185 = vmatpush2.msra.mxu0 0.0
    %186 = vmatprep.subr.mxu0 0.0
    %187 = vmatpush2.msra.mxu0 0.0
    %188 = vmatprep.subr.mxu0 0.0
    %189 = vmatpush2.msra.mxu0 0.0
    %190 = vmatprep.subr.mxu0 0.0
    %191 = vmatpush2.msra.mxu0 0.0
    %192 = vmatprep.subr.mxu0 0.0
    %193 = vmatpush2.msra.mxu0 0.0
    %194 = vmatprep.subr.mxu0 0.0
    %195 = vmatpush2.msra.mxu0 0.0
    %196 = vmatprep.subr.mxu0 0.0
    %197 = vmatpush2.msra.mxu0 0.0
    %198 = vmatprep.subr.mxu0 0.0
    %199 = vmatpush2.msra.mxu0 0.0
    %200 = vmatprep.subr.mxu0 0.0
    %201 = vmatpush2.msra.mxu0 0.0
    %202 = vmatprep.subr.mxu0 0.0
    %203 = vmatpush2.msra.mxu0 0.0
    %204 = vmatprep.subr.mxu0 0.0
    %205 = vmatpush2.msra.mxu0 0.0
    %206 = vmatprep.subr.mxu0 0.0
    %207 = vmatpush2.msra.mxu0 0.0
    %208 = vmatprep.mubr.f32.mxu0 0.0
    %209 = vmatmul.mubr.f32.gmra.mxu0 %v142
    %v210 = vpop.f32.mrf.mxu0
    %v211 = vadd.f32 %v65, %v210
    %v212 = vpop.f32.mrf.mxu0
    %213 = vdwg.mxu0
    %v215 = vrot.slane %v211, 7
    %v218 = vrot.slane %v138, 7
    %v220 = vrot.slane %v211, 6
    %v222 = vrot.slane %v138, 6
    %v224 = vrot.slane %v211, 5
    %v226 = vrot.slane %v138, 5
    %v228 = vrot.slane %v211, 4
    %v230 = vrot.slane %v138, 4
    %v232 = vrot.slane %v211, 3
    %v234 = vrot.slane %v138, 3
    %v236 = vrot.slane %v211, 2
    %v238 = vrot.slane %v138, 2
    %v240 = vrot.slane %v211, 1
    %v242 = vrot.slane %v138, 1
    %vm244 = vcmask 1040384
    %v245 = vsel %vm244, %v138, %v215
    %vm246 = vcmask 1041408
    %v247 = vsel %vm246, %v245, %v218
    %vm248 = vcmask 1042432
    %v249 = vsel %vm248, %v247, %v220
    %vm250 = vcmask 1043456
    %v251 = vsel %vm250, %v249, %v222
    %vm252 = vcmask 1044480
    %v253 = vsel %vm252, %v251, %v224
    %vm254 = vcmask 1045504
    %v255 = vsel %vm254, %v253, %v226
    %vm256 = vcmask 1046528
    %v257 = vsel %vm256, %v255, %v228
    %v258 = vsel %vm244, %v230, %v232
    %v259 = vsel %vm246, %v258, %v234
    %v260 = vsel %vm248, %v259, %v236
    %v261 = vsel %vm250, %v260, %v238
    %v262 = vsel %vm252, %v261, %v240
    %v263 = vsel %vm254, %v262, %v242
    %v264 = vsel %vm256, %v263, %v211
    %v266 = vlaneseq
    %v267 = vshrl.u32 %v266, 7
    %v268 = vsub.s32 0, %v267
    %v269 = vrot.slane %v60, %v268
    %vm271 = vcmask 261120
    %v273 = vsel %vm271, 0.0, 0
    %275 = vmatprep.subr.mxu0 0.0
    %276 = vmatpush1.msra.mxu0 0.0
    %277 = vmatprep.subr.mxu0 0.0
    %278 = vmatpush1.msra.mxu0 0.0
    %279 = vmatprep.subr.mxu0 0.0
    %280 = vmatpush1.msra.mxu0 0.0
    %281 = vmatprep.subr.mxu0 0.0
    %282 = vmatpush1.msra.mxu0 0.0
    %283 = vmatprep.subr.mxu0 0.0
    %284 = vmatpush1.msra.mxu0 0.0
    %285 = vmatprep.subr.mxu0 0.0
    %286 = vmatpush1.msra.mxu0 0.0
    %287 = vmatprep.subr.mxu0 0.0
    %288 = vmatpush1.msra.mxu0 0.0
    %289 = vmatprep.subr.mxu0 0.0
    %290 = vmatpush1.msra.mxu0 0.0
    %291 = vmatprep.subr.mxu0 0.0
    %292 = vmatpush1.msra.mxu0 0.0
    %293 = vmatprep.subr.mxu0 0.0
    %294 = vmatpush1.msra.mxu0 0.0
    %295 = vmatprep.subr.mxu0 0.0
    %296 = vmatpush1.msra.mxu0 0.0
    %297 = vmatprep.subr.mxu0 0.0
    %298 = vmatpush1.msra.mxu0 0.0
    %299 = vmatprep.subr.mxu0 0.0
    %300 = vmatpush1.msra.mxu0 %v58
    %301 = vmatprep.subr.mxu0 0.0
    %302 = vmatpush1.msra.mxu0 %v57
    %303 = vmatprep.subr.mxu0 0.0
    %304 = vmatpush1.msra.mxu0 %v56
    %305 = vmatprep.subr.mxu0 0.0
    %306 = vmatpush1.msra.mxu0 %v55
    %307 = vmatprep.subr.mxu0 0.0
    %308 = vmatpush2.msra.mxu0 0.0
    %309 = vmatprep.subr.mxu0 0.0
    %310 = vmatpush2.msra.mxu0 0.0
    %311 = vmatprep.subr.mxu0 0.0
    %312 = vmatpush2.msra.mxu0 0.0
    %313 = vmatprep.subr.mxu0 0.0
    %314 = vmatpush2.msra.mxu0 0.0
    %315 = vmatprep.subr.mxu0 0.0
    %316 = vmatpush2.msra.mxu0 0.0
    %317 = vmatprep.subr.mxu0 0.0
    %318 = vmatpush2.msra.mxu0 0.0
    %319 = vmatprep.subr.mxu0 0.0
    %320 = vmatpush2.msra.mxu0 0.0
    %321 = vmatprep.subr.mxu0 0.0
    %322 = vmatpush2.msra.mxu0 0.0
    %323 = vmatprep.subr.mxu0 0.0
    %324 = vmatpush2.msra.mxu0 0.0
    %325 = vmatprep.subr.mxu0 0.0
    %326 = vmatpush2.msra.mxu0 0.0
    %327 = vmatprep.subr.mxu0 0.0
    %328 = vmatpush2.msra.mxu0 0.0
    %329 = vmatprep.subr.mxu0 0.0
    %330 = vmatpush2.msra.mxu0 0.0
    %331 = vmatprep.subr.mxu0 0.0
    %332 = vmatpush2.msra.mxu0 0.0
    %333 = vmatprep.subr.mxu0 0.0
    %334 = vmatpush2.msra.mxu0 0.0
    %335 = vmatprep.subr.mxu0 0.0
    %336 = vmatpush2.msra.mxu0 0.0
    %337 = vmatprep.subr.mxu0 0.0
    %338 = vmatpush2.msra.mxu0 0.0
    %339 = vmatprep.mubr.f32.mxu0 0.0
    %340 = vmatmul.mubr.f32.gmra.mxu0 %v273
    %v341 = vpop.f32.mrf.mxu0
    %v342 = vadd.f32 %v269, %v341
    %v343 = vpop.f32.mrf.mxu0
    %344 = vdwg.mxu0
    %v345 = vadd.f32 %v257, %v342
    %v346 = vxor.u32 %v345, 2147483648
    %v347 = vmul.f32 %v346, 1.442695
    %v348 = vpow.pop %v347
    %v349 = vadd.f32 %v348, 1.0
    %v350 = vrcp.pop %v349
    %v351 = vmul.f32 1.0, %v350
    %353 = vrot.lane.b32.xlu0 %v342, 64
    %v354 = vpop.permute.xlu0 %353
    %v356 = vmul.f32 %v351, %v354
    %358 = vrot.lane.b32.xlu0 %v356, 64
    %v359 = vpop.permute.xlu0 %358
    %v361 = vadd.f32 %v257, %v359
    %v362 = vtanh.pop %v361
    %v363 = vsub.f32 1.0, %v351
    %365 = vrot.lane.b32.xlu0 %v362, 96
    %v366 = vpop.permute.xlu0 %365
    %v368 = vmul.f32 %v363, %v366
    %v369 = vmul.f32 %v351, 0.0
    %v370 = vadd.f32 %v368, %v369
    %372 = vrot.lane.b32.xlu0 %v370, 96
    %v373 = vpop.permute.xlu0 %372
    %v374 = vsel %vm271, %v373, 0
    %376 = vmatprep.subr.mxu0 0.0
    %377 = vmatpush1.msra.mxu0 0.0
    %378 = vmatprep.subr.mxu0 0.0
    %379 = vmatpush1.msra.mxu0 0.0
    %380 = vmatprep.subr.mxu0 0.0
    %381 = vmatpush1.msra.mxu0 0.0
    %382 = vmatprep.subr.mxu0 0.0
    %383 = vmatpush1.msra.mxu0 0.0
    %384 = vmatprep.subr.mxu0 0.0
    %385 = vmatpush1.msra.mxu0 0.0
    %386 = vmatprep.subr.mxu0 0.0
    %387 = vmatpush1.msra.mxu0 0.0
    %388 = vmatprep.subr.mxu0 0.0
    %389 = vmatpush1.msra.mxu0 0.0
    %390 = vmatprep.subr.mxu0 0.0
    %391 = vmatpush1.msra.mxu0 0.0
    %392 = vmatprep.subr.mxu0 0.0
    %393 = vmatpush1.msra.mxu0 0.0
    %394 = vmatprep.subr.mxu0 0.0
    %395 = vmatpush1.msra.mxu0 0.0
    %396 = vmatprep.subr.mxu0 0.0
    %397 = vmatpush1.msra.mxu0 0.0
    %398 = vmatprep.subr.mxu0 0.0
    %399 = vmatpush1.msra.mxu0 0.0
    %400 = vmatprep.subr.mxu0 0.0
    %401 = vmatpush1.msra.mxu0 %v58
    %402 = vmatprep.subr.mxu0 0.0
    %403 = vmatpush1.msra.mxu0 %v57
    %404 = vmatprep.subr.mxu0 0.0
    %405 = vmatpush1.msra.mxu0 %v56
    %406 = vmatprep.subr.mxu0 0.0
    %407 = vmatpush1.msra.mxu0 %v55
    %408 = vmatprep.subr.mxu0 0.0
    %409 = vmatpush2.msra.mxu0 0.0
    %410 = vmatprep.subr.mxu0 0.0
    %411 = vmatpush2.msra.mxu0 0.0
    %412 = vmatprep.subr.mxu0 0.0
    %413 = vmatpush2.msra.mxu0 0.0
    %414 = vmatprep.subr.mxu0 0.0
    %415 = vmatpush2.msra.mxu0 0.0
    %416 = vmatprep.subr.mxu0 0.0
    %417 = vmatpush2.msra.mxu0 0.0
    %418 = vmatprep.subr.mxu0 0.0
    %419 = vmatpush2.msra.mxu0 0.0
    %420 = vmatprep.subr.mxu0 0.0
    %421 = vmatpush2.msra.mxu0 0.0
    %422 = vmatprep.subr.mxu0 0.0
    %423 = vmatpush2.msra.mxu0 0.0
    %424 = vmatprep.subr.mxu0 0.0
    %425 = vmatpush2.msra.mxu0 0.0
    %426 = vmatprep.subr.mxu0 0.0
    %427 = vmatpush2.msra.mxu0 0.0
    %428 = vmatprep.subr.mxu0 0.0
    %429 = vmatpush2.msra.mxu0 0.0
    %430 = vmatprep.subr.mxu0 0.0
    %431 = vmatpush2.msra.mxu0 0.0
    %432 = vmatprep.subr.mxu0 0.0
    %433 = vmatpush2.msra.mxu0 0.0
    %434 = vmatprep.subr.mxu0 0.0
    %435 = vmatpush2.msra.mxu0 0.0
    %436 = vmatprep.subr.mxu0 0.0
    %437 = vmatpush2.msra.mxu0 0.0
    %438 = vmatprep.subr.mxu0 0.0
    %439 = vmatpush2.msra.mxu0 0.0
    %440 = vmatprep.mubr.f32.mxu0 0.0
    %441 = vmatmul.mubr.f32.gmra.mxu0 %v374
    %v442 = vpop.f32.mrf.mxu0
    %v443 = vadd.f32 %v269, %v442
    %v444 = vpop.f32.mrf.mxu0
    %445 = vdwg.mxu0
    %v447 = vrot.slane %v443, 6
    %v449 = vadd.f32 %v257, %v447
    %v450 = vxor.u32 %v449, 2147483648
    %v451 = vmul.f32 %v450, 1.442695
    %v452 = vpow.pop %v451
    %v453 = vadd.f32 %v452, 1.0
    %v454 = vrcp.pop %v453
    %v455 = vmul.f32 1.0, %v454
    %456 = vrot.lane.b32.xlu0 %v447, 64
    %v457 = vpop.permute.xlu0 %456
    %v459 = vmul.f32 %v455, %v457
    %461 = vrot.lane.b32.xlu0 %v459, 64
    %v462 = vpop.permute.xlu0 %461
    %v464 = vadd.f32 %v257, %v462
    %v465 = vtanh.pop %v464
    %v466 = vsub.f32 1.0, %v455
    %468 = vrot.lane.b32.xlu0 %v465, 96
    %v469 = vpop.permute.xlu0 %468
    %v471 = vmul.f32 %v466, %v469
    %v472 = vrot.slane %v370, 6
    %v474 = vmul.f32 %v455, %v472
    %v475 = vadd.f32 %v471, %v474
    %v477 = vrot.slane %v475, 2
    %478 = vrot.lane.b32.xlu0 %v477, 96
    %v479 = vpop.permute.xlu0 %478
    %v480 = vsel %vm271, %v479, 0
    %482 = vmatprep.subr.mxu0 0.0
    %483 = vmatpush1.msra.mxu0 0.0
    %484 = vmatprep.subr.mxu0 0.0
    %485 = vmatpush1.msra.mxu0 0.0
    %486 = vmatprep.subr.mxu0 0.0
    %487 = vmatpush1.msra.mxu0 0.0
    %488 = vmatprep.subr.mxu0 0.0
    %489 = vmatpush1.msra.mxu0 0.0
    %490 = vmatprep.subr.mxu0 0.0
    %491 = vmatpush1.msra.mxu0 0.0
    %492 = vmatprep.subr.mxu0 0.0
    %493 = vmatpush1.msra.mxu0 0.0
    %494 = vmatprep.subr.mxu0 0.0
    %495 = vmatpush1.msra.mxu0 0.0
    %496 = vmatprep.subr.mxu0 0.0
    %497 = vmatpush1.msra.mxu0 0.0
    %498 = vmatprep.subr.mxu0 0.0
    %499 = vmatpush1.msra.mxu0 0.0
    %500 = vmatprep.subr.mxu0 0.0
    %501 = vmatpush1.msra.mxu0 0.0
    %502 = vmatprep.subr.mxu0 0.0
    %503 = vmatpush1.msra.mxu0 0.0
    %504 = vmatprep.subr.mxu0 0.0
    %505 = vmatpush1.msra.mxu0 0.0
    %506 = vmatprep.subr.mxu0 0.0
    %507 = vmatpush1.msra.mxu0 %v58
    %508 = vmatprep.subr.mxu0 0.0
    %509 = vmatpush1.msra.mxu0 %v57
    %510 = vmatprep.subr.mxu0 0.0
    %511 = vmatpush1.msra.mxu0 %v56
    %512 = vmatprep.subr.mxu0 0.0
    %513 = vmatpush1.msra.mxu0 %v55
    %514 = vmatprep.subr.mxu0 0.0
    %515 = vmatpush2.msra.mxu0 0.0
    %516 = vmatprep.subr.mxu0 0.0
    %517 = vmatpush2.msra.mxu0 0.0
    %518 = vmatprep.subr.mxu0 0.0
    %519 = vmatpush2.msra.mxu0 0.0
    %520 = vmatprep.subr.mxu0 0.0
    %521 = vmatpush2.msra.mxu0 0.0
    %522 = vmatprep.subr.mxu0 0.0
    %523 = vmatpush2.msra.mxu0 0.0
    %524 = vmatprep.subr.mxu0 0.0
    %525 = vmatpush2.msra.mxu0 0.0
    %526 = vmatprep.subr.mxu0 0.0
    %527 = vmatpush2.msra.mxu0 0.0
    %528 = vmatprep.subr.mxu0 0.0
    %529 = vmatpush2.msra.mxu0 0.0
    %530 = vmatprep.subr.mxu0 0.0
    %531 = vmatpush2.msra.mxu0 0.0
    %532 = vmatprep.subr.mxu0 0.0
    %533 = vmatpush2.msra.mxu0 0.0
    %534 = vmatprep.subr.mxu0 0.0
    %535 = vmatpush2.msra.mxu0 0.0
    %536 = vmatprep.subr.mxu0 0.0
    %537 = vmatpush2.msra.mxu0 0.0
    %538 = vmatprep.subr.mxu0 0.0
    %539 = vmatpush2.msra.mxu0 0.0
    %540 = vmatprep.subr.mxu0 0.0
    %541 = vmatpush2.msra.mxu0 0.0
    %542 = vmatprep.subr.mxu0 0.0
    %543 = vmatpush2.msra.mxu0 0.0
    %544 = vmatprep.subr.mxu0 0.0
    %545 = vmatpush2.msra.mxu0 0.0
    %546 = vmatprep.mubr.f32.mxu0 0.0
    %547 = vmatmul.mubr.f32.gmra.mxu0 %v480
    %v548 = vpop.f32.mrf.mxu0
    %v549 = vadd.f32 %v269, %v548
    %v550 = vpop.f32.mrf.mxu0
    %551 = vdwg.mxu0
    %v553 = vrot.slane %v549, 4
    %v555 = vadd.f32 %v257, %v553
    %v556 = vxor.u32 %v555, 2147483648
    %v557 = vmul.f32 %v556, 1.442695
    %v558 = vpow.pop %v557
    %v559 = vadd.f32 %v558, 1.0
    %v560 = vrcp.pop %v559
    %v561 = vmul.f32 1.0, %v560
    %562 = vrot.lane.b32.xlu0 %v553, 64
    %v563 = vpop.permute.xlu0 %562
    %v565 = vmul.f32 %v561, %v563
    %567 = vrot.lane.b32.xlu0 %v565, 64
    %v568 = vpop.permute.xlu0 %567
    %v570 = vadd.f32 %v257, %v568
    %v571 = vtanh.pop %v570
    %v572 = vsub.f32 1.0, %v561
    %574 = vrot.lane.b32.xlu0 %v571, 96
    %v575 = vpop.permute.xlu0 %574
    %v577 = vmul.f32 %v572, %v575
    %v578 = vrot.slane %v475, 6
    %v580 = vmul.f32 %v561, %v578
    %v581 = vadd.f32 %v577, %v580
    %v583 = vrot.slane %v581, 4
    %584 = vrot.lane.b32.xlu0 %v583, 96
    %v585 = vpop.permute.xlu0 %584
    %v586 = vsel %vm271, %v585, 0
    %588 = vmatprep.subr.mxu0 0.0
    %589 = vmatpush1.msra.mxu0 0.0
    %590 = vmatprep.subr.mxu0 0.0
    %591 = vmatpush1.msra.mxu0 0.0
    %592 = vmatprep.subr.mxu0 0.0
    %593 = vmatpush1.msra.mxu0 0.0
    %594 = vmatprep.subr.mxu0 0.0
    %595 = vmatpush1.msra.mxu0 0.0
    %596 = vmatprep.subr.mxu0 0.0
    %597 = vmatpush1.msra.mxu0 0.0
    %598 = vmatprep.subr.mxu0 0.0
    %599 = vmatpush1.msra.mxu0 0.0
    %600 = vmatprep.subr.mxu0 0.0
    %601 = vmatpush1.msra.mxu0 0.0
    %602 = vmatprep.subr.mxu0 0.0
    %603 = vmatpush1.msra.mxu0 0.0
    %604 = vmatprep.subr.mxu0 0.0
    %605 = vmatpush1.msra.mxu0 0.0
    %606 = vmatprep.subr.mxu0 0.0
    %607 = vmatpush1.msra.mxu0 0.0
    %608 = vmatprep.subr.mxu0 0.0
    %609 = vmatpush1.msra.mxu0 0.0
    %610 = vmatprep.subr.mxu0 0.0
    %611 = vmatpush1.msra.mxu0 0.0
    %612 = vmatprep.subr.mxu0 0.0
    %613 = vmatpush1.msra.mxu0 %v58
    %614 = vmatprep.subr.mxu0 0.0
    %615 = vmatpush1.msra.mxu0 %v57
    %616 = vmatprep.subr.mxu0 0.0
    %617 = vmatpush1.msra.mxu0 %v56
    %618 = vmatprep.subr.mxu0 0.0
    %619 = vmatpush1.msra.mxu0 %v55
    %620 = vmatprep.subr.mxu0 0.0
    %621 = vmatpush2.msra.mxu0 0.0
    %622 = vmatprep.subr.mxu0 0.0
    %623 = vmatpush2.msra.mxu0 0.0
    %624 = vmatprep.subr.mxu0 0.0
    %625 = vmatpush2.msra.mxu0 0.0
    %626 = vmatprep.subr.mxu0 0.0
    %627 = vmatpush2.msra.mxu0 0.0
    %628 = vmatprep.subr.mxu0 0.0
    %629 = vmatpush2.msra.mxu0 0.0
    %630 = vmatprep.subr.mxu0 0.0
    %631 = vmatpush2.msra.mxu0 0.0
    %632 = vmatprep.subr.mxu0 0.0
    %633 = vmatpush2.msra.mxu0 0.0
    %634 = vmatprep.subr.mxu0 0.0
    %635 = vmatpush2.msra.mxu0 0.0
    %636 = vmatprep.subr.mxu0 0.0
    %637 = vmatpush2.msra.mxu0 0.0
    %638 = vmatprep.subr.mxu0 0.0
    %639 = vmatpush2.msra.mxu0 0.0
    %640 = vmatprep.subr.mxu0 0.0
    %641 = vmatpush2.msra.mxu0 0.0
    %642 = vmatprep.subr.mxu0 0.0
    %643 = vmatpush2.msra.mxu0 0.0
    %644 = vmatprep.subr.mxu0 0.0
    %645 = vmatpush2.msra.mxu0 0.0
    %646 = vmatprep.subr.mxu0 0.0
    %647 = vmatpush2.msra.mxu0 0.0
    %648 = vmatprep.subr.mxu0 0.0
    %649 = vmatpush2.msra.mxu0 0.0
    %650 = vmatprep.subr.mxu0 0.0
    %651 = vmatpush2.msra.mxu0 0.0
    %652 = vmatprep.mubr.f32.mxu0 0.0
    %653 = vmatmul.mubr.f32.gmra.mxu0 %v586
    %v654 = vpop.f32.mrf.mxu0
    %v655 = vadd.f32 %v269, %v654
    %v656 = vpop.f32.mrf.mxu0
    %657 = vdwg.mxu0
    %v659 = vrot.slane %v655, 2
    %v661 = vadd.f32 %v257, %v659
    %v662 = vxor.u32 %v661, 2147483648
    %v663 = vmul.f32 %v662, 1.442695
    %v664 = vpow.pop %v663
    %v665 = vadd.f32 %v664, 1.0
    %v666 = vrcp.pop %v665
    %v667 = vmul.f32 1.0, %v666
    %668 = vrot.lane.b32.xlu0 %v659, 64
    %v669 = vpop.permute.xlu0 %668
    %v671 = vmul.f32 %v667, %v669
    %673 = vrot.lane.b32.xlu0 %v671, 64
    %v674 = vpop.permute.xlu0 %673
    %v676 = vadd.f32 %v257, %v674
    %v677 = vtanh.pop %v676
    %v678 = vsub.f32 1.0, %v667
    %680 = vrot.lane.b32.xlu0 %v677, 96
    %v681 = vpop.permute.xlu0 %680
    %v683 = vmul.f32 %v678, %v681
    %v684 = vrot.slane %v581, 6
    %v686 = vmul.f32 %v667, %v684
    %v687 = vadd.f32 %v683, %v686
    %v689 = vrot.slane %v687, 6
    %690 = vrot.lane.b32.xlu0 %v689, 96
    %v691 = vpop.permute.xlu0 %690
    %v692 = vsel %vm271, %v691, 0
    %694 = vmatprep.subr.mxu0 0.0
    %695 = vmatpush1.msra.mxu0 0.0
    %696 = vmatprep.subr.mxu0 0.0
    %697 = vmatpush1.msra.mxu0 0.0
    %698 = vmatprep.subr.mxu0 0.0
    %699 = vmatpush1.msra.mxu0 0.0
    %700 = vmatprep.subr.mxu0 0.0
    %701 = vmatpush1.msra.mxu0 0.0
    %702 = vmatprep.subr.mxu0 0.0
    %703 = vmatpush1.msra.mxu0 0.0
    %704 = vmatprep.subr.mxu0 0.0
    %705 = vmatpush1.msra.mxu0 0.0
    %706 = vmatprep.subr.mxu0 0.0
    %707 = vmatpush1.msra.mxu0 0.0
    %708 = vmatprep.subr.mxu0 0.0
    %709 = vmatpush1.msra.mxu0 0.0
    %710 = vmatprep.subr.mxu0 0.0
    %711 = vmatpush1.msra.mxu0 0.0
    %712 = vmatprep.subr.mxu0 0.0
    %713 = vmatpush1.msra.mxu0 0.0
    %714 = vmatprep.subr.mxu0 0.0
    %715 = vmatpush1.msra.mxu0 0.0
    %716 = vmatprep.subr.mxu0 0.0
    %717 = vmatpush1.msra.mxu0 0.0
    %718 = vmatprep.subr.mxu0 0.0
    %719 = vmatpush1.msra.mxu0 %v58
    %720 = vmatprep.subr.mxu0 0.0
    %721 = vmatpush1.msra.mxu0 %v57
    %722 = vmatprep.subr.mxu0 0.0
    %723 = vmatpush1.msra.mxu0 %v56
    %724 = vmatprep.subr.mxu0 0.0
    %725 = vmatpush1.msra.mxu0 %v55
    %726 = vmatprep.subr.mxu0 0.0
    %727 = vmatpush2.msra.mxu0 0.0
    %728 = vmatprep.subr.mxu0 0.0
    %729 = vmatpush2.msra.mxu0 0.0
    %730 = vmatprep.subr.mxu0 0.0
    %731 = vmatpush2.msra.mxu0 0.0
    %732 = vmatprep.subr.mxu0 0.0
    %733 = vmatpush2.msra.mxu0 0.0
    %734 = vmatprep.subr.mxu0 0.0
    %735 = vmatpush2.msra.mxu0 0.0
    %736 = vmatprep.subr.mxu0 0.0
    %737 = vmatpush2.msra.mxu0 0.0
    %738 = vmatprep.subr.mxu0 0.0
    %739 = vmatpush2.msra.mxu0 0.0
    %740 = vmatprep.subr.mxu0 0.0
    %741 = vmatpush2.msra.mxu0 0.0
    %742 = vmatprep.subr.mxu0 0.0
    %743 = vmatpush2.msra.mxu0 0.0
    %744 = vmatprep.subr.mxu0 0.0
    %745 = vmatpush2.msra.mxu0 0.0
    %746 = vmatprep.subr.mxu0 0.0
    %747 = vmatpush2.msra.mxu0 0.0
    %748 = vmatprep.subr.mxu0 0.0
    %749 = vmatpush2.msra.mxu0 0.0
    %750 = vmatprep.subr.mxu0 0.0
    %751 = vmatpush2.msra.mxu0 0.0
    %752 = vmatprep.subr.mxu0 0.0
    %753 = vmatpush2.msra.mxu0 0.0
    %754 = vmatprep.subr.mxu0 0.0
    %755 = vmatpush2.msra.mxu0 0.0
    %756 = vmatprep.subr.mxu0 0.0
    %757 = vmatpush2.msra.mxu0 0.0
    %758 = vmatprep.mubr.f32.mxu0 0.0
    %759 = vmatmul.mubr.f32.gmra.mxu0 %v692
    %v760 = vpop.f32.mrf.mxu0
    %v761 = vadd.f32 %v269, %v760
    %v762 = vpop.f32.mrf.mxu0
    %763 = vdwg.mxu0
    %v764 = vadd.f32 %v264, %v761
    %v765 = vxor.u32 %v764, 2147483648
    %v766 = vmul.f32 %v765, 1.442695
    %v767 = vpow.pop %v766
    %v768 = vadd.f32 %v767, 1.0
    %v769 = vrcp.pop %v768
    %v770 = vmul.f32 1.0, %v769
    %772 = vrot.lane.b32.xlu0 %v761, 64
    %v773 = vpop.permute.xlu0 %772
    %v775 = vmul.f32 %v770, %v773
    %777 = vrot.lane.b32.xlu0 %v775, 64
    %v778 = vpop.permute.xlu0 %777
    %v780 = vadd.f32 %v264, %v778
    %v781 = vtanh.pop %v780
    %v782 = vsub.f32 1.0, %v770
    %784 = vrot.lane.b32.xlu0 %v781, 96
    %v785 = vpop.permute.xlu0 %784
    %v787 = vmul.f32 %v782, %v785
    %v789 = vmul.f32 %v770, %v689
    %v790 = vadd.f32 %v787, %v789
    %792 = vrot.lane.b32.xlu0 %v790, 96
    %v793 = vpop.permute.xlu0 %792
    %v794 = vsel %vm271, %v793, 0
    %796 = vmatprep.subr.mxu0 0.0
    %797 = vmatpush1.msra.mxu0 0.0
    %798 = vmatprep.subr.mxu0 0.0
    %799 = vmatpush1.msra.mxu0 0.0
    %800 = vmatprep.subr.mxu0 0.0
    %801 = vmatpush1.msra.mxu0 0.0
    %802 = vmatprep.subr.mxu0 0.0
    %803 = vmatpush1.msra.mxu0 0.0
    %804 = vmatprep.subr.mxu0 0.0
    %805 = vmatpush1.msra.mxu0 0.0
    %806 = vmatprep.subr.mxu0 0.0
    %807 = vmatpush1.msra.mxu0 0.0
    %808 = vmatprep.subr.mxu0 0.0
    %809 = vmatpush1.msra.mxu0 0.0
    %810 = vmatprep.subr.mxu0 0.0
    %811 = vmatpush1.msra.mxu0 0.0
    %812 = vmatprep.subr.mxu0 0.0
    %813 = vmatpush1.msra.mxu0 0.0
    %814 = vmatprep.subr.mxu0 0.0
    %815 = vmatpush1.msra.mxu0 0.0
    %816 = vmatprep.subr.mxu0 0.0
    %817 = vmatpush1.msra.mxu0 0.0
    %818 = vmatprep.subr.mxu0 0.0
    %819 = vmatpush1.msra.mxu0 0.0
    %820 = vmatprep.subr.mxu0 0.0
    %821 = vmatpush1.msra.mxu0 %v58
    %822 = vmatprep.subr.mxu0 0.0
    %823 = vmatpush1.msra.mxu0 %v57
    %824 = vmatprep.subr.mxu0 0.0
    %825 = vmatpush1.msra.mxu0 %v56
    %826 = vmatprep.subr.mxu0 0.0
    %827 = vmatpush1.msra.mxu0 %v55
    %828 = vmatprep.subr.mxu0 0.0
    %829 = vmatpush2.msra.mxu0 0.0
    %830 = vmatprep.subr.mxu0 0.0
    %831 = vmatpush2.msra.mxu0 0.0
    %832 = vmatprep.subr.mxu0 0.0
    %833 = vmatpush2.msra.mxu0 0.0
    %834 = vmatprep.subr.mxu0 0.0
    %835 = vmatpush2.msra.mxu0 0.0
    %836 = vmatprep.subr.mxu0 0.0
    %837 = vmatpush2.msra.mxu0 0.0
    %838 = vmatprep.subr.mxu0 0.0
    %839 = vmatpush2.msra.mxu0 0.0
    %840 = vmatprep.subr.mxu0 0.0
    %841 = vmatpush2.msra.mxu0 0.0
    %842 = vmatprep.subr.mxu0 0.0
    %843 = vmatpush2.msra.mxu0 0.0
    %844 = vmatprep.subr.mxu0 0.0
    %845 = vmatpush2.msra.mxu0 0.0
    %846 = vmatprep.subr.mxu0 0.0
    %847 = vmatpush2.msra.mxu0 0.0
    %848 = vmatprep.subr.mxu0 0.0
    %849 = vmatpush2.msra.mxu0 0.0
    %850 = vmatprep.subr.mxu0 0.0
    %851 = vmatpush2.msra.mxu0 0.0
    %852 = vmatprep.subr.mxu0 0.0
    %853 = vmatpush2.msra.mxu0 0.0
    %854 = vmatprep.subr.mxu0 0.0
    %855 = vmatpush2.msra.mxu0 0.0
    %856 = vmatprep.subr.mxu0 0.0
    %857 = vmatpush2.msra.mxu0 0.0
    %858 = vmatprep.subr.mxu0 0.0
    %859 = vmatpush2.msra.mxu0 0.0
    %860 = vmatprep.mubr.f32.mxu0 0.0
    %861 = vmatmul.mubr.f32.gmra.mxu0 %v794
    %v862 = vpop.f32.mrf.mxu0
    %v863 = vadd.f32 %v269, %v862
    %v864 = vpop.f32.mrf.mxu0
    %865 = vdwg.mxu0
    %v867 = vrot.slane %v863, 6
    %v869 = vadd.f32 %v264, %v867
    %v870 = vxor.u32 %v869, 2147483648
    %v871 = vmul.f32 %v870, 1.442695
    %v872 = vpow.pop %v871
    %v873 = vadd.f32 %v872, 1.0
    %v874 = vrcp.pop %v873
    %v875 = vmul.f32 1.0, %v874
    %876 = vrot.lane.b32.xlu0 %v867, 64
    %v877 = vpop.permute.xlu0 %876
    %v879 = vmul.f32 %v875, %v877
    %881 = vrot.lane.b32.xlu0 %v879, 64
    %v882 = vpop.permute.xlu0 %881
    %v884 = vadd.f32 %v264, %v882
    %v885 = vtanh.pop %v884
    %v886 = vsub.f32 1.0, %v875
    %888 = vrot.lane.b32.xlu0 %v885, 96
    %v889 = vpop.permute.xlu0 %888
    %v891 = vmul.f32 %v886, %v889
    %v892 = vrot.slane %v790, 6
    %v894 = vmul.f32 %v875, %v892
    %v895 = vadd.f32 %v891, %v894
    %v897 = vrot.slane %v895, 2
    %898 = vrot.lane.b32.xlu0 %v897, 96
    %v899 = vpop.permute.xlu0 %898
    %v900 = vsel %vm271, %v899, 0
    %902 = vmatprep.subr.mxu0 0.0
    %903 = vmatpush1.msra.mxu0 0.0
    %904 = vmatprep.subr.mxu0 0.0
    %905 = vmatpush1.msra.mxu0 0.0
    %906 = vmatprep.subr.mxu0 0.0
    %907 = vmatpush1.msra.mxu0 0.0
    %908 = vmatprep.subr.mxu0 0.0
    %909 = vmatpush1.msra.mxu0 0.0
    %910 = vmatprep.subr.mxu0 0.0
    %911 = vmatpush1.msra.mxu0 0.0
    %912 = vmatprep.subr.mxu0 0.0
    %913 = vmatpush1.msra.mxu0 0.0
    %914 = vmatprep.subr.mxu0 0.0
    %915 = vmatpush1.msra.mxu0 0.0
    %916 = vmatprep.subr.mxu0 0.0
    %917 = vmatpush1.msra.mxu0 0.0
    %918 = vmatprep.subr.mxu0 0.0
    %919 = vmatpush1.msra.mxu0 0.0
    %920 = vmatprep.subr.mxu0 0.0
    %921 = vmatpush1.msra.mxu0 0.0
    %922 = vmatprep.subr.mxu0 0.0
    %923 = vmatpush1.msra.mxu0 0.0
    %924 = vmatprep.subr.mxu0 0.0
    %925 = vmatpush1.msra.mxu0 0.0
    %926 = vmatprep.subr.mxu0 0.0
    %927 = vmatpush1.msra.mxu0 %v58
    %928 = vmatprep.subr.mxu0 0.0
    %929 = vmatpush1.msra.mxu0 %v57
    %930 = vmatprep.subr.mxu0 0.0
    %931 = vmatpush1.msra.mxu0 %v56
    %932 = vmatprep.subr.mxu0 0.0
    %933 = vmatpush1.msra.mxu0 %v55
    %934 = vmatprep.subr.mxu0 0.0
    %935 = vmatpush2.msra.mxu0 0.0
    %936 = vmatprep.subr.mxu0 0.0
    %937 = vmatpush2.msra.mxu0 0.0
    %938 = vmatprep.subr.mxu0 0.0
    %939 = vmatpush2.msra.mxu0 0.0
    %940 = vmatprep.subr.mxu0 0.0
    %941 = vmatpush2.msra.mxu0 0.0
    %942 = vmatprep.subr.mxu0 0.0
    %943 = vmatpush2.msra.mxu0 0.0
    %944 = vmatprep.subr.mxu0 0.0
    %945 = vmatpush2.msra.mxu0 0.0
    %946 = vmatprep.subr.mxu0 0.0
    %947 = vmatpush2.msra.mxu0 0.0
    %948 = vmatprep.subr.mxu0 0.0
    %949 = vmatpush2.msra.mxu0 0.0
    %950 = vmatprep.subr.mxu0 0.0
    %951 = vmatpush2.msra.mxu0 0.0
    %952 = vmatprep.subr.mxu0 0.0
    %953 = vmatpush2.msra.mxu0 0.0
    %954 = vmatprep.subr.mxu0 0.0
    %955 = vmatpush2.msra.mxu0 0.0
    %956 = vmatprep.subr.mxu0 0.0
    %957 = vmatpush2.msra.mxu0 0.0
    %958 = vmatprep.subr.mxu0 0.0
    %959 = vmatpush2.msra.mxu0 0.0
    %960 = vmatprep.subr.mxu0 0.0
    %961 = vmatpush2.msra.mxu0 0.0
    %962 = vmatprep.subr.mxu0 0.0
    %963 = vmatpush2.msra.mxu0 0.0
    %964 = vmatprep.subr.mxu0 0.0
    %965 = vmatpush2.msra.mxu0 0.0
    %966 = vmatprep.mubr.f32.mxu0 0.0
    %967 = vmatmul.mubr.f32.gmra.mxu0 %v900
    %v968 = vpop.f32.mrf.mxu0
    %v969 = vadd.f32 %v269, %v968
    %v970 = vpop.f32.mrf.mxu0
    %971 = vdwg.mxu0
    %v973 = vrot.slane %v969, 4
    %v975 = vadd.f32 %v264, %v973
    %v976 = vxor.u32 %v975, 2147483648
    %v977 = vmul.f32 %v976, 1.442695
    %v978 = vpow.pop %v977
    %v979 = vadd.f32 %v978, 1.0
    %v980 = vrcp.pop %v979
    %v981 = vmul.f32 1.0, %v980
    %982 = vrot.lane.b32.xlu0 %v973, 64
    %v983 = vpop.permute.xlu0 %982
    %v985 = vmul.f32 %v981, %v983
    %987 = vrot.lane.b32.xlu0 %v985, 64
    %v988 = vpop.permute.xlu0 %987
    %v990 = vadd.f32 %v264, %v988
    %v991 = vtanh.pop %v990
    %v992 = vsub.f32 1.0, %v981
    %994 = vrot.lane.b32.xlu0 %v991, 96
    %v995 = vpop.permute.xlu0 %994
    %v997 = vmul.f32 %v992, %v995
    %v998 = vrot.slane %v895, 6
    %v1000 = vmul.f32 %v981, %v998
    %v1001 = vadd.f32 %v997, %v1000
    %v1003 = vrot.slane %v1001, 4
    %1004 = vrot.lane.b32.xlu0 %v1003, 96
    %v1005 = vpop.permute.xlu0 %1004
    %v1006 = vsel %vm271, %v1005, 0
    %1008 = vmatprep.subr.mxu0 0.0
    %1009 = vmatpush1.msra.mxu0 0.0
    %1010 = vmatprep.subr.mxu0 0.0
    %1011 = vmatpush1.msra.mxu0 0.0
    %1012 = vmatprep.subr.mxu0 0.0
    %1013 = vmatpush1.msra.mxu0 0.0
    %1014 = vmatprep.subr.mxu0 0.0
    %1015 = vmatpush1.msra.mxu0 0.0
    %1016 = vmatprep.subr.mxu0 0.0
    %1017 = vmatpush1.msra.mxu0 0.0
    %1018 = vmatprep.subr.mxu0 0.0
    %1019 = vmatpush1.msra.mxu0 0.0
    %1020 = vmatprep.subr.mxu0 0.0
    %1021 = vmatpush1.msra.mxu0 0.0
    %1022 = vmatprep.subr.mxu0 0.0
    %1023 = vmatpush1.msra.mxu0 0.0
    %1024 = vmatprep.subr.mxu0 0.0
    %1025 = vmatpush1.msra.mxu0 0.0
    %1026 = vmatprep.subr.mxu0 0.0
    %1027 = vmatpush1.msra.mxu0 0.0
    %1028 = vmatprep.subr.mxu0 0.0
    %1029 = vmatpush1.msra.mxu0 0.0
    %1030 = vmatprep.subr.mxu0 0.0
    %1031 = vmatpush1.msra.mxu0 0.0
    %1032 = vmatprep.subr.mxu0 0.0
    %1033 = vmatpush1.msra.mxu0 %v58
    %1034 = vmatprep.subr.mxu0 0.0
    %1035 = vmatpush1.msra.mxu0 %v57
    %1036 = vmatprep.subr.mxu0 0.0
    %1037 = vmatpush1.msra.mxu0 %v56
    %1038 = vmatprep.subr.mxu0 0.0
    %1039 = vmatpush1.msra.mxu0 %v55
    %1040 = vmatprep.subr.mxu0 0.0
    %1041 = vmatpush2.msra.mxu0 0.0
    %1042 = vmatprep.subr.mxu0 0.0
    %1043 = vmatpush2.msra.mxu0 0.0
    %1044 = vmatprep.subr.mxu0 0.0
    %1045 = vmatpush2.msra.mxu0 0.0
    %1046 = vmatprep.subr.mxu0 0.0
    %1047 = vmatpush2.msra.mxu0 0.0
    %1048 = vmatprep.subr.mxu0 0.0
    %1049 = vmatpush2.msra.mxu0 0.0
    %1050 = vmatprep.subr.mxu0 0.0
    %1051 = vmatpush2.msra.mxu0 0.0
    %1052 = vmatprep.subr.mxu0 0.0
    %1053 = vmatpush2.msra.mxu0 0.0
    %1054 = vmatprep.subr.mxu0 0.0
    %1055 = vmatpush2.msra.mxu0 0.0
    %1056 = vmatprep.subr.mxu0 0.0
    %1057 = vmatpush2.msra.mxu0 0.0
    %1058 = vmatprep.subr.mxu0 0.0
    %1059 = vmatpush2.msra.mxu0 0.0
    %1060 = vmatprep.subr.mxu0 0.0
    %1061 = vmatpush2.msra.mxu0 0.0
    %1062 = vmatprep.subr.mxu0 0.0
    %1063 = vmatpush2.msra.mxu0 0.0
    %1064 = vmatprep.subr.mxu0 0.0
    %1065 = vmatpush2.msra.mxu0 0.0
    %1066 = vmatprep.subr.mxu0 0.0
    %1067 = vmatpush2.msra.mxu0 0.0
    %1068 = vmatprep.subr.mxu0 0.0
    %1069 = vmatpush2.msra.mxu0 0.0
    %1070 = vmatprep.subr.mxu0 0.0
    %1071 = vmatpush2.msra.mxu0 0.0
    %1072 = vmatprep.mubr.f32.mxu0 0.0
    %1073 = vmatmul.mubr.f32.gmra.mxu0 %v1006
    %v1074 = vpop.f32.mrf.mxu0
    %v1075 = vadd.f32 %v269, %v1074
    %v1076 = vpop.f32.mrf.mxu0
    %1077 = vdwg.mxu0
    %v1079 = vrot.slane %v1075, 2
    %v1081 = vadd.f32 %v264, %v1079
    %v1082 = vxor.u32 %v1081, 2147483648
    %v1083 = vmul.f32 %v1082, 1.442695
    %v1084 = vpow.pop %v1083
    %v1085 = vadd.f32 %v1084, 1.0
    %v1086 = vrcp.pop %v1085
    %v1087 = vmul.f32 1.0, %v1086
    %1088 = vrot.lane.b32.xlu0 %v1079, 64
    %v1089 = vpop.permute.xlu0 %1088
    %v1091 = vmul.f32 %v1087, %v1089
    %1093 = vrot.lane.b32.xlu0 %v1091, 64
    %v1094 = vpop.permute.xlu0 %1093
    %v1096 = vadd.f32 %v264, %v1094
    %v1097 = vtanh.pop %v1096
    %v1098 = vsub.f32 1.0, %v1087
    %1100 = vrot.lane.b32.xlu0 %v1097, 96
    %v1101 = vpop.permute.xlu0 %1100
    %v1103 = vmul.f32 %v1098, %v1101
    %v1104 = vrot.slane %v1001, 6
    %v1106 = vmul.f32 %v1087, %v1104
    %v1107 = vadd.f32 %v1103, %v1106
    %v1108 = vsel %vm246, %v370, %v475
    %v1109 = vsel %vm250, %v1108, %v581
    %v1110 = vsel %vm254, %v1109, %v687
    %v1111 = vsel %vm246, %v790, %v895
    %v1112 = vsel %vm250, %v1111, %v1001
    %v1113 = vsel %vm254, %v1112, %v1107
    %v1114 = vld [vmem:[%s5] sm:$0xff]
    %v1115 = vld [vmem:[%s5 + $0x8] sm:$0xff]
    %v1116 = vld [vmem:[%s5 + $0x10] sm:$0xff]
    %v1117 = vld [vmem:[%s5 + $0x18] sm:$0xff]
    %v1118 = vld [vmem:[%s6] sm:$0xff]
    %v1119 = vld [vmem:[%s6 + $0x8] sm:$0xff]
    %v1120 = vld [vmem:[%s6 + $0x10] sm:$0xff]
    %v1121 = vld [vmem:[%s6 + $0x18] sm:$0xff]
    %v1122 = vld [vmem:[%s7] sm:$0x1]
    %v1123 = vld [vmem:[%s8] sm:$0x1]
    %v1125 = vlaneseq
    %v1126 = vshrl.u32 %v1125, 7
    %v1127 = vsub.s32 0, %v1126
    %v1128 = vrot.slane %v1122, %v1127
    %1132 = vrot.lane.b32.xlu0 %v1110, 96
    %v1133 = vpop.permute.xlu0 %1132
    %1134 = vrot.lane.b32.xlu0 %v1113, 96
    %v1135 = vpop.permute.xlu0 %1134
    %v1136 = vsel %vm271, %v1133, 0
    %v1138 = vsel %vm271, %v1135, 0
    %1140 = vmatprep.subr.mxu0 0.0
    %1141 = vmatpush1.msra.mxu0 0.0
    %1142 = vmatprep.subr.mxu0 0.0
    %1143 = vmatpush1.msra.mxu0 0.0
    %1144 = vmatprep.subr.mxu0 0.0
    %1145 = vmatpush1.msra.mxu0 0.0
    %1146 = vmatprep.subr.mxu0 0.0
    %1147 = vmatpush1.msra.mxu0 0.0
    %1148 = vmatprep.subr.mxu0 0.0
    %1149 = vmatpush1.msra.mxu0 0.0
    %1150 = vmatprep.subr.mxu0 0.0
    %1151 = vmatpush1.msra.mxu0 0.0
    %1152 = vmatprep.subr.mxu0 0.0
    %1153 = vmatpush1.msra.mxu0 0.0
    %1154 = vmatprep.subr.mxu0 0.0
    %1155 = vmatpush1.msra.mxu0 0.0
    %1156 = vmatprep.subr.mxu0 0.0
    %1157 = vmatpush1.msra.mxu0 0.0
    %1158 = vmatprep.subr.mxu0 0.0
    %1159 = vmatpush1.msra.mxu0 0.0
    %1160 = vmatprep.subr.mxu0 0.0
    %1161 = vmatpush1.msra.mxu0 0.0
    %1162 = vmatprep.subr.mxu0 0.0
    %1163 = vmatpush1.msra.mxu0 0.0
    %1164 = vmatprep.subr.mxu0 0.0
    %1165 = vmatpush1.msra.mxu0 %v1117
    %1166 = vmatprep.subr.mxu0 0.0
    %1167 = vmatpush1.msra.mxu0 %v1116
    %1168 = vmatprep.subr.mxu0 0.0
    %1169 = vmatpush1.msra.mxu0 %v1115
    %1170 = vmatprep.subr.mxu0 0.0
    %1171 = vmatpush1.msra.mxu0 %v1114
    %1172 = vmatprep.subr.mxu0 0.0
    %1173 = vmatpush2.msra.mxu0 0.0
    %1174 = vmatprep.subr.mxu0 0.0
    %1175 = vmatpush2.msra.mxu0 0.0
    %1176 = vmatprep.subr.mxu0 0.0
    %1177 = vmatpush2.msra.mxu0 0.0
    %1178 = vmatprep.subr.mxu0 0.0
    %1179 = vmatpush2.msra.mxu0 0.0
    %1180 = vmatprep.subr.mxu0 0.0
    %1181 = vmatpush2.msra.mxu0 0.0
    %1182 = vmatprep.subr.mxu0 0.0
    %1183 = vmatpush2.msra.mxu0 0.0
    %1184 = vmatprep.subr.mxu0 0.0
    %1185 = vmatpush2.msra.mxu0 0.0
    %1186 = vmatprep.subr.mxu0 0.0
    %1187 = vmatpush2.msra.mxu0 0.0
    %1188 = vmatprep.subr.mxu0 0.0
    %1189 = vmatpush2.msra.mxu0 0.0
    %1190 = vmatprep.subr.mxu0 0.0
    %1191 = vmatpush2.msra.mxu0 0.0
    %1192 = vmatprep.subr.mxu0 0.0
    %1193 = vmatpush2.msra.mxu0 0.0
    %1194 = vmatprep.subr.mxu0 0.0
    %1195 = vmatpush2.msra.mxu0 0.0
    %1196 = vmatprep.subr.mxu0 0.0
    %1197 = vmatpush2.msra.mxu0 0.0
    %1198 = vmatprep.subr.mxu0 0.0
    %1199 = vmatpush2.msra.mxu0 0.0
    %1200 = vmatprep.subr.mxu0 0.0
    %1201 = vmatpush2.msra.mxu0 0.0
    %1202 = vmatprep.subr.mxu0 0.0
    %1203 = vmatpush2.msra.mxu0 0.0
    %1204 = vmatprep.mubr.f32.mxu0 0.0
    %1205 = vmatmul.mubr.f32.gmra.mxu0 %v1136
    %v1206 = vpop.f32.mrf.mxu0
    %v1207 = vadd.f32 %v1128, %v1206
    %v1208 = vpop.f32.mrf.mxu0
    %1209 = vmatprep.mubr.f32.mxu0 0.0
    %1210 = vmatmul.mubr.f32.gmra.mxu0 %v1138
    %v1211 = vpop.f32.mrf.mxu0
    %v1212 = vadd.f32 %v1128, %v1211
    %v1213 = vpop.f32.mrf.mxu0
    %1214 = vdwg.mxu0
    %v1216 = vlaneseq
    %v1217 = vshrl.u32 %v1216, 7
    %v1218 = vsub.s32 0, %v1217
    %v1219 = vrot.slane %v1123, %v1218
    %1221 = vmatprep.subr.mxu0 0.0
    %1222 = vmatpush1.msra.mxu0 0.0
    %1223 = vmatprep.subr.mxu0 0.0
    %1224 = vmatpush1.msra.mxu0 0.0
    %1225 = vmatprep.subr.mxu0 0.0
    %1226 = vmatpush1.msra.mxu0 0.0
    %1227 = vmatprep.subr.mxu0 0.0
    %1228 = vmatpush1.msra.mxu0 0.0
    %1229 = vmatprep.subr.mxu0 0.0
    %1230 = vmatpush1.msra.mxu0 0.0
    %1231 = vmatprep.subr.mxu0 0.0
    %1232 = vmatpush1.msra.mxu0 0.0
    %1233 = vmatprep.subr.mxu0 0.0
    %1234 = vmatpush1.msra.mxu0 0.0
    %1235 = vmatprep.subr.mxu0 0.0
    %1236 = vmatpush1.msra.mxu0 0.0
    %1237 = vmatprep.subr.mxu0 0.0
    %1238 = vmatpush1.msra.mxu0 0.0
    %1239 = vmatprep.subr.mxu0 0.0
    %1240 = vmatpush1.msra.mxu0 0.0
    %1241 = vmatprep.subr.mxu0 0.0
    %1242 = vmatpush1.msra.mxu0 0.0
    %1243 = vmatprep.subr.mxu0 0.0
    %1244 = vmatpush1.msra.mxu0 0.0
    %1245 = vmatprep.subr.mxu0 0.0
    %1246 = vmatpush1.msra.mxu0 %v1121
    %1247 = vmatprep.subr.mxu0 0.0
    %1248 = vmatpush1.msra.mxu0 %v1120
    %1249 = vmatprep.subr.mxu0 0.0
    %1250 = vmatpush1.msra.mxu0 %v1119
    %1251 = vmatprep.subr.mxu0 0.0
    %1252 = vmatpush1.msra.mxu0 %v1118
    %1253 = vmatprep.subr.mxu0 0.0
    %1254 = vmatpush2.msra.mxu0 0.0
    %1255 = vmatprep.subr.mxu0 0.0
    %1256 = vmatpush2.msra.mxu0 0.0
    %1257 = vmatprep.subr.mxu0 0.0
    %1258 = vmatpush2.msra.mxu0 0.0
    %1259 = vmatprep.subr.mxu0 0.0
    %1260 = vmatpush2.msra.mxu0 0.0
    %1261 = vmatprep.subr.mxu0 0.0
    %1262 = vmatpush2.msra.mxu0 0.0
    %1263 = vmatprep.subr.mxu0 0.0
    %1264 = vmatpush2.msra.mxu0 0.0
    %1265 = vmatprep.subr.mxu0 0.0
    %1266 = vmatpush2.msra.mxu0 0.0
    %1267 = vmatprep.subr.mxu0 0.0
    %1268 = vmatpush2.msra.mxu0 0.0
    %1269 = vmatprep.subr.mxu0 0.0
    %1270 = vmatpush2.msra.mxu0 0.0
    %1271 = vmatprep.subr.mxu0 0.0
    %1272 = vmatpush2.msra.mxu0 0.0
    %1273 = vmatprep.subr.mxu0 0.0
    %1274 = vmatpush2.msra.mxu0 0.0
    %1275 = vmatprep.subr.mxu0 0.0
    %1276 = vmatpush2.msra.mxu0 0.0
    %1277 = vmatprep.subr.mxu0 0.0
    %1278 = vmatpush2.msra.mxu0 0.0
    %1279 = vmatprep.subr.mxu0 0.0
    %1280 = vmatpush2.msra.mxu0 0.0
    %1281 = vmatprep.subr.mxu0 0.0
    %1282 = vmatpush2.msra.mxu0 0.0
    %1283 = vmatprep.subr.mxu0 0.0
    %1284 = vmatpush2.msra.mxu0 0.0
    %1285 = vmatprep.mubr.f32.mxu0 0.0
    %1286 = vmatmul.mubr.f32.gmra.mxu0 %v273
    %v1287 = vpop.f32.mrf.mxu0
    %v1288 = vadd.f32 %v1219, %v1287
    %v1289 = vpop.f32.mrf.mxu0
    %1290 = vdwg.mxu0
    %v1291 = vadd.f32 %v1207, %v1288
    %v1292 = vxor.u32 %v1291, 2147483648
    %v1293 = vmul.f32 %v1292, 1.442695
    %v1294 = vpow.pop %v1293
    %v1295 = vadd.f32 %v1294, 1.0
    %v1296 = vrcp.pop %v1295
    %v1297 = vmul.f32 1.0, %v1296
    %1299 = vrot.lane.b32.xlu0 %v1288, 64
    %v1300 = vpop.permute.xlu0 %1299
    %v1302 = vmul.f32 %v1297, %v1300
    %1304 = vrot.lane.b32.xlu0 %v1302, 64
    %v1305 = vpop.permute.xlu0 %1304
    %v1307 = vadd.f32 %v1207, %v1305
    %v1308 = vtanh.pop %v1307
    %v1309 = vsub.f32 1.0, %v1297
    %1311 = vrot.lane.b32.xlu0 %v1308, 96
    %v1312 = vpop.permute.xlu0 %1311
    %v1314 = vmul.f32 %v1309, %v1312
    %v1315 = vmul.f32 %v1297, 0.0
    %v1316 = vadd.f32 %v1314, %v1315
    %1318 = vrot.lane.b32.xlu0 %v1316, 96
    %v1319 = vpop.permute.xlu0 %1318
    %v1320 = vsel %vm271, %v1319, 0
    %1322 = vmatprep.subr.mxu0 0.0
    %1323 = vmatpush1.msra.mxu0 0.0
    %1324 = vmatprep.subr.mxu0 0.0
    %1325 = vmatpush1.msra.mxu0 0.0
    %1326 = vmatprep.subr.mxu0 0.0
    %1327 = vmatpush1.msra.mxu0 0.0
    %1328 = vmatprep.subr.mxu0 0.0
    %1329 = vmatpush1.msra.mxu0 0.0
    %1330 = vmatprep.subr.mxu0 0.0
    %1331 = vmatpush1.msra.mxu0 0.0
    %1332 = vmatprep.subr.mxu0 0.0
    %1333 = vmatpush1.msra.mxu0 0.0
    %1334 = vmatprep.subr.mxu0 0.0
    %1335 = vmatpush1.msra.mxu0 0.0
    %1336 = vmatprep.subr.mxu0 0.0
    %1337 = vmatpush1.msra.mxu0 0.0
    %1338 = vmatprep.subr.mxu0 0.0
    %1339 = vmatpush1.msra.mxu0 0.0
    %1340 = vmatprep.subr.mxu0 0.0
    %1341 = vmatpush1.msra.mxu0 0.0
    %1342 = vmatprep.subr.mxu0 0.0
    %1343 = vmatpush1.msra.mxu0 0.0
    %1344 = vmatprep.subr.mxu0 0.0
    %1345 = vmatpush1.msra.mxu0 0.0
    %1346 = vmatprep.subr.mxu0 0.0
    %1347 = vmatpush1.msra.mxu0 %v1121
    %1348 = vmatprep.subr.mxu0 0.0
    %1349 = vmatpush1.msra.mxu0 %v1120
    %1350 = vmatprep.subr.mxu0 0.0
    %1351 = vmatpush1.msra.mxu0 %v1119
    %1352 = vmatprep.subr.mxu0 0.0
    %1353 = vmatpush1.msra.mxu0 %v1118
    %1354 = vmatprep.subr.mxu0 0.0
    %1355 = vmatpush2.msra.mxu0 0.0
    %1356 = vmatprep.subr.mxu0 0.0
    %1357 = vmatpush2.msra.mxu0 0.0
    %1358 = vmatprep.subr.mxu0 0.0
    %1359 = vmatpush2.msra.mxu0 0.0
    %1360 = vmatprep.subr.mxu0 0.0
    %1361 = vmatpush2.msra.mxu0 0.0
    %1362 = vmatprep.subr.mxu0 0.0
    %1363 = vmatpush2.msra.mxu0 0.0
    %1364 = vmatprep.subr.mxu0 0.0
    %1365 = vmatpush2.msra.mxu0 0.0
    %1366 = vmatprep.subr.mxu0 0.0
    %1367 = vmatpush2.msra.mxu0 0.0
    %1368 = vmatprep.subr.mxu0 0.0
    %1369 = vmatpush2.msra.mxu0 0.0
    %1370 = vmatprep.subr.mxu0 0.0
    %1371 = vmatpush2.msra.mxu0 0.0
    %1372 = vmatprep.subr.mxu0 0.0
    %1373 = vmatpush2.msra.mxu0 0.0
    %1374 = vmatprep.subr.mxu0 0.0
    %1375 = vmatpush2.msra.mxu0 0.0
    %1376 = vmatprep.subr.mxu0 0.0
    %1377 = vmatpush2.msra.mxu0 0.0
    %1378 = vmatprep.subr.mxu0 0.0
    %1379 = vmatpush2.msra.mxu0 0.0
    %1380 = vmatprep.subr.mxu0 0.0
    %1381 = vmatpush2.msra.mxu0 0.0
    %1382 = vmatprep.subr.mxu0 0.0
    %1383 = vmatpush2.msra.mxu0 0.0
    %1384 = vmatprep.subr.mxu0 0.0
    %1385 = vmatpush2.msra.mxu0 0.0
    %1386 = vmatprep.mubr.f32.mxu0 0.0
    %1387 = vmatmul.mubr.f32.gmra.mxu0 %v1320
    %v1388 = vpop.f32.mrf.mxu0
    %v1389 = vadd.f32 %v1219, %v1388
    %v1390 = vpop.f32.mrf.mxu0
    %1391 = vdwg.mxu0
    %v1393 = vrot.slane %v1389, 6
    %v1395 = vadd.f32 %v1207, %v1393
    %v1396 = vxor.u32 %v1395, 2147483648
    %v1397 = vmul.f32 %v1396, 1.442695
    %v1398 = vpow.pop %v1397
    %v1399 = vadd.f32 %v1398, 1.0
    %v1400 = vrcp.pop %v1399
    %v1401 = vmul.f32 1.0, %v1400
    %1402 = vrot.lane.b32.xlu0 %v1393, 64
    %v1403 = vpop.permute.xlu0 %1402
    %v1405 = vmul.f32 %v1401, %v1403
    %1407 = vrot.lane.b32.xlu0 %v1405, 64
    %v1408 = vpop.permute.xlu0 %1407
    %v1410 = vadd.f32 %v1207, %v1408
    %v1411 = vtanh.pop %v1410
    %v1412 = vsub.f32 1.0, %v1401
    %1414 = vrot.lane.b32.xlu0 %v1411, 96
    %v1415 = vpop.permute.xlu0 %1414
    %v1417 = vmul.f32 %v1412, %v1415
    %v1418 = vrot.slane %v1316, 6
    %v1420 = vmul.f32 %v1401, %v1418
    %v1421 = vadd.f32 %v1417, %v1420
    %v1423 = vrot.slane %v1421, 2
    %1424 = vrot.lane.b32.xlu0 %v1423, 96
    %v1425 = vpop.permute.xlu0 %1424
    %v1426 = vsel %vm271, %v1425, 0
    %1428 = vmatprep.subr.mxu0 0.0
    %1429 = vmatpush1.msra.mxu0 0.0
    %1430 = vmatprep.subr.mxu0 0.0
    %1431 = vmatpush1.msra.mxu0 0.0
    %1432 = vmatprep.subr.mxu0 0.0
    %1433 = vmatpush1.msra.mxu0 0.0
    %1434 = vmatprep.subr.mxu0 0.0
    %1435 = vmatpush1.msra.mxu0 0.0
    %1436 = vmatprep.subr.mxu0 0.0
    %1437 = vmatpush1.msra.mxu0 0.0
    %1438 = vmatprep.subr.mxu0 0.0
    %1439 = vmatpush1.msra.mxu0 0.0
    %1440 = vmatprep.subr.mxu0 0.0
    %1441 = vmatpush1.msra.mxu0 0.0
    %1442 = vmatprep.subr.mxu0 0.0
    %1443 = vmatpush1.msra.mxu0 0.0
    %1444 = vmatprep.subr.mxu0 0.0
    %1445 = vmatpush1.msra.mxu0 0.0
    %1446 = vmatprep.subr.mxu0 0.0
    %1447 = vmatpush1.msra.mxu0 0.0
    %1448 = vmatprep.subr.mxu0 0.0
    %1449 = vmatpush1.msra.mxu0 0.0
    %1450 = vmatprep.subr.mxu0 0.0
    %1451 = vmatpush1.msra.mxu0 0.0
    %1452 = vmatprep.subr.mxu0 0.0
    %1453 = vmatpush1.msra.mxu0 %v1121
    %1454 = vmatprep.subr.mxu0 0.0
    %1455 = vmatpush1.msra.mxu0 %v1120
    %1456 = vmatprep.subr.mxu0 0.0
    %1457 = vmatpush1.msra.mxu0 %v1119
    %1458 = vmatprep.subr.mxu0 0.0
    %1459 = vmatpush1.msra.mxu0 %v1118
    %1460 = vmatprep.subr.mxu0 0.0
    %1461 = vmatpush2.msra.mxu0 0.0
    %1462 = vmatprep.subr.mxu0 0.0
    %1463 = vmatpush2.msra.mxu0 0.0
    %1464 = vmatprep.subr.mxu0 0.0
    %1465 = vmatpush2.msra.mxu0 0.0
    %1466 = vmatprep.subr.mxu0 0.0
    %1467 = vmatpush2.msra.mxu0 0.0
    %1468 = vmatprep.subr.mxu0 0.0
    %1469 = vmatpush2.msra.mxu0 0.0
    %1470 = vmatprep.subr.mxu0 0.0
    %1471 = vmatpush2.msra.mxu0 0.0
    %1472 = vmatprep.subr.mxu0 0.0
    %1473 = vmatpush2.msra.mxu0 0.0
    %1474 = vmatprep.subr.mxu0 0.0
    %1475 = vmatpush2.msra.mxu0 0.0
    %1476 = vmatprep.subr.mxu0 0.0
    %1477 = vmatpush2.msra.mxu0 0.0
    %1478 = vmatprep.subr.mxu0 0.0
    %1479 = vmatpush2.msra.mxu0 0.0
    %1480 = vmatprep.subr.mxu0 0.0
    %1481 = vmatpush2.msra.mxu0 0.0
    %1482 = vmatprep.subr.mxu0 0.0
    %1483 = vmatpush2.msra.mxu0 0.0
    %1484 = vmatprep.subr.mxu0 0.0
    %1485 = vmatpush2.msra.mxu0 0.0
    %1486 = vmatprep.subr.mxu0 0.0
    %1487 = vmatpush2.msra.mxu0 0.0
    %1488 = vmatprep.subr.mxu0 0.0
    %1489 = vmatpush2.msra.mxu0 0.0
    %1490 = vmatprep.subr.mxu0 0.0
    %1491 = vmatpush2.msra.mxu0 0.0
    %1492 = vmatprep.mubr.f32.mxu0 0.0
    %1493 = vmatmul.mubr.f32.gmra.mxu0 %v1426
    %v1494 = vpop.f32.mrf.mxu0
    %v1495 = vadd.f32 %v1219, %v1494
    %v1496 = vpop.f32.mrf.mxu0
    %1497 = vdwg.mxu0
    %v1499 = vrot.slane %v1495, 4
    %v1501 = vadd.f32 %v1207, %v1499
    %v1502 = vxor.u32 %v1501, 2147483648
    %v1503 = vmul.f32 %v1502, 1.442695
    %v1504 = vpow.pop %v1503
    %v1505 = vadd.f32 %v1504, 1.0
    %v1506 = vrcp.pop %v1505
    %v1507 = vmul.f32 1.0, %v1506
    %1508 = vrot.lane.b32.xlu0 %v1499, 64
    %v1509 = vpop.permute.xlu0 %1508
    %v1511 = vmul.f32 %v1507, %v1509
    %1513 = vrot.lane.b32.xlu0 %v1511, 64
    %v1514 = vpop.permute.xlu0 %1513
    %v1516 = vadd.f32 %v1207, %v1514
    %v1517 = vtanh.pop %v1516
    %v1518 = vsub.f32 1.0, %v1507
    %1520 = vrot.lane.b32.xlu0 %v1517, 96
    %v1521 = vpop.permute.xlu0 %1520
    %v1523 = vmul.f32 %v1518, %v1521
    %v1524 = vrot.slane %v1421, 6
    %v1526 = vmul.f32 %v1507, %v1524
    %v1527 = vadd.f32 %v1523, %v1526
    %v1529 = vrot.slane %v1527, 4
    %1530 = vrot.lane.b32.xlu0 %v1529, 96
    %v1531 = vpop.permute.xlu0 %1530
    %v1532 = vsel %vm271, %v1531, 0
    %1534 = vmatprep.subr.mxu0 0.0
    %1535 = vmatpush1.msra.mxu0 0.0
    %1536 = vmatprep.subr.mxu0 0.0
    %1537 = vmatpush1.msra.mxu0 0.0
    %1538 = vmatprep.subr.mxu0 0.0
    %1539 = vmatpush1.msra.mxu0 0.0
    %1540 = vmatprep.subr.mxu0 0.0
    %1541 = vmatpush1.msra.mxu0 0.0
    %1542 = vmatprep.subr.mxu0 0.0
    %1543 = vmatpush1.msra.mxu0 0.0
    %1544 = vmatprep.subr.mxu0 0.0
    %1545 = vmatpush1.msra.mxu0 0.0
    %1546 = vmatprep.subr.mxu0 0.0
    %1547 = vmatpush1.msra.mxu0 0.0
    %1548 = vmatprep.subr.mxu0 0.0
    %1549 = vmatpush1.msra.mxu0 0.0
    %1550 = vmatprep.subr.mxu0 0.0
    %1551 = vmatpush1.msra.mxu0 0.0
    %1552 = vmatprep.subr.mxu0 0.0
    %1553 = vmatpush1.msra.mxu0 0.0
    %1554 = vmatprep.subr.mxu0 0.0
    %1555 = vmatpush1.msra.mxu0 0.0
    %1556 = vmatprep.subr.mxu0 0.0
    %1557 = vmatpush1.msra.mxu0 0.0
    %1558 = vmatprep.subr.mxu0 0.0
    %1559 = vmatpush1.msra.mxu0 %v1121
    %1560 = vmatprep.subr.mxu0 0.0
    %1561 = vmatpush1.msra.mxu0 %v1120
    %1562 = vmatprep.subr.mxu0 0.0
    %1563 = vmatpush1.msra.mxu0 %v1119
    %1564 = vmatprep.subr.mxu0 0.0
    %1565 = vmatpush1.msra.mxu0 %v1118
    %1566 = vmatprep.subr.mxu0 0.0
    %1567 = vmatpush2.msra.mxu0 0.0
    %1568 = vmatprep.subr.mxu0 0.0
    %1569 = vmatpush2.msra.mxu0 0.0
    %1570 = vmatprep.subr.mxu0 0.0
    %1571 = vmatpush2.msra.mxu0 0.0
    %1572 = vmatprep.subr.mxu0 0.0
    %1573 = vmatpush2.msra.mxu0 0.0
    %1574 = vmatprep.subr.mxu0 0.0
    %1575 = vmatpush2.msra.mxu0 0.0
    %1576 = vmatprep.subr.mxu0 0.0
    %1577 = vmatpush2.msra.mxu0 0.0
    %1578 = vmatprep.subr.mxu0 0.0
    %1579 = vmatpush2.msra.mxu0 0.0
    %1580 = vmatprep.subr.mxu0 0.0
    %1581 = vmatpush2.msra.mxu0 0.0
    %1582 = vmatprep.subr.mxu0 0.0
    %1583 = vmatpush2.msra.mxu0 0.0
    %1584 = vmatprep.subr.mxu0 0.0
    %1585 = vmatpush2.msra.mxu0 0.0
    %1586 = vmatprep.subr.mxu0 0.0
    %1587 = vmatpush2.msra.mxu0 0.0
    %1588 = vmatprep.subr.mxu0 0.0
    %1589 = vmatpush2.msra.mxu0 0.0
    %1590 = vmatprep.subr.mxu0 0.0
    %1591 = vmatpush2.msra.mxu0 0.0
    %1592 = vmatprep.subr.mxu0 0.0
    %1593 = vmatpush2.msra.mxu0 0.0
    %1594 = vmatprep.subr.mxu0 0.0
    %1595 = vmatpush2.msra.mxu0 0.0
    %1596 = vmatprep.subr.mxu0 0.0
    %1597 = vmatpush2.msra.mxu0 0.0
    %1598 = vmatprep.mubr.f32.mxu0 0.0
    %1599 = vmatmul.mubr.f32.gmra.mxu0 %v1532
    %v1600 = vpop.f32.mrf.mxu0
    %v1601 = vadd.f32 %v1219, %v1600
    %v1602 = vpop.f32.mrf.mxu0
    %1603 = vdwg.mxu0
    %v1605 = vrot.slane %v1601, 2
    %v1607 = vadd.f32 %v1207, %v1605
    %v1608 = vxor.u32 %v1607, 2147483648
    %v1609 = vmul.f32 %v1608, 1.442695
    %v1610 = vpow.pop %v1609
    %v1611 = vadd.f32 %v1610, 1.0
    %v1612 = vrcp.pop %v1611
    %v1613 = vmul.f32 1.0, %v1612
    %1614 = vrot.lane.b32.xlu0 %v1605, 64
    %v1615 = vpop.permute.xlu0 %1614
    %v1617 = vmul.f32 %v1613, %v1615
    %1619 = vrot.lane.b32.xlu0 %v1617, 64
    %v1620 = vpop.permute.xlu0 %1619
    %v1622 = vadd.f32 %v1207, %v1620
    %v1623 = vtanh.pop %v1622
    %v1624 = vsub.f32 1.0, %v1613
    %1626 = vrot.lane.b32.xlu0 %v1623, 96
    %v1627 = vpop.permute.xlu0 %1626
    %v1629 = vmul.f32 %v1624, %v1627
    %v1630 = vrot.slane %v1527, 6
    %v1632 = vmul.f32 %v1613, %v1630
    %v1633 = vadd.f32 %v1629, %v1632
    %v1635 = vrot.slane %v1633, 6
    %1636 = vrot.lane.b32.xlu0 %v1635, 96
    %v1637 = vpop.permute.xlu0 %1636
    %v1638 = vsel %vm271, %v1637, 0
    %1640 = vmatprep.subr.mxu0 0.0
    %1641 = vmatpush1.msra.mxu0 0.0
    %1642 = vmatprep.subr.mxu0 0.0
    %1643 = vmatpush1.msra.mxu0 0.0
    %1644 = vmatprep.subr.mxu0 0.0
    %1645 = vmatpush1.msra.mxu0 0.0
    %1646 = vmatprep.subr.mxu0 0.0
    %1647 = vmatpush1.msra.mxu0 0.0
    %1648 = vmatprep.subr.mxu0 0.0
    %1649 = vmatpush1.msra.mxu0 0.0
    %1650 = vmatprep.subr.mxu0 0.0
    %1651 = vmatpush1.msra.mxu0 0.0
    %1652 = vmatprep.subr.mxu0 0.0
    %1653 = vmatpush1.msra.mxu0 0.0
    %1654 = vmatprep.subr.mxu0 0.0
    %1655 = vmatpush1.msra.mxu0 0.0
    %1656 = vmatprep.subr.mxu0 0.0
    %1657 = vmatpush1.msra.mxu0 0.0
    %1658 = vmatprep.subr.mxu0 0.0
    %1659 = vmatpush1.msra.mxu0 0.0
    %1660 = vmatprep.subr.mxu0 0.0
    %1661 = vmatpush1.msra.mxu0 0.0
    %1662 = vmatprep.subr.mxu0 0.0
    %1663 = vmatpush1.msra.mxu0 0.0
    %1664 = vmatprep.subr.mxu0 0.0
    %1665 = vmatpush1.msra.mxu0 %v1121
    %1666 = vmatprep.subr.mxu0 0.0
    %1667 = vmatpush1.msra.mxu0 %v1120
    %1668 = vmatprep.subr.mxu0 0.0
    %1669 = vmatpush1.msra.mxu0 %v1119
    %1670 = vmatprep.subr.mxu0 0.0
    %1671 = vmatpush1.msra.mxu0 %v1118
    %1672 = vmatprep.subr.mxu0 0.0
    %1673 = vmatpush2.msra.mxu0 0.0
    %1674 = vmatprep.subr.mxu0 0.0
    %1675 = vmatpush2.msra.mxu0 0.0
    %1676 = vmatprep.subr.mxu0 0.0
    %1677 = vmatpush2.msra.mxu0 0.0
    %1678 = vmatprep.subr.mxu0 0.0
    %1679 = vmatpush2.msra.mxu0 0.0
    %1680 = vmatprep.subr.mxu0 0.0
    %1681 = vmatpush2.msra.mxu0 0.0
    %1682 = vmatprep.subr.mxu0 0.0
    %1683 = vmatpush2.msra.mxu0 0.0
    %1684 = vmatprep.subr.mxu0 0.0
    %1685 = vmatpush2.msra.mxu0 0.0
    %1686 = vmatprep.subr.mxu0 0.0
    %1687 = vmatpush2.msra.mxu0 0.0
    %1688 = vmatprep.subr.mxu0 0.0
    %1689 = vmatpush2.msra.mxu0 0.0
    %1690 = vmatprep.subr.mxu0 0.0
    %1691 = vmatpush2.msra.mxu0 0.0
    %1692 = vmatprep.subr.mxu0 0.0
    %1693 = vmatpush2.msra.mxu0 0.0
    %1694 = vmatprep.subr.mxu0 0.0
    %1695 = vmatpush2.msra.mxu0 0.0
    %1696 = vmatprep.subr.mxu0 0.0
    %1697 = vmatpush2.msra.mxu0 0.0
    %1698 = vmatprep.subr.mxu0 0.0
    %1699 = vmatpush2.msra.mxu0 0.0
    %1700 = vmatprep.subr.mxu0 0.0
    %1701 = vmatpush2.msra.mxu0 0.0
    %1702 = vmatprep.subr.mxu0 0.0
    %1703 = vmatpush2.msra.mxu0 0.0
    %1704 = vmatprep.mubr.f32.mxu0 0.0
    %1705 = vmatmul.mubr.f32.gmra.mxu0 %v1638
    %v1706 = vpop.f32.mrf.mxu0
    %v1707 = vadd.f32 %v1219, %v1706
    %v1708 = vpop.f32.mrf.mxu0
    %1709 = vdwg.mxu0
    %v1710 = vadd.f32 %v1212, %v1707
    %v1711 = vxor.u32 %v1710, 2147483648
    %v1712 = vmul.f32 %v1711, 1.442695
    %v1713 = vpow.pop %v1712
    %v1714 = vadd.f32 %v1713, 1.0
    %v1715 = vrcp.pop %v1714
    %v1716 = vmul.f32 1.0, %v1715
    %1718 = vrot.lane.b32.xlu0 %v1707, 64
    %v1719 = vpop.permute.xlu0 %1718
    %v1721 = vmul.f32 %v1716, %v1719
    %1723 = vrot.lane.b32.xlu0 %v1721, 64
    %v1724 = vpop.permute.xlu0 %1723
    %v1726 = vadd.f32 %v1212, %v1724
    %v1727 = vtanh.pop %v1726
    %v1728 = vsub.f32 1.0, %v1716
    %1730 = vrot.lane.b32.xlu0 %v1727, 96
    %v1731 = vpop.permute.xlu0 %1730
    %v1733 = vmul.f32 %v1728, %v1731
    %v1735 = vmul.f32 %v1716, %v1635
    %v1736 = vadd.f32 %v1733, %v1735
    %1738 = vrot.lane.b32.xlu0 %v1736, 96
    %v1739 = vpop.permute.xlu0 %1738
    %v1740 = vsel %vm271, %v1739, 0
    %1742 = vmatprep.subr.mxu0 0.0
    %1743 = vmatpush1.msra.mxu0 0.0
    %1744 = vmatprep.subr.mxu0 0.0
    %1745 = vmatpush1.msra.mxu0 0.0
    %1746 = vmatprep.subr.mxu0 0.0
    %1747 = vmatpush1.msra.mxu0 0.0
    %1748 = vmatprep.subr.mxu0 0.0
    %1749 = vmatpush1.msra.mxu0 0.0
    %1750 = vmatprep.subr.mxu0 0.0
    %1751 = vmatpush1.msra.mxu0 0.0
    %1752 = vmatprep.subr.mxu0 0.0
    %1753 = vmatpush1.msra.mxu0 0.0
    %1754 = vmatprep.subr.mxu0 0.0
    %1755 = vmatpush1.msra.mxu0 0.0
    %1756 = vmatprep.subr.mxu0 0.0
    %1757 = vmatpush1.msra.mxu0 0.0
    %1758 = vmatprep.subr.mxu0 0.0
    %1759 = vmatpush1.msra.mxu0 0.0
    %1760 = vmatprep.subr.mxu0 0.0
    %1761 = vmatpush1.msra.mxu0 0.0
    %1762 = vmatprep.subr.mxu0 0.0
    %1763 = vmatpush1.msra.mxu0 0.0
    %1764 = vmatprep.subr.mxu0 0.0
    %1765 = vmatpush1.msra.mxu0 0.0
    %1766 = vmatprep.subr.mxu0 0.0
    %1767 = vmatpush1.msra.mxu0 %v1121
    %1768 = vmatprep.subr.mxu0 0.0
    %1769 = vmatpush1.msra.mxu0 %v1120
    %1770 = vmatprep.subr.mxu0 0.0
    %1771 = vmatpush1.msra.mxu0 %v1119
    %1772 = vmatprep.subr.mxu0 0.0
    %1773 = vmatpush1.msra.mxu0 %v1118
    %1774 = vmatprep.subr.mxu0 0.0
    %1775 = vmatpush2.msra.mxu0 0.0
    %1776 = vmatprep.subr.mxu0 0.0
    %1777 = vmatpush2.msra.mxu0 0.0
    %1778 = vmatprep.subr.mxu0 0.0
    %1779 = vmatpush2.msra.mxu0 0.0
    %1780 = vmatprep.subr.mxu0 0.0
    %1781 = vmatpush2.msra.mxu0 0.0
    %1782 = vmatprep.subr.mxu0 0.0
    %1783 = vmatpush2.msra.mxu0 0.0
    %1784 = vmatprep.subr.mxu0 0.0
    %1785 = vmatpush2.msra.mxu0 0.0
    %1786 = vmatprep.subr.mxu0 0.0
    %1787 = vmatpush2.msra.mxu0 0.0
    %1788 = vmatprep.subr.mxu0 0.0
    %1789 = vmatpush2.msra.mxu0 0.0
    %1790 = vmatprep.subr.mxu0 0.0
    %1791 = vmatpush2.msra.mxu0 0.0
    %1792 = vmatprep.subr.mxu0 0.0
    %1793 = vmatpush2.msra.mxu0 0.0
    %1794 = vmatprep.subr.mxu0 0.0
    %1795 = vmatpush2.msra.mxu0 0.0
    %1796 = vmatprep.subr.mxu0 0.0
    %1797 = vmatpush2.msra.mxu0 0.0
    %1798 = vmatprep.subr.mxu0 0.0
    %1799 = vmatpush2.msra.mxu0 0.0
    %1800 = vmatprep.subr.mxu0 0.0
    %1801 = vmatpush2.msra.mxu0 0.0
    %1802 = vmatprep.subr.mxu0 0.0
    %1803 = vmatpush2.msra.mxu0 0.0
    %1804 = vmatprep.subr.mxu0 0.0
    %1805 = vmatpush2.msra.mxu0 0.0
    %1806 = vmatprep.mubr.f32.mxu0 0.0
    %1807 = vmatmul.mubr.f32.gmra.mxu0 %v1740
    %v1808 = vpop.f32.mrf.mxu0
    %v1809 = vadd.f32 %v1219, %v1808
    %v1810 = vpop.f32.mrf.mxu0
    %1811 = vdwg.mxu0
    %v1813 = vrot.slane %v1809, 6
    %v1815 = vadd.f32 %v1212, %v1813
    %v1816 = vxor.u32 %v1815, 2147483648
    %v1817 = vmul.f32 %v1816, 1.442695
    %v1818 = vpow.pop %v1817
    %v1819 = vadd.f32 %v1818, 1.0
    %v1820 = vrcp.pop %v1819
    %v1821 = vmul.f32 1.0, %v1820
    %1822 = vrot.lane.b32.xlu0 %v1813, 64
    %v1823 = vpop.permute.xlu0 %1822
    %v1825 = vmul.f32 %v1821, %v1823
    %1827 = vrot.lane.b32.xlu0 %v1825, 64
    %v1828 = vpop.permute.xlu0 %1827
    %v1830 = vadd.f32 %v1212, %v1828
    %v1831 = vtanh.pop %v1830
    %v1832 = vsub.f32 1.0, %v1821
    %1834 = vrot.lane.b32.xlu0 %v1831, 96
    %v1835 = vpop.permute.xlu0 %1834
    %v1837 = vmul.f32 %v1832, %v1835
    %v1838 = vrot.slane %v1736, 6
    %v1840 = vmul.f32 %v1821, %v1838
    %v1841 = vadd.f32 %v1837, %v1840
    %v1843 = vrot.slane %v1841, 2
    %1844 = vrot.lane.b32.xlu0 %v1843, 96
    %v1845 = vpop.permute.xlu0 %1844
    %v1846 = vsel %vm271, %v1845, 0
    %1848 = vmatprep.subr.mxu0 0.0
    %1849 = vmatpush1.msra.mxu0 0.0
    %1850 = vmatprep.subr.mxu0 0.0
    %1851 = vmatpush1.msra.mxu0 0.0
    %1852 = vmatprep.subr.mxu0 0.0
    %1853 = vmatpush1.msra.mxu0 0.0
    %1854 = vmatprep.subr.mxu0 0.0
    %1855 = vmatpush1.msra.mxu0 0.0
    %1856 = vmatprep.subr.mxu0 0.0
    %1857 = vmatpush1.msra.mxu0 0.0
    %1858 = vmatprep.subr.mxu0 0.0
    %1859 = vmatpush1.msra.mxu0 0.0
    %1860 = vmatprep.subr.mxu0 0.0
    %1861 = vmatpush1.msra.mxu0 0.0
    %1862 = vmatprep.subr.mxu0 0.0
    %1863 = vmatpush1.msra.mxu0 0.0
    %1864 = vmatprep.subr.mxu0 0.0
    %1865 = vmatpush1.msra.mxu0 0.0
    %1866 = vmatprep.subr.mxu0 0.0
    %1867 = vmatpush1.msra.mxu0 0.0
    %1868 = vmatprep.subr.mxu0 0.0
    %1869 = vmatpush1.msra.mxu0 0.0
    %1870 = vmatprep.subr.mxu0 0.0
    %1871 = vmatpush1.msra.mxu0 0.0
    %1872 = vmatprep.subr.mxu0 0.0
    %1873 = vmatpush1.msra.mxu0 %v1121
    %1874 = vmatprep.subr.mxu0 0.0
    %1875 = vmatpush1.msra.mxu0 %v1120
    %1876 = vmatprep.subr.mxu0 0.0
    %1877 = vmatpush1.msra.mxu0 %v1119
    %1878 = vmatprep.subr.mxu0 0.0
    %1879 = vmatpush1.msra.mxu0 %v1118
    %1880 = vmatprep.subr.mxu0 0.0
    %1881 = vmatpush2.msra.mxu0 0.0
    %1882 = vmatprep.subr.mxu0 0.0
    %1883 = vmatpush2.msra.mxu0 0.0
    %1884 = vmatprep.subr.mxu0 0.0
    %1885 = vmatpush2.msra.mxu0 0.0
    %1886 = vmatprep.subr.mxu0 0.0
    %1887 = vmatpush2.msra.mxu0 0.0
    %1888 = vmatprep.subr.mxu0 0.0
    %1889 = vmatpush2.msra.mxu0 0.0
    %1890 = vmatprep.subr.mxu0 0.0
    %1891 = vmatpush2.msra.mxu0 0.0
    %1892 = vmatprep.subr.mxu0 0.0
    %1893 = vmatpush2.msra.mxu0 0.0
    %1894 = vmatprep.subr.mxu0 0.0
    %1895 = vmatpush2.msra.mxu0 0.0
    %1896 = vmatprep.subr.mxu0 0.0
    %1897 = vmatpush2.msra.mxu0 0.0
    %1898 = vmatprep.subr.mxu0 0.0
    %1899 = vmatpush2.msra.mxu0 0.0
    %1900 = vmatprep.subr.mxu0 0.0
    %1901 = vmatpush2.msra.mxu0 0.0
    %1902 = vmatprep.subr.mxu0 0.0
    %1903 = vmatpush2.msra.mxu0 0.0
    %1904 = vmatprep.subr.mxu0 0.0
    %1905 = vmatpush2.msra.mxu0 0.0
    %1906 = vmatprep.subr.mxu0 0.0
    %1907 = vmatpush2.msra.mxu0 0.0
    %1908 = vmatprep.subr.mxu0 0.0
    %1909 = vmatpush2.msra.mxu0 0.0
    %1910 = vmatprep.subr.mxu0 0.0
    %1911 = vmatpush2.msra.mxu0 0.0
    %1912 = vmatprep.mubr.f32.mxu0 0.0
    %1913 = vmatmul.mubr.f32.gmra.mxu0 %v1846
    %v1914 = vpop.f32.mrf.mxu0
    %v1915 = vadd.f32 %v1219, %v1914
    %v1916 = vpop.f32.mrf.mxu0
    %1917 = vdwg.mxu0
    %v1919 = vrot.slane %v1915, 4
    %v1921 = vadd.f32 %v1212, %v1919
    %v1922 = vxor.u32 %v1921, 2147483648
    %v1923 = vmul.f32 %v1922, 1.442695
    %v1924 = vpow.pop %v1923
    %v1925 = vadd.f32 %v1924, 1.0
    %v1926 = vrcp.pop %v1925
    %v1927 = vmul.f32 1.0, %v1926
    %1928 = vrot.lane.b32.xlu0 %v1919, 64
    %v1929 = vpop.permute.xlu0 %1928
    %v1931 = vmul.f32 %v1927, %v1929
    %1933 = vrot.lane.b32.xlu0 %v1931, 64
    %v1934 = vpop.permute.xlu0 %1933
    %v1936 = vadd.f32 %v1212, %v1934
    %v1937 = vtanh.pop %v1936
    %v1938 = vsub.f32 1.0, %v1927
    %1940 = vrot.lane.b32.xlu0 %v1937, 96
    %v1941 = vpop.permute.xlu0 %1940
    %v1943 = vmul.f32 %v1938, %v1941
    %v1944 = vrot.slane %v1841, 6
    %v1946 = vmul.f32 %v1927, %v1944
    %v1947 = vadd.f32 %v1943, %v1946
    %v1949 = vrot.slane %v1947, 4
    %1950 = vrot.lane.b32.xlu0 %v1949, 96
    %v1951 = vpop.permute.xlu0 %1950
    %v1952 = vsel %vm271, %v1951, 0
    %1954 = vmatprep.subr.mxu0 0.0
    %1955 = vmatpush1.msra.mxu0 0.0
    %1956 = vmatprep.subr.mxu0 0.0
    %1957 = vmatpush1.msra.mxu0 0.0
    %1958 = vmatprep.subr.mxu0 0.0
    %1959 = vmatpush1.msra.mxu0 0.0
    %1960 = vmatprep.subr.mxu0 0.0
    %1961 = vmatpush1.msra.mxu0 0.0
    %1962 = vmatprep.subr.mxu0 0.0
    %1963 = vmatpush1.msra.mxu0 0.0
    %1964 = vmatprep.subr.mxu0 0.0
    %1965 = vmatpush1.msra.mxu0 0.0
    %1966 = vmatprep.subr.mxu0 0.0
    %1967 = vmatpush1.msra.mxu0 0.0
    %1968 = vmatprep.subr.mxu0 0.0
    %1969 = vmatpush1.msra.mxu0 0.0
    %1970 = vmatprep.subr.mxu0 0.0
    %1971 = vmatpush1.msra.mxu0 0.0
    %1972 = vmatprep.subr.mxu0 0.0
    %1973 = vmatpush1.msra.mxu0 0.0
    %1974 = vmatprep.subr.mxu0 0.0
    %1975 = vmatpush1.msra.mxu0 0.0
    %1976 = vmatprep.subr.mxu0 0.0
    %1977 = vmatpush1.msra.mxu0 0.0
    %1978 = vmatprep.subr.mxu0 0.0
    %1979 = vmatpush1.msra.mxu0 %v1121
    %1980 = vmatprep.subr.mxu0 0.0
    %1981 = vmatpush1.msra.mxu0 %v1120
    %1982 = vmatprep.subr.mxu0 0.0
    %1983 = vmatpush1.msra.mxu0 %v1119
    %1984 = vmatprep.subr.mxu0 0.0
    %1985 = vmatpush1.msra.mxu0 %v1118
    %1986 = vmatprep.subr.mxu0 0.0
    %1987 = vmatpush2.msra.mxu0 0.0
    %1988 = vmatprep.subr.mxu0 0.0
    %1989 = vmatpush2.msra.mxu0 0.0
    %1990 = vmatprep.subr.mxu0 0.0
    %1991 = vmatpush2.msra.mxu0 0.0
    %1992 = vmatprep.subr.mxu0 0.0
    %1993 = vmatpush2.msra.mxu0 0.0
    %1994 = vmatprep.subr.mxu0 0.0
    %1995 = vmatpush2.msra.mxu0 0.0
    %1996 = vmatprep.subr.mxu0 0.0
    %1997 = vmatpush2.msra.mxu0 0.0
    %1998 = vmatprep.subr.mxu0 0.0
    %1999 = vmatpush2.msra.mxu0 0.0
    %2000 = vmatprep.subr.mxu0 0.0
    %2001 = vmatpush2.msra.mxu0 0.0
    %2002 = vmatprep.subr.mxu0 0.0
    %2003 = vmatpush2.msra.mxu0 0.0
    %2004 = vmatprep.subr.mxu0 0.0
    %2005 = vmatpush2.msra.mxu0 0.0
    %2006 = vmatprep.subr.mxu0 0.0
    %2007 = vmatpush2.msra.mxu0 0.0
    %2008 = vmatprep.subr.mxu0 0.0
    %2009 = vmatpush2.msra.mxu0 0.0
    %2010 = vmatprep.subr.mxu0 0.0
    %2011 = vmatpush2.msra.mxu0 0.0
    %2012 = vmatprep.subr.mxu0 0.0
    %2013 = vmatpush2.msra.mxu0 0.0
    %2014 = vmatprep.subr.mxu0 0.0
    %2015 = vmatpush2.msra.mxu0 0.0
    %2016 = vmatprep.subr.mxu0 0.0
    %2017 = vmatpush2.msra.mxu0 0.0
    %2018 = vmatprep.mubr.f32.mxu0 0.0
    %2019 = vmatmul.mubr.f32.gmra.mxu0 %v1952
    %v2020 = vpop.f32.mrf.mxu0
    %v2021 = vadd.f32 %v1219, %v2020
    %v2022 = vpop.f32.mrf.mxu0
    %2023 = vdwg.mxu0
    %v2025 = vrot.slane %v2021, 2
    %v2027 = vadd.f32 %v1212, %v2025
    %v2028 = vxor.u32 %v2027, 2147483648
    %v2029 = vmul.f32 %v2028, 1.442695
    %v2030 = vpow.pop %v2029
    %v2031 = vadd.f32 %v2030, 1.0
    %v2032 = vrcp.pop %v2031
    %v2033 = vmul.f32 1.0, %v2032
    %2034 = vrot.lane.b32.xlu0 %v2025, 64
    %v2035 = vpop.permute.xlu0 %2034
    %v2037 = vmul.f32 %v2033, %v2035
    %2039 = vrot.lane.b32.xlu0 %v2037, 64
    %v2040 = vpop.permute.xlu0 %2039
    %v2042 = vadd.f32 %v1212, %v2040
    %v2043 = vtanh.pop %v2042
    %v2044 = vsub.f32 1.0, %v2033
    %2046 = vrot.lane.b32.xlu0 %v2043, 96
    %v2047 = vpop.permute.xlu0 %2046
    %v2049 = vmul.f32 %v2044, %v2047
    %v2050 = vrot.slane %v1947, 6
    %v2052 = vmul.f32 %v2033, %v2050
    %v2053 = vadd.f32 %v2049, %v2052
    %v2054 = vld [vmem:[%s9] sm:$0xff]
    %v2055 = vld [vmem:[%s9 + $0x8] sm:$0xff]
    %v2056 = vld [vmem:[%s9 + $0x10] sm:$0xff]
    %v2057 = vld [vmem:[%s9 + $0x18] sm:$0xff]
    %v2058 = vld [vmem:[%s10] sm:$0x1]
    %v2060 = vlaneseq
    %v2061 = vshrl.u32 %v2060, 7
    %v2062 = vsub.s32 0, %v2061
    %v2063 = vrot.slane %v2058, %v2062
    %v2066 = vrot.slane %v2053, 6
    %2067 = vrot.lane.b32.xlu0 %v2066, 96
    %v2068 = vpop.permute.xlu0 %2067
    %v2069 = vsel %vm271, %v2068, 0
    %2071 = vmatprep.subr.mxu0 0.0
    %2072 = vmatpush1.msra.mxu0 0.0
    %2073 = vmatprep.subr.mxu0 0.0
    %2074 = vmatpush1.msra.mxu0 0.0
    %2075 = vmatprep.subr.mxu0 0.0
    %2076 = vmatpush1.msra.mxu0 0.0
    %2077 = vmatprep.subr.mxu0 0.0
    %2078 = vmatpush1.msra.mxu0 0.0
    %2079 = vmatprep.subr.mxu0 0.0
    %2080 = vmatpush1.msra.mxu0 0.0
    %2081 = vmatprep.subr.mxu0 0.0
    %2082 = vmatpush1.msra.mxu0 0.0
    %2083 = vmatprep.subr.mxu0 0.0
    %2084 = vmatpush1.msra.mxu0 0.0
    %2085 = vmatprep.subr.mxu0 0.0
    %2086 = vmatpush1.msra.mxu0 0.0
    %2087 = vmatprep.subr.mxu0 0.0
    %2088 = vmatpush1.msra.mxu0 0.0
    %2089 = vmatprep.subr.mxu0 0.0
    %2090 = vmatpush1.msra.mxu0 0.0
    %2091 = vmatprep.subr.mxu0 0.0
    %2092 = vmatpush1.msra.mxu0 0.0
    %2093 = vmatprep.subr.mxu0 0.0
    %2094 = vmatpush1.msra.mxu0 0.0
    %2095 = vmatprep.subr.mxu0 0.0
    %2096 = vmatpush1.msra.mxu0 %v2057
    %2097 = vmatprep.subr.mxu0 0.0
    %2098 = vmatpush1.msra.mxu0 %v2056
    %2099 = vmatprep.subr.mxu0 0.0
    %2100 = vmatpush1.msra.mxu0 %v2055
    %2101 = vmatprep.subr.mxu0 0.0
    %2102 = vmatpush1.msra.mxu0 %v2054
    %2103 = vmatprep.subr.mxu0 0.0
    %2104 = vmatpush2.msra.mxu0 0.0
    %2105 = vmatprep.subr.mxu0 0.0
    %2106 = vmatpush2.msra.mxu0 0.0
    %2107 = vmatprep.subr.mxu0 0.0
    %2108 = vmatpush2.msra.mxu0 0.0
    %2109 = vmatprep.subr.mxu0 0.0
    %2110 = vmatpush2.msra.mxu0 0.0
    %2111 = vmatprep.subr.mxu0 0.0
    %2112 = vmatpush2.msra.mxu0 0.0
    %2113 = vmatprep.subr.mxu0 0.0
    %2114 = vmatpush2.msra.mxu0 0.0
    %2115 = vmatprep.subr.mxu0 0.0
    %2116 = vmatpush2.msra.mxu0 0.0
    %2117 = vmatprep.subr.mxu0 0.0
    %2118 = vmatpush2.msra.mxu0 0.0
    %2119 = vmatprep.subr.mxu0 0.0
    %2120 = vmatpush2.msra.mxu0 0.0
    %2121 = vmatprep.subr.mxu0 0.0
    %2122 = vmatpush2.msra.mxu0 0.0
    %2123 = vmatprep.subr.mxu0 0.0
    %2124 = vmatpush2.msra.mxu0 0.0
    %2125 = vmatprep.subr.mxu0 0.0
    %2126 = vmatpush2.msra.mxu0 0.0
    %2127 = vmatprep.subr.mxu0 0.0
    %2128 = vmatpush2.msra.mxu0 0.0
    %2129 = vmatprep.subr.mxu0 0.0
    %2130 = vmatpush2.msra.mxu0 0.0
    %2131 = vmatprep.subr.mxu0 0.0
    %2132 = vmatpush2.msra.mxu0 0.0
    %2133 = vmatprep.subr.mxu0 0.0
    %2134 = vmatpush2.msra.mxu0 0.0
    %2135 = vmatprep.mubr.f32.mxu0 0.0
    %2136 = vmatmul.mubr.f32.gmra.mxu0 %v2069
    %v2137 = vpop.f32.mrf.mxu0
    %v2138 = vadd.f32 %v2063, %v2137
    %v2139 = vpop.f32.mrf.mxu0
    %2140 = vdwg.mxu0
    %v2141 = vmax.f32 %v2138, 0.0
    %v2142 = vld [vmem:[%s11] sm:$0xff]
    %v2143 = vld [vmem:[%s11 + $0x8] sm:$0xff]
    %v2144 = vld [vmem:[%s11 + $0x10] sm:$0xff]
    %v2145 = vld [vmem:[%s11 + $0x18] sm:$0xff]
    %v2146 = vld [vmem:[%s11 + $0x20] sm:$0xff]
    %v2147 = vld [vmem:[%s11 + $0x28] sm:$0xff]
    %v2148 = vld [vmem:[%s11 + $0x30] sm:$0xff]
    %v2149 = vld [vmem:[%s11 + $0x38] sm:$0xff]
    %v2150 = vld [vmem:[%s11 + $0x40] sm:$0xff]
    %v2151 = vld [vmem:[%s11 + $0x48] sm:$0xff]
    %v2152 = vld [vmem:[%s11 + $0x50] sm:$0xff]
    %v2153 = vld [vmem:[%s11 + $0x58] sm:$0xff]
    %v2154 = vld [vmem:[%s11 + $0x60] sm:$0xff]
    %v2155 = vld [vmem:[%s11 + $0x68] sm:$0xff]
    %v2156 = vld [vmem:[%s11 + $0x70] sm:$0xff]
    %v2157 = vld [vmem:[%s11 + $0x78] sm:$0xff]
    %v2158 = vld [vmem:[%s12] sm:$0x1]
    %v2160 = vlaneseq
    %v2161 = vshrl.u32 %v2160, 7
    %v2162 = vsub.s32 0, %v2161
    %v2163 = vrot.slane %v2158, %v2162
    %2165 = vmatprep.subr.mxu0 0.0
    %2166 = vmatpush1.msra.mxu0 %v2157
    %2167 = vmatprep.subr.mxu0 0.0
    %2168 = vmatpush1.msra.mxu0 %v2156
    %2169 = vmatprep.subr.mxu0 0.0
    %2170 = vmatpush1.msra.mxu0 %v2155
    %2171 = vmatprep.subr.mxu0 0.0
    %2172 = vmatpush1.msra.mxu0 %v2154
    %2173 = vmatprep.subr.mxu0 0.0
    %2174 = vmatpush1.msra.mxu0 %v2153
    %2175 = vmatprep.subr.mxu0 0.0
    %2176 = vmatpush1.msra.mxu0 %v2152
    %2177 = vmatprep.subr.mxu0 0.0
    %2178 = vmatpush1.msra.mxu0 %v2151
    %2179 = vmatprep.subr.mxu0 0.0
    %2180 = vmatpush1.msra.mxu0 %v2150
    %2181 = vmatprep.subr.mxu0 0.0
    %2182 = vmatpush1.msra.mxu0 %v2149
    %2183 = vmatprep.subr.mxu0 0.0
    %2184 = vmatpush1.msra.mxu0 %v2148
    %2185 = vmatprep.subr.mxu0 0.0
    %2186 = vmatpush1.msra.mxu0 %v2147
    %2187 = vmatprep.subr.mxu0 0.0
    %2188 = vmatpush1.msra.mxu0 %v2146
    %2189 = vmatprep.subr.mxu0 0.0
    %2190 = vmatpush1.msra.mxu0 %v2145
    %2191 = vmatprep.subr.mxu0 0.0
    %2192 = vmatpush1.msra.mxu0 %v2144
    %2193 = vmatprep.subr.mxu0 0.0
    %2194 = vmatpush1.msra.mxu0 %v2143
    %2195 = vmatprep.subr.mxu0 0.0
    %2196 = vmatpush1.msra.mxu0 %v2142
    %2197 = vmatprep.subr.mxu0 0.0
    %2198 = vmatpush2.msra.mxu0 0.0
    %2199 = vmatprep.subr.mxu0 0.0
    %2200 = vmatpush2.msra.mxu0 0.0
    %2201 = vmatprep.subr.mxu0 0.0
    %2202 = vmatpush2.msra.mxu0 0.0
    %2203 = vmatprep.subr.mxu0 0.0
    %2204 = vmatpush2.msra.mxu0 0.0
    %2205 = vmatprep.subr.mxu0 0.0
    %2206 = vmatpush2.msra.mxu0 0.0
    %2207 = vmatprep.subr.mxu0 0.0
    %2208 = vmatpush2.msra.mxu0 0.0
    %2209 = vmatprep.subr.mxu0 0.0
    %2210 = vmatpush2.msra.mxu0 0.0
    %2211 = vmatprep.subr.mxu0 0.0
    %2212 = vmatpush2.msra.mxu0 0.0
    %2213 = vmatprep.subr.mxu0 0.0
    %2214 = vmatpush2.msra.mxu0 0.0
    %2215 = vmatprep.subr.mxu0 0.0
    %2216 = vmatpush2.msra.mxu0 0.0
    %2217 = vmatprep.subr.mxu0 0.0
    %2218 = vmatpush2.msra.mxu0 0.0
    %2219 = vmatprep.subr.mxu0 0.0
    %2220 = vmatpush2.msra.mxu0 0.0
    %2221 = vmatprep.subr.mxu0 0.0
    %2222 = vmatpush2.msra.mxu0 0.0
    %2223 = vmatprep.subr.mxu0 0.0
    %2224 = vmatpush2.msra.mxu0 0.0
    %2225 = vmatprep.subr.mxu0 0.0
    %2226 = vmatpush2.msra.mxu0 0.0
    %2227 = vmatprep.subr.mxu0 0.0
    %2228 = vmatpush2.msra.mxu0 0.0
    %2229 = vmatprep.mubr.f32.mxu0 0.0
    %2230 = vmatmul.mubr.f32.gmra.mxu0 %v2141
    %v2231 = vpop.f32.mrf.mxu0
    %v2232 = vadd.f32 %v2163, %v2231
    %v2233 = vpop.f32.mrf.mxu0
    %2234 = vdwg.mxu0
    %v2235 = vmax.f32 %v2232, 0.0
    %v2236 = vld [vmem:[%s13] sm:$0xff]
    %v2237 = vld [vmem:[%s13 + $0x8] sm:$0xff]
    %v2238 = vld [vmem:[%s13 + $0x10] sm:$0xff]
    %v2239 = vld [vmem:[%s13 + $0x18] sm:$0xff]
    %v2240 = vld [vmem:[%s13 + $0x20] sm:$0xff]
    %v2241 = vld [vmem:[%s13 + $0x28] sm:$0xff]
    %v2242 = vld [vmem:[%s13 + $0x30] sm:$0xff]
    %v2243 = vld [vmem:[%s13 + $0x38] sm:$0xff]
    %v2244 = vld [vmem:[%s14] sm:$0x1]
    %v2246 = vlaneseq
    %v2247 = vshrl.u32 %v2246, 7
    %v2248 = vsub.s32 0, %v2247
    %v2249 = vrot.slane %v2244, %v2248
    %vm2251 = vcmask 523264
    %v2253 = vsel %vm2251, %v2235, 0
    %2255 = vmatprep.subr.mxu0 0.0
    %2256 = vmatpush1.msra.mxu0 0.0
    %2257 = vmatprep.subr.mxu0 0.0
    %2258 = vmatpush1.msra.mxu0 0.0
    %2259 = vmatprep.subr.mxu0 0.0
    %2260 = vmatpush1.msra.mxu0 0.0
    %2261 = vmatprep.subr.mxu0 0.0
    %2262 = vmatpush1.msra.mxu0 0.0
    %2263 = vmatprep.subr.mxu0 0.0
    %2264 = vmatpush1.msra.mxu0 0.0
    %2265 = vmatprep.subr.mxu0 0.0
    %2266 = vmatpush1.msra.mxu0 0.0
    %2267 = vmatprep.subr.mxu0 0.0
    %2268 = vmatpush1.msra.mxu0 0.0
    %2269 = vmatprep.subr.mxu0 0.0
    %2270 = vmatpush1.msra.mxu0 0.0
    %2271 = vmatprep.subr.mxu0 0.0
    %2272 = vmatpush1.msra.mxu0 %v2243
    %2273 = vmatprep.subr.mxu0 0.0
    %2274 = vmatpush1.msra.mxu0 %v2242
    %2275 = vmatprep.subr.mxu0 0.0
    %2276 = vmatpush1.msra.mxu0 %v2241
    %2277 = vmatprep.subr.mxu0 0.0
    %2278 = vmatpush1.msra.mxu0 %v2240
    %2279 = vmatprep.subr.mxu0 0.0
    %2280 = vmatpush1.msra.mxu0 %v2239
    %2281 = vmatprep.subr.mxu0 0.0
    %2282 = vmatpush1.msra.mxu0 %v2238
    %2283 = vmatprep.subr.mxu0 0.0
    %2284 = vmatpush1.msra.mxu0 %v2237
    %2285 = vmatprep.subr.mxu0 0.0
    %2286 = vmatpush1.msra.mxu0 %v2236
    %2287 = vmatprep.subr.mxu0 0.0
    %2288 = vmatpush2.msra.mxu0 0.0
    %2289 = vmatprep.subr.mxu0 0.0
    %2290 = vmatpush2.msra.mxu0 0.0
    %2291 = vmatprep.subr.mxu0 0.0
    %2292 = vmatpush2.msra.mxu0 0.0
    %2293 = vmatprep.subr.mxu0 0.0
    %2294 = vmatpush2.msra.mxu0 0.0
    %2295 = vmatprep.subr.mxu0 0.0
    %2296 = vmatpush2.msra.mxu0 0.0
    %2297 = vmatprep.subr.mxu0 0.0
    %2298 = vmatpush2.msra.mxu0 0.0
    %2299 = vmatprep.subr.mxu0 0.0
    %2300 = vmatpush2.msra.mxu0 0.0
    %2301 = vmatprep.subr.mxu0 0.0
    %2302 = vmatpush2.msra.mxu0 0.0
    %2303 = vmatprep.subr.mxu0 0.0
    %2304 = vmatpush2.msra.mxu0 0.0
    %2305 = vmatprep.subr.mxu0 0.0
    %2306 = vmatpush2.msra.mxu0 0.0
    %2307 = vmatprep.subr.mxu0 0.0
    %2308 = vmatpush2.msra.mxu0 0.0
    %2309 = vmatprep.subr.mxu0 0.0
    %2310 = vmatpush2.msra.mxu0 0.0
    %2311 = vmatprep.subr.mxu0 0.0
    %2312 = vmatpush2.msra.mxu0 0.0
    %2313 = vmatprep.subr.mxu0 0.0
    %2314 = vmatpush2.msra.mxu0 0.0
    %2315 = vmatprep.subr.mxu0 0.0
    %2316 = vmatpush2.msra.mxu0 0.0
    %2317 = vmatprep.subr.mxu0 0.0
    %2318 = vmatpush2.msra.mxu0 0.0
    %2319 = vmatprep.mubr.f32.mxu0 0.0
    %2320 = vmatmul.mubr.f32.gmra.mxu0 %v2253
    %v2321 = vpop.f32.mrf.mxu0
    %v2322 = vadd.f32 %v2249, %v2321
    %v2323 = vpop.f32.mrf.mxu0
    %2324 = vdwg.mxu0
    %vm2325 = vcmask 25600
    %2326 = vst.msk [vmem:[#allocation2] sm:$0x3] %vm2325, %v2322
    // Predicated region
    $region62: #{tpu_custom_call.1} parent=1 // pred_check
      _
    $region63: #{tpu_custom_call.1} parent=1 // pred_check_branch
      %2328 = sbr.rel (0) target = $region65
    $region64: #{tpu_custom_call.1} parent=1 // pred_region
      %s2330 = ssub.s32 32, 32
      %2331 = vsyncadd [#allocation3], %s2330
      %s2333 = sshll.u32 [#allocation2], 4
      %s2334 = int_to_ptr.vmem [resolvable:$true] %s2333
      %2336 = dma.vmem_to_hbm [thread:$0]  %s2334, 32, %s15, [#allocation3]
    $region65: #{tpu_custom_call.1} parent=1 // pred_fallthru
      _
    // Predicated region
    $region66: #{tpu_custom_call.1} parent=1 // pred_check
      _
    $region67: #{tpu_custom_call.1} parent=1 // pred_check_branch
      %2338 = sbr.rel (0) target = $region69
    $region68: #{tpu_custom_call.1} parent=1 // pred_region
      %2339 = dma.done [#allocation3], 32
    $region69: #{tpu_custom_call.1} parent=1 // pred_fallthru
      _
    %2340 = vsyncpa [#allocation3], 1

</llo_original>
